<compile_context>
chip_gen: v5e
topology: v5e:2x2
jax: 0.10.0
libtpu: 0.0.40
codegen_flags: <defaults>
</compile_context>

<pallas_src>
import functools

import jax
import jax.numpy as jnp
import numpy as np
from jax.experimental import pallas as pl
from jax.experimental.pallas import tpu as pltpu


def _pad_to(n, m):
    return ((n + m - 1) // m) * m


# ---------------------------------------------------------------------------
# Fused decoder kernel: one grid step == one chunk of t_blk time steps.
# ---------------------------------------------------------------------------
def _decoder_fused_kernel(x_ref, wi_ref, bi_ref, whh_ref, bh_ref, h0_ref,
                          wo_ref, bo_ref,
                          y_ref, hn_ref,
                          h_scr, gx_scr, hs_scr,
                          *, t_blk, b, hp, seq_len, unroll):
    f32 = jnp.float32
    c = pl.program_id(0)
    wdt = whh_ref.dtype                      # weight storage dtype (bf16 or f32)

    @pl.when(c == 0)
    def _():
        h_scr[...] = h0_ref[...].astype(f32)

    # ---- fused stage 1: input->gates projection for the whole chunk --------
    # PyTorch GRU gate order (r, z, n); biases pre-fused in prepare step:
    #   gx = x Wi^T + [b_ir+b_hr | b_iz+b_hz | b_in],   gh = h Whh^T + [0|0|b_hn]
    gx_scr[...] = (jnp.dot(x_ref[...].astype(wdt), wi_ref[...],
                           preferred_element_type=f32)
                   + bi_ref[...])

    # Hoist the loop-invariant bias read/broadcast out of the unrolled loop
    # (JAX does not CSE broadcast_in_dim).
    bh = bh_ref[...]

    # ---- serial GRU recurrence over the chunk ------------------------------
    def step(i, carry):
        h_prev = h_scr[...]                                        # (B, Hp) f32
        gh = jnp.dot(h_prev.astype(wdt), whh_ref[...],             # keep whh as Ref operand
                     preferred_element_type=f32) + bh
        gx = gx_scr[pl.ds(i * b, b), :]                            # (B, 3Hp)
        r = jax.nn.sigmoid(gx[:, 0:hp] + gh[:, 0:hp])
        z = jax.nn.sigmoid(gx[:, hp:2 * hp] + gh[:, hp:2 * hp])
        n = jnp.tanh(gx[:, 2 * hp:3 * hp] + r * gh[:, 2 * hp:3 * hp])
        h_new = (1.0 - z) * n + z * h_prev
        if seq_len is None:                    # no time padding -> no guard
            h_scr[...] = h_new
        else:                                  # padded tail steps must not touch h
            h_scr[...] = jnp.where(c * t_blk + i < seq_len, h_new, h_prev)
        hs_scr[pl.ds(i * b, b), :] = h_new     # chunk-local hidden sequence (VMEM only)
        return carry

    jax.lax.fori_loop(0, t_blk, step, 0, unroll=unroll)

    # ---- fused stage 3: output Linear for the whole chunk (lane-dense store)
    y_ref[...] = (jnp.dot(hs_scr[...].astype(wdt), wo_ref[...],
                          preferred_element_type=f32)
                  + bo_ref[...]).astype(y_ref.dtype)

    @pl.when(c == pl.num_programs(0) - 1)
    def _():
        hn_ref[...] = h_scr[...].astype(hn_ref.dtype)


# ---------------------------------------------------------------------------
# One-time parameter preparation (weight fusion + lane padding + dtype).
# params = (w_ih (3H,O), w_hh (3H,H), b_ih (3H,), b_hh (3H,), w_out (O,H), b_out (O,))
# ---------------------------------------------------------------------------
def prepare_decoder_params(params, *, param_dtype=jnp.bfloat16):
    f32 = jnp.float32
    w_ih, w_hh, b_ih, b_hh, w_out, b_out = [jnp.asarray(p, f32) for p in params]
    H = w_hh.shape[1]
    O = w_out.shape[0]
    Hp = _pad_to(H, 128)          # lane-dense hidden width
    Op = _pad_to(O, 128)          # lane-dense output width

    # input->gates: (O, 3Hp) = [Wir^T | Wiz^T | Win^T] per 128-lane-padded gate block
    wi = jnp.zeros((O, 3 * Hp), f32)
    whh = jnp.zeros((Hp, 3 * Hp), f32)
    for g in range(3):
        wi = wi.at[:, g * Hp:g * Hp + H].set(w_ih[g * H:(g + 1) * H].T)
        whh = whh.at[0:H, g * Hp:g * Hp + H].set(w_hh[g * H:(g + 1) * H].T)

    bi = jnp.zeros((1, 3 * Hp), f32)
    bi = bi.at[0, 0:H].set(b_ih[0:H] + b_hh[0:H])
    bi = bi.at[0, Hp:Hp + H].set(b_ih[H:2 * H] + b_hh[H:2 * H])
    bi = bi.at[0, 2 * Hp:2 * Hp + H].set(b_ih[2 * H:3 * H])
    bh = jnp.zeros((1, 3 * Hp), f32).at[0, 2 * Hp:2 * Hp + H].set(b_hh[2 * H:3 * H])

    wo = jnp.zeros((Hp, Op), f32).at[0:H, 0:O].set(w_out.T)
    bo = jnp.zeros((1, Op), f32).at[0, 0:O].set(b_out)

    # NOTE: padded rows/cols are zero and h0's pad is zeroed in the wrapper, so the
    # padded hidden lanes stay exactly zero across the recurrence (correctness invariant).
    return {
        "wi": wi.astype(param_dtype), "bi": bi,
        "whh": whh.astype(param_dtype), "bh": bh,
        "wo": wo.astype(param_dtype), "bo": bo,
        "H": int(H), "O": int(O), "Hp": int(Hp), "Op": int(Op),
    }


# ---------------------------------------------------------------------------
# Wrapper: DecoderRNN.forward
# ---------------------------------------------------------------------------
def decoder_rnn_forward(input_tensor, hidden_tensor, prep, *, t_blk=16):
    """input_tensor: (T, B, output_size) float; hidden_tensor: (1, B, hidden_size).

    Returns (output (T, B, output_size), hidden (1, B, hidden_size)) matching
    nn.GRU(output_size, hidden_size) + nn.Linear(hidden_size, output_size).
    """
    # TODO(synk): the original forward rebuilds its input from a module-level
    # `input_seq` global with a .long() cast; we take the float (T, B, output_size)
    # GRU input directly instead of reproducing that quirk.
    f32 = jnp.float32
    T, B, O_in = input_tensor.shape
    H, O, Hp, Op = prep["H"], prep["O"], prep["Hp"], prep["Op"]
    assert O_in == O, "GRU input feature size must equal output_size"

    t_blk = max(8, _pad_to(t_blk, 8))        # keep (t_blk*B, lanes) sublane-aligned
    Tpad = _pad_to(T, t_blk)
    unroll = True if t_blk <= 16 else 8      # partial unroll for large chunks

    x = input_tensor.astype(f32)
    if Tpad != T:
        x = jnp.pad(x, ((0, Tpad - T), (0, 0), (0, 0)))
    x2 = x.reshape(Tpad * B, O)                                   # rows = time-major (t*B + b)
    h0 = jnp.pad(hidden_tensor[0].astype(f32), ((0, 0), (0, Hp - H)))  # pad lanes stay zero

    kernel = functools.partial(
        _decoder_fused_kernel, t_blk=t_blk, b=B, hp=Hp,
        seq_len=(T if Tpad != T else None), unroll=unroll)

    y_flat, hn = pl.pallas_call(
        kernel,
        out_shape=(jax.ShapeDtypeStruct((Tpad * B, Op), f32),
                   jax.ShapeDtypeStruct((B, Hp), f32)),
        grid_spec=pltpu.PrefetchScalarGridSpec(
            num_scalar_prefetch=0,
            grid=(Tpad // t_blk,),
            in_specs=[
                pl.BlockSpec((t_blk * B, O), lambda c: (c, 0)),    # x chunk
                pl.BlockSpec((O, 3 * Hp), lambda c: (0, 0)),       # Wi  (bf16)
                pl.BlockSpec((1, 3 * Hp), lambda c: (0, 0)),       # fused ih+hh bias (r,z) + b_in
                pl.BlockSpec((Hp, 3 * Hp), lambda c: (0, 0)),      # Whh (bf16)
                pl.BlockSpec((1, 3 * Hp), lambda c: (0, 0)),       # b_hn only
                pl.BlockSpec((B, Hp), lambda c: (0, 0)),           # h0
                pl.BlockSpec((Hp, Op), lambda c: (0, 0)),          # Wo  (bf16)
                pl.BlockSpec((1, Op), lambda c: (0, 0)),           # b_out
            ],
            out_specs=[
                pl.BlockSpec((t_blk * B, Op), lambda c: (c, 0)),   # y chunk (lane-dense)
                pl.BlockSpec((B, Hp), lambda c: (0, 0)),           # final hidden (resident)
            ],
            scratch_shapes=[
                pltpu.VMEM((B, Hp), f32),                          # carried hidden state
                pltpu.VMEM((t_blk * B, 3 * Hp), f32),              # gx chunk (never hits HBM)
                pltpu.VMEM((t_blk * B, Hp), f32),                  # hseq chunk (never hits HBM)
            ],
        ),
        compiler_params=pltpu.CompilerParams(
            dimension_semantics=("arbitrary",),     # true recurrence over time
            vmem_limit_bytes=32 * 1024 * 1024),
    )(x2, prep["wi"], prep["bi"], prep["whh"], prep["bh"], h0,
      prep["wo"], prep["bo"])

    y = y_flat.reshape(Tpad, B, Op)
    output = y[:T, :, :O]          # (T, B, output_size)
    hidden = hn[:, :H][None]       # (num_layers=1, B, hidden_size)
    return output, hidden


# ---------------------------------------------------------------------------
# Pure-numpy reference matching PyTorch nn.GRU (1 layer) + nn.Linear semantics.
# ---------------------------------------------------------------------------
def _reference_decoder(x_tbo, h0_1bh, params):
    w_ih, w_hh, b_ih, b_hh, w_out, b_out = (np.asarray(p, np.float32) for p in params)
    x = np.asarray(x_tbo, np.float32)
    h = np.asarray(h0_1bh, np.float32)[0]
    T, B, _ = x.shape
    H = h.shape[-1]
    ys = np.zeros((T, B, H), np.float32)

    def sig(v):
        return 1.0 / (1.0 + np.exp(-v))

    for t in range(T):
        gi = x[t] @ w_ih.T + b_ih
        gh = h @ w_hh.T + b_hh
        r = sig(gi[:, :H] + gh[:, :H])
        z = sig(gi[:, H:2 * H] + gh[:, H:2 * H])
        n = np.tanh(gi[:, 2 * H:] + r * gh[:, 2 * H:])
        h = (1.0 - z) * n + z * h
        ys[t] = h
    out = ys @ w_out.T + b_out
    return out, h[None]


def _round_weights(params, dtype):
    """Round the weight matrices (not biases) to `dtype` and back to f32."""
    w_ih, w_hh, b_ih, b_hh, w_out, b_out = params
    rnd = lambda w: np.asarray(jnp.asarray(w, dtype).astype(jnp.float32))
    return (rnd(w_ih), rnd(w_hh), np.asarray(b_ih), np.asarray(b_hh),
            rnd(w_out), np.asarray(b_out))


if __name__ == "__main__":
    # seq=40 (exercises multiple chunks + time padding), batch=1, hidden=32, output=16
    T, B, H, O = 40, 1, 32, 16

    key = jax.random.PRNGKey(0)
    ks = jax.random.split(key, 8)
    x = jax.random.normal(ks[0], (T, B, O), dtype=jnp.float32)
    h0 = jax.random.normal(ks[1], (1, B, H), dtype=jnp.float32)

    bound = 1.0 / np.sqrt(H)       # PyTorch default init range
    w_ih = jax.random.uniform(ks[2], (3 * H, O), minval=-bound, maxval=bound, dtype=jnp.float32)
    w_hh = jax.random.uniform(ks[3], (3 * H, H), minval=-bound, maxval=bound, dtype=jnp.float32)
    b_ih = jax.random.uniform(ks[4], (3 * H,), minval=-bound, maxval=bound, dtype=jnp.float32)
    b_hh = jax.random.uniform(ks[5], (3 * H,), minval=-bound, maxval=bound, dtype=jnp.float32)
    w_out = jax.random.uniform(ks[6], (O, H), minval=-bound, maxval=bound, dtype=jnp.float32)
    b_out = jax.random.uniform(ks[7], (O,), minval=-bound, maxval=bound, dtype=jnp.float32)
    params = (w_ih, w_hh, b_ih, b_hh, w_out, b_out)

    # --- production path: bf16-stored weights, f32 accumulation / gate math -----
    prep_bf16 = prepare_decoder_params(params, param_dtype=jnp.bfloat16)
    out_bf16, hid_bf16 = decoder_rnn_forward(x, h0, prep_bf16, t_blk=16)
    out_bf16 = jax.block_until_ready(out_bf16)
    hid_bf16 = jax.block_until_ready(hid_bf16)
    ref_out_b, ref_hid_b = _reference_decoder(x, h0, _round_weights(params, jnp.bfloat16))
    np.testing.assert_allclose(np.asarray(out_bf16), ref_out_b, rtol=2e-2, atol=2e-2)
    np.testing.assert_allclose(np.asarray(hid_bf16), ref_hid_b, rtol=2e-2, atol=2e-2)

    # --- exactness check: f32-stored weights must match the f32 reference tightly
    prep_f32 = prepare_decoder_params(params, param_dtype=jnp.float32)
    out_f32, hid_f32 = decoder_rnn_forward(x, h0, prep_f32, t_blk=16)
    out_f32 = jax.block_until_ready(out_f32)
    hid_f32 = jax.block_until_ready(hid_f32)
    ref_out, ref_hid = _reference_decoder(x, h0, params)
    np.testing.assert_allclose(np.asarray(out_f32), ref_out, rtol=1e-5, atol=1e-5)
    np.testing.assert_allclose(np.asarray(hid_f32), ref_hid, rtol=1e-5, atol=1e-5)

    print("KERNEL_OK")
</pallas_src>

<mosaic_0001>
module attributes {stable_mosaic.version = 11 : i64} {
  func.func @_decoder_fused_kernel(%arg0: i32, %arg1: memref<16x16xf32, #tpu.memory_space<vmem>>, %arg2: memref<16x384xbf16, #tpu.memory_space<vmem>>, %arg3: memref<1x384xf32, #tpu.memory_space<vmem>>, %arg4: memref<128x384xbf16, #tpu.memory_space<vmem>>, %arg5: memref<1x384xf32, #tpu.memory_space<vmem>>, %arg6: memref<1x128xf32, #tpu.memory_space<vmem>>, %arg7: memref<128x128xbf16, #tpu.memory_space<vmem>>, %arg8: memref<1x128xf32, #tpu.memory_space<vmem>>, %arg9: memref<16x128xf32, #tpu.memory_space<vmem>>, %arg10: memref<1x128xf32, #tpu.memory_space<vmem>>, %arg11: memref<1x128xf32, #tpu.memory_space<vmem>>, %arg12: memref<16x384xf32, #tpu.memory_space<vmem>>, %arg13: memref<16x128xf32, #tpu.memory_space<vmem>>) attributes {dimension_semantics = [#tpu.dimension_semantics<arbitrary>], iteration_bounds = array<i64: 3>, scalar_prefetch = 0 : i64, scratch_operands = 3 : i64, tpu.core_type = #tpu.core_type<tc>, window_params = [{transform_indices = @transform_0, window_bounds = array<i64: 16, 16>}, {pipeline_mode = #tpu.pipeline_mode<synchronous>, transform_indices = @transform_1, window_bounds = array<i64: 16, 384>}, {pipeline_mode = #tpu.pipeline_mode<synchronous>, transform_indices = @transform_2, window_bounds = array<i64: 1, 384>}, {pipeline_mode = #tpu.pipeline_mode<synchronous>, transform_indices = @transform_3, window_bounds = array<i64: 128, 384>}, {pipeline_mode = #tpu.pipeline_mode<synchronous>, transform_indices = @transform_4, window_bounds = array<i64: 1, 384>}, {pipeline_mode = #tpu.pipeline_mode<synchronous>, transform_indices = @transform_5, window_bounds = array<i64: 1, 128>}, {pipeline_mode = #tpu.pipeline_mode<synchronous>, transform_indices = @transform_6, window_bounds = array<i64: 128, 128>}, {pipeline_mode = #tpu.pipeline_mode<synchronous>, transform_indices = @transform_7, window_bounds = array<i64: 1, 128>}, {transform_indices = @transform_8, window_bounds = array<i64: 16, 128>}, {pipeline_mode = #tpu.pipeline_mode<synchronous>, transform_indices = @transform_9, window_bounds = array<i64: 1, 128>}]} {
    %c0_i32 = arith.constant 0 : i32
    %0 = arith.cmpi eq, %arg0, %c0_i32 : i32
    %1 = arith.extui %0 : i1 to i32
    %c0_i32_0 = arith.constant 0 : i32
    %2 = arith.cmpi ne, %1, %c0_i32_0 : i32
    scf.if %2 {
      %c0_277 = arith.constant 0 : index
      %c0_278 = arith.constant 0 : index
      %695 = vector.load %arg6[%c0_277, %c0_278] : memref<1x128xf32, #tpu.memory_space<vmem>>, vector<1x128xf32>
      %c0_279 = arith.constant 0 : index
      %c0_280 = arith.constant 0 : index
      %696 = vector.load %arg11[%c0_279, %c0_280] : memref<1x128xf32, #tpu.memory_space<vmem>>, vector<1x128xf32>
      tpu.vector_store %arg11[%c0_279, %c0_280], %695 {strides = array<i32>} : memref<1x128xf32, #tpu.memory_space<vmem>>, vector<1x128xf32>,
    } else {
    }
    %c0 = arith.constant 0 : index
    %c0_1 = arith.constant 0 : index
    %3 = vector.load %arg1[%c0, %c0_1] : memref<16x16xf32, #tpu.memory_space<vmem>>, vector<16x16xf32>
    %4 = arith.truncf %3 : vector<16x16xf32> to vector<16x16xbf16>
    %c0_2 = arith.constant 0 : index
    %c0_3 = arith.constant 0 : index
    %5 = vector.load %arg2[%c0_2, %c0_3] : memref<16x384xbf16, #tpu.memory_space<vmem>>, vector<16x384xbf16>
    %cst = arith.constant dense<0.000000e+00> : vector<16x384xf32>
    %6 = tpu.matmul %4, %5, %cst {dimension_numbers = #tpu.dot_dimension_numbers<[1], [0], [0], [1], [0, 0, 1, 1], [], []>} : vector<16x16xbf16>, vector<16x384xbf16>, vector<16x384xf32> -> vector<16x384xf32>
    %c0_4 = arith.constant 0 : index
    %c0_5 = arith.constant 0 : index
    %7 = vector.load %arg3[%c0_4, %c0_5] : memref<1x384xf32, #tpu.memory_space<vmem>>, vector<1x384xf32>
    %8 = vector.broadcast %7 : vector<1x384xf32> to vector<16x384xf32>
    %9 = arith.addf %6, %8 : vector<16x384xf32>
    %c0_6 = arith.constant 0 : index
    %c0_7 = arith.constant 0 : index
    %10 = vector.load %arg12[%c0_6, %c0_7] : memref<16x384xf32, #tpu.memory_space<vmem>>, vector<16x384xf32>
    tpu.vector_store %arg12[%c0_6, %c0_7], %9 {strides = array<i32>} : memref<16x384xf32, #tpu.memory_space<vmem>>, vector<16x384xf32>,
    %c0_8 = arith.constant 0 : index
    %c0_9 = arith.constant 0 : index
    %11 = vector.load %arg5[%c0_8, %c0_9] : memref<1x384xf32, #tpu.memory_space<vmem>>, vector<1x384xf32>
    %c0_i32_10 = arith.constant 0 : i32
    %c0_11 = arith.constant 0 : index
    %c0_12 = arith.constant 0 : index
    %12 = vector.load %arg11[%c0_11, %c0_12] : memref<1x128xf32, #tpu.memory_space<vmem>>, vector<1x128xf32>
    %13 = arith.truncf %12 : vector<1x128xf32> to vector<1x128xbf16>
    %c0_13 = arith.constant 0 : index
    %c0_14 = arith.constant 0 : index
    %14 = vector.load %arg4[%c0_13, %c0_14] : memref<128x384xbf16, #tpu.memory_space<vmem>>, vector<128x384xbf16>
    %cst_15 = arith.constant dense<0.000000e+00> : vector<1x384xf32>
    %15 = tpu.matmul %13, %14, %cst_15 {dimension_numbers = #tpu.dot_dimension_numbers<[1], [0], [0], [1], [0, 0, 1, 1], [], []>} : vector<1x128xbf16>, vector<128x384xbf16>, vector<1x384xf32> -> vector<1x384xf32>
    %16 = arith.addf %15, %11 : vector<1x384xf32>
    %c1_i32 = arith.constant 1 : i32
    %17 = arith.muli %c0_i32_10, %c1_i32 : i32
    %18 = arith.index_cast %17 : i32 to index
    %c0_16 = arith.constant 0 : index
    %19 = vector.load %arg12[%18, %c0_16] : memref<16x384xf32, #tpu.memory_space<vmem>>, vector<1x384xf32>
    %20 = vector.extract_strided_slice %19 {offsets = [0, 0], sizes = [1, 128], strides = [1, 1]} : vector<1x384xf32> to vector<1x128xf32>
    %21 = vector.extract_strided_slice %16 {offsets = [0, 0], sizes = [1, 128], strides = [1, 1]} : vector<1x384xf32> to vector<1x128xf32>
    %22 = arith.addf %20, %21 : vector<1x128xf32>
    %23 = arith.negf %22 : vector<1x128xf32>
    %24 = math.exp %23 : vector<1x128xf32>
    %cst_17 = arith.constant 1.000000e+00 : f32
    %25 = vector.broadcast %cst_17 : f32 to vector<1x128xf32>
    %26 = arith.addf %25, %24 : vector<1x128xf32>
    %27 = arith.divf %25, %26 : vector<1x128xf32>
    %28 = vector.extract_strided_slice %19 {offsets = [0, 128], sizes = [1, 128], strides = [1, 1]} : vector<1x384xf32> to vector<1x128xf32>
    %29 = vector.extract_strided_slice %16 {offsets = [0, 128], sizes = [1, 128], strides = [1, 1]} : vector<1x384xf32> to vector<1x128xf32>
    %30 = arith.addf %28, %29 : vector<1x128xf32>
    %31 = arith.negf %30 : vector<1x128xf32>
    %32 = math.exp %31 : vector<1x128xf32>
    %cst_18 = arith.constant 1.000000e+00 : f32
    %33 = vector.broadcast %cst_18 : f32 to vector<1x128xf32>
    %34 = arith.addf %33, %32 : vector<1x128xf32>
    %35 = arith.divf %33, %34 : vector<1x128xf32>
    %36 = vector.extract_strided_slice %19 {offsets = [0, 256], sizes = [1, 128], strides = [1, 1]} : vector<1x384xf32> to vector<1x128xf32>
    %37 = vector.extract_strided_slice %16 {offsets = [0, 256], sizes = [1, 128], strides = [1, 1]} : vector<1x384xf32> to vector<1x128xf32>
    %38 = arith.mulf %27, %37 : vector<1x128xf32>
    %39 = arith.addf %36, %38 : vector<1x128xf32>
    %40 = math.tanh %39 : vector<1x128xf32>
    %cst_19 = arith.constant 1.000000e+00 : f32
    %41 = vector.broadcast %cst_19 : f32 to vector<1x128xf32>
    %42 = arith.subf %41, %35 : vector<1x128xf32>
    %43 = arith.mulf %42, %40 : vector<1x128xf32>
    %44 = arith.mulf %35, %12 : vector<1x128xf32>
    %45 = arith.addf %43, %44 : vector<1x128xf32>
    %c16_i32 = arith.constant 16 : i32
    %46 = arith.muli %arg0, %c16_i32 : i32
    %47 = arith.addi %46, %c0_i32_10 : i32
    %c40_i32 = arith.constant 40 : i32
    %48 = arith.cmpi slt, %47, %c40_i32 : i32
    %49 = arith.select %48, %45, %12 : vector<1x128xf32>
    %c0_20 = arith.constant 0 : index
    %c0_21 = arith.constant 0 : index
    %50 = vector.load %arg11[%c0_20, %c0_21] : memref<1x128xf32, #tpu.memory_space<vmem>>, vector<1x128xf32>
    tpu.vector_store %arg11[%c0_20, %c0_21], %49 {strides = array<i32>} : memref<1x128xf32, #tpu.memory_space<vmem>>, vector<1x128xf32>,
    %c1_i32_22 = arith.constant 1 : i32
    %51 = arith.muli %c0_i32_10, %c1_i32_22 : i32
    %52 = arith.index_cast %51 : i32 to index
    %c0_23 = arith.constant 0 : index
    %53 = vector.load %arg13[%52, %c0_23] : memref<16x128xf32, #tpu.memory_space<vmem>>, vector<1x128xf32>
    tpu.vector_store %arg13[%52, %c0_23], %45 {strides = array<i32>} : memref<16x128xf32, #tpu.memory_space<vmem>>, vector<1x128xf32>,
    %c1_i32_24 = arith.constant 1 : i32
    %c0_25 = arith.constant 0 : index
    %c0_26 = arith.constant 0 : index
    %54 = vector.load %arg11[%c0_25, %c0_26] : memref<1x128xf32, #tpu.memory_space<vmem>>, vector<1x128xf32>
    %55 = arith.truncf %54 : vector<1x128xf32> to vector<1x128xbf16>
    %c0_27 = arith.constant 0 : index
    %c0_28 = arith.constant 0 : index
    %56 = vector.load %arg4[%c0_27, %c0_28] : memref<128x384xbf16, #tpu.memory_space<vmem>>, vector<128x384xbf16>
    %cst_29 = arith.constant dense<0.000000e+00> : vector<1x384xf32>
    %57 = tpu.matmul %55, %56, %cst_29 {dimension_numbers = #tpu.dot_dimension_numbers<[1], [0], [0], [1], [0, 0, 1, 1], [], []>} : vector<1x128xbf16>, vector<128x384xbf16>, vector<1x384xf32> -> vector<1x384xf32>
    %58 = arith.addf %57, %11 : vector<1x384xf32>
    %c1_i32_30 = arith.constant 1 : i32
    %59 = arith.muli %c1_i32_24, %c1_i32_30 : i32
    %60 = arith.index_cast %59 : i32 to index
    %c0_31 = arith.constant 0 : index
    %61 = vector.load %arg12[%60, %c0_31] : memref<16x384xf32, #tpu.memory_space<vmem>>, vector<1x384xf32>
    %62 = vector.extract_strided_slice %61 {offsets = [0, 0], sizes = [1, 128], strides = [1, 1]} : vector<1x384xf32> to vector<1x128xf32>
    %63 = vector.extract_strided_slice %58 {offsets = [0, 0], sizes = [1, 128], strides = [1, 1]} : vector<1x384xf32> to vector<1x128xf32>
    %64 = arith.addf %62, %63 : vector<1x128xf32>
    %65 = arith.negf %64 : vector<1x128xf32>
    %66 = math.exp %65 : vector<1x128xf32>
    %cst_32 = arith.constant 1.000000e+00 : f32
    %67 = vector.broadcast %cst_32 : f32 to vector<1x128xf32>
    %68 = arith.addf %67, %66 : vector<1x128xf32>
    %69 = arith.divf %67, %68 : vector<1x128xf32>
    %70 = vector.extract_strided_slice %61 {offsets = [0, 128], sizes = [1, 128], strides = [1, 1]} : vector<1x384xf32> to vector<1x128xf32>
    %71 = vector.extract_strided_slice %58 {offsets = [0, 128], sizes = [1, 128], strides = [1, 1]} : vector<1x384xf32> to vector<1x128xf32>
    %72 = arith.addf %70, %71 : vector<1x128xf32>
    %73 = arith.negf %72 : vector<1x128xf32>
    %74 = math.exp %73 : vector<1x128xf32>
    %cst_33 = arith.constant 1.000000e+00 : f32
    %75 = vector.broadcast %cst_33 : f32 to vector<1x128xf32>
    %76 = arith.addf %75, %74 : vector<1x128xf32>
    %77 = arith.divf %75, %76 : vector<1x128xf32>
    %78 = vector.extract_strided_slice %61 {offsets = [0, 256], sizes = [1, 128], strides = [1, 1]} : vector<1x384xf32> to vector<1x128xf32>
    %79 = vector.extract_strided_slice %58 {offsets = [0, 256], sizes = [1, 128], strides = [1, 1]} : vector<1x384xf32> to vector<1x128xf32>
    %80 = arith.mulf %69, %79 : vector<1x128xf32>
    %81 = arith.addf %78, %80 : vector<1x128xf32>
    %82 = math.tanh %81 : vector<1x128xf32>
    %cst_34 = arith.constant 1.000000e+00 : f32
    %83 = vector.broadcast %cst_34 : f32 to vector<1x128xf32>
    %84 = arith.subf %83, %77 : vector<1x128xf32>
    %85 = arith.mulf %84, %82 : vector<1x128xf32>
    %86 = arith.mulf %77, %54 : vector<1x128xf32>
    %87 = arith.addf %85, %86 : vector<1x128xf32>
    %c16_i32_35 = arith.constant 16 : i32
    %88 = arith.muli %arg0, %c16_i32_35 : i32
    %89 = arith.addi %88, %c1_i32_24 : i32
    %c40_i32_36 = arith.constant 40 : i32
    %90 = arith.cmpi slt, %89, %c40_i32_36 : i32
    %91 = arith.select %90, %87, %54 : vector<1x128xf32>
    %c0_37 = arith.constant 0 : index
    %c0_38 = arith.constant 0 : index
    %92 = vector.load %arg11[%c0_37, %c0_38] : memref<1x128xf32, #tpu.memory_space<vmem>>, vector<1x128xf32>
    tpu.vector_store %arg11[%c0_37, %c0_38], %91 {strides = array<i32>} : memref<1x128xf32, #tpu.memory_space<vmem>>, vector<1x128xf32>,
    %c1_i32_39 = arith.constant 1 : i32
    %93 = arith.muli %c1_i32_24, %c1_i32_39 : i32
    %94 = arith.index_cast %93 : i32 to index
    %c0_40 = arith.constant 0 : index
    %95 = vector.load %arg13[%94, %c0_40] : memref<16x128xf32, #tpu.memory_space<vmem>>, vector<1x128xf32>
    tpu.vector_store %arg13[%94, %c0_40], %87 {strides = array<i32>} : memref<16x128xf32, #tpu.memory_space<vmem>>, vector<1x128xf32>,
    %c2_i32 = arith.constant 2 : i32
    %c0_41 = arith.constant 0 : index
    %c0_42 = arith.constant 0 : index
    %96 = vector.load %arg11[%c0_41, %c0_42] : memref<1x128xf32, #tpu.memory_space<vmem>>, vector<1x128xf32>
    %97 = arith.truncf %96 : vector<1x128xf32> to vector<1x128xbf16>
    %c0_43 = arith.constant 0 : index
    %c0_44 = arith.constant 0 : index
    %98 = vector.load %arg4[%c0_43, %c0_44] : memref<128x384xbf16, #tpu.memory_space<vmem>>, vector<128x384xbf16>
    %cst_45 = arith.constant dense<0.000000e+00> : vector<1x384xf32>
    %99 = tpu.matmul %97, %98, %cst_45 {dimension_numbers = #tpu.dot_dimension_numbers<[1], [0], [0], [1], [0, 0, 1, 1], [], []>} : vector<1x128xbf16>, vector<128x384xbf16>, vector<1x384xf32> -> vector<1x384xf32>
    %100 = arith.addf %99, %11 : vector<1x384xf32>
    %c1_i32_46 = arith.constant 1 : i32
    %101 = arith.muli %c2_i32, %c1_i32_46 : i32
    %102 = arith.index_cast %101 : i32 to index
    %c0_47 = arith.constant 0 : index
    %103 = vector.load %arg12[%102, %c0_47] : memref<16x384xf32, #tpu.memory_space<vmem>>, vector<1x384xf32>
    %104 = vector.extract_strided_slice %103 {offsets = [0, 0], sizes = [1, 128], strides = [1, 1]} : vector<1x384xf32> to vector<1x128xf32>
    %105 = vector.extract_strided_slice %100 {offsets = [0, 0], sizes = [1, 128], strides = [1, 1]} : vector<1x384xf32> to vector<1x128xf32>
    %106 = arith.addf %104, %105 : vector<1x128xf32>
    %107 = arith.negf %106 : vector<1x128xf32>
    %108 = math.exp %107 : vector<1x128xf32>
    %cst_48 = arith.constant 1.000000e+00 : f32
    %109 = vector.broadcast %cst_48 : f32 to vector<1x128xf32>
    %110 = arith.addf %109, %108 : vector<1x128xf32>
    %111 = arith.divf %109, %110 : vector<1x128xf32>
    %112 = vector.extract_strided_slice %103 {offsets = [0, 128], sizes = [1, 128], strides = [1, 1]} : vector<1x384xf32> to vector<1x128xf32>
    %113 = vector.extract_strided_slice %100 {offsets = [0, 128], sizes = [1, 128], strides = [1, 1]} : vector<1x384xf32> to vector<1x128xf32>
    %114 = arith.addf %112, %113 : vector<1x128xf32>
    %115 = arith.negf %114 : vector<1x128xf32>
    %116 = math.exp %115 : vector<1x128xf32>
    %cst_49 = arith.constant 1.000000e+00 : f32
    %117 = vector.broadcast %cst_49 : f32 to vector<1x128xf32>
    %118 = arith.addf %117, %116 : vector<1x128xf32>
    %119 = arith.divf %117, %118 : vector<1x128xf32>
    %120 = vector.extract_strided_slice %103 {offsets = [0, 256], sizes = [1, 128], strides = [1, 1]} : vector<1x384xf32> to vector<1x128xf32>
    %121 = vector.extract_strided_slice %100 {offsets = [0, 256], sizes = [1, 128], strides = [1, 1]} : vector<1x384xf32> to vector<1x128xf32>
    %122 = arith.mulf %111, %121 : vector<1x128xf32>
    %123 = arith.addf %120, %122 : vector<1x128xf32>
    %124 = math.tanh %123 : vector<1x128xf32>
    %cst_50 = arith.constant 1.000000e+00 : f32
    %125 = vector.broadcast %cst_50 : f32 to vector<1x128xf32>
    %126 = arith.subf %125, %119 : vector<1x128xf32>
    %127 = arith.mulf %126, %124 : vector<1x128xf32>
    %128 = arith.mulf %119, %96 : vector<1x128xf32>
    %129 = arith.addf %127, %128 : vector<1x128xf32>
    %c16_i32_51 = arith.constant 16 : i32
    %130 = arith.muli %arg0, %c16_i32_51 : i32
    %131 = arith.addi %130, %c2_i32 : i32
    %c40_i32_52 = arith.constant 40 : i32
    %132 = arith.cmpi slt, %131, %c40_i32_52 : i32
    %133 = arith.select %132, %129, %96 : vector<1x128xf32>
    %c0_53 = arith.constant 0 : index
    %c0_54 = arith.constant 0 : index
    %134 = vector.load %arg11[%c0_53, %c0_54] : memref<1x128xf32, #tpu.memory_space<vmem>>, vector<1x128xf32>
    tpu.vector_store %arg11[%c0_53, %c0_54], %133 {strides = array<i32>} : memref<1x128xf32, #tpu.memory_space<vmem>>, vector<1x128xf32>,
    %c1_i32_55 = arith.constant 1 : i32
    %135 = arith.muli %c2_i32, %c1_i32_55 : i32
    %136 = arith.index_cast %135 : i32 to index
    %c0_56 = arith.constant 0 : index
    %137 = vector.load %arg13[%136, %c0_56] : memref<16x128xf32, #tpu.memory_space<vmem>>, vector<1x128xf32>
    tpu.vector_store %arg13[%136, %c0_56], %129 {strides = array<i32>} : memref<16x128xf32, #tpu.memory_space<vmem>>, vector<1x128xf32>,
    %c3_i32 = arith.constant 3 : i32
    %c0_57 = arith.constant 0 : index
    %c0_58 = arith.constant 0 : index
    %138 = vector.load %arg11[%c0_57, %c0_58] : memref<1x128xf32, #tpu.memory_space<vmem>>, vector<1x128xf32>
    %139 = arith.truncf %138 : vector<1x128xf32> to vector<1x128xbf16>
    %c0_59 = arith.constant 0 : index
    %c0_60 = arith.constant 0 : index
    %140 = vector.load %arg4[%c0_59, %c0_60] : memref<128x384xbf16, #tpu.memory_space<vmem>>, vector<128x384xbf16>
    %cst_61 = arith.constant dense<0.000000e+00> : vector<1x384xf32>
    %141 = tpu.matmul %139, %140, %cst_61 {dimension_numbers = #tpu.dot_dimension_numbers<[1], [0], [0], [1], [0, 0, 1, 1], [], []>} : vector<1x128xbf16>, vector<128x384xbf16>, vector<1x384xf32> -> vector<1x384xf32>
    %142 = arith.addf %141, %11 : vector<1x384xf32>
    %c1_i32_62 = arith.constant 1 : i32
    %143 = arith.muli %c3_i32, %c1_i32_62 : i32
    %144 = arith.index_cast %143 : i32 to index
    %c0_63 = arith.constant 0 : index
    %145 = vector.load %arg12[%144, %c0_63] : memref<16x384xf32, #tpu.memory_space<vmem>>, vector<1x384xf32>
    %146 = vector.extract_strided_slice %145 {offsets = [0, 0], sizes = [1, 128], strides = [1, 1]} : vector<1x384xf32> to vector<1x128xf32>
    %147 = vector.extract_strided_slice %142 {offsets = [0, 0], sizes = [1, 128], strides = [1, 1]} : vector<1x384xf32> to vector<1x128xf32>
    %148 = arith.addf %146, %147 : vector<1x128xf32>
    %149 = arith.negf %148 : vector<1x128xf32>
    %150 = math.exp %149 : vector<1x128xf32>
    %cst_64 = arith.constant 1.000000e+00 : f32
    %151 = vector.broadcast %cst_64 : f32 to vector<1x128xf32>
    %152 = arith.addf %151, %150 : vector<1x128xf32>
    %153 = arith.divf %151, %152 : vector<1x128xf32>
    %154 = vector.extract_strided_slice %145 {offsets = [0, 128], sizes = [1, 128], strides = [1, 1]} : vector<1x384xf32> to vector<1x128xf32>
    %155 = vector.extract_strided_slice %142 {offsets = [0, 128], sizes = [1, 128], strides = [1, 1]} : vector<1x384xf32> to vector<1x128xf32>
    %156 = arith.addf %154, %155 : vector<1x128xf32>
    %157 = arith.negf %156 : vector<1x128xf32>
    %158 = math.exp %157 : vector<1x128xf32>
    %cst_65 = arith.constant 1.000000e+00 : f32
    %159 = vector.broadcast %cst_65 : f32 to vector<1x128xf32>
    %160 = arith.addf %159, %158 : vector<1x128xf32>
    %161 = arith.divf %159, %160 : vector<1x128xf32>
    %162 = vector.extract_strided_slice %145 {offsets = [0, 256], sizes = [1, 128], strides = [1, 1]} : vector<1x384xf32> to vector<1x128xf32>
    %163 = vector.extract_strided_slice %142 {offsets = [0, 256], sizes = [1, 128], strides = [1, 1]} : vector<1x384xf32> to vector<1x128xf32>
    %164 = arith.mulf %153, %163 : vector<1x128xf32>
    %165 = arith.addf %162, %164 : vector<1x128xf32>
    %166 = math.tanh %165 : vector<1x128xf32>
    %cst_66 = arith.constant 1.000000e+00 : f32
    %167 = vector.broadcast %cst_66 : f32 to vector<1x128xf32>
    %168 = arith.subf %167, %161 : vector<1x128xf32>
    %169 = arith.mulf %168, %166 : vector<1x128xf32>
    %170 = arith.mulf %161, %138 : vector<1x128xf32>
    %171 = arith.addf %169, %170 : vector<1x128xf32>
    %c16_i32_67 = arith.constant 16 : i32
    %172 = arith.muli %arg0, %c16_i32_67 : i32
    %173 = arith.addi %172, %c3_i32 : i32
    %c40_i32_68 = arith.constant 40 : i32
    %174 = arith.cmpi slt, %173, %c40_i32_68 : i32
    %175 = arith.select %174, %171, %138 : vector<1x128xf32>
    %c0_69 = arith.constant 0 : index
    %c0_70 = arith.constant 0 : index
    %176 = vector.load %arg11[%c0_69, %c0_70] : memref<1x128xf32, #tpu.memory_space<vmem>>, vector<1x128xf32>
    tpu.vector_store %arg11[%c0_69, %c0_70], %175 {strides = array<i32>} : memref<1x128xf32, #tpu.memory_space<vmem>>, vector<1x128xf32>,
    %c1_i32_71 = arith.constant 1 : i32
    %177 = arith.muli %c3_i32, %c1_i32_71 : i32
    %178 = arith.index_cast %177 : i32 to index
    %c0_72 = arith.constant 0 : index
    %179 = vector.load %arg13[%178, %c0_72] : memref<16x128xf32, #tpu.memory_space<vmem>>, vector<1x128xf32>
    tpu.vector_store %arg13[%178, %c0_72], %171 {strides = array<i32>} : memref<16x128xf32, #tpu.memory_space<vmem>>, vector<1x128xf32>,
    %c4_i32 = arith.constant 4 : i32
    %c0_73 = arith.constant 0 : index
    %c0_74 = arith.constant 0 : index
    %180 = vector.load %arg11[%c0_73, %c0_74] : memref<1x128xf32, #tpu.memory_space<vmem>>, vector<1x128xf32>
    %181 = arith.truncf %180 : vector<1x128xf32> to vector<1x128xbf16>
    %c0_75 = arith.constant 0 : index
    %c0_76 = arith.constant 0 : index
    %182 = vector.load %arg4[%c0_75, %c0_76] : memref<128x384xbf16, #tpu.memory_space<vmem>>, vector<128x384xbf16>
    %cst_77 = arith.constant dense<0.000000e+00> : vector<1x384xf32>
    %183 = tpu.matmul %181, %182, %cst_77 {dimension_numbers = #tpu.dot_dimension_numbers<[1], [0], [0], [1], [0, 0, 1, 1], [], []>} : vector<1x128xbf16>, vector<128x384xbf16>, vector<1x384xf32> -> vector<1x384xf32>
    %184 = arith.addf %183, %11 : vector<1x384xf32>
    %c1_i32_78 = arith.constant 1 : i32
    %185 = arith.muli %c4_i32, %c1_i32_78 : i32
    %186 = arith.index_cast %185 : i32 to index
    %c0_79 = arith.constant 0 : index
    %187 = vector.load %arg12[%186, %c0_79] : memref<16x384xf32, #tpu.memory_space<vmem>>, vector<1x384xf32>
    %188 = vector.extract_strided_slice %187 {offsets = [0, 0], sizes = [1, 128], strides = [1, 1]} : vector<1x384xf32> to vector<1x128xf32>
    %189 = vector.extract_strided_slice %184 {offsets = [0, 0], sizes = [1, 128], strides = [1, 1]} : vector<1x384xf32> to vector<1x128xf32>
    %190 = arith.addf %188, %189 : vector<1x128xf32>
    %191 = arith.negf %190 : vector<1x128xf32>
    %192 = math.exp %191 : vector<1x128xf32>
    %cst_80 = arith.constant 1.000000e+00 : f32
    %193 = vector.broadcast %cst_80 : f32 to vector<1x128xf32>
    %194 = arith.addf %193, %192 : vector<1x128xf32>
    %195 = arith.divf %193, %194 : vector<1x128xf32>
    %196 = vector.extract_strided_slice %187 {offsets = [0, 128], sizes = [1, 128], strides = [1, 1]} : vector<1x384xf32> to vector<1x128xf32>
    %197 = vector.extract_strided_slice %184 {offsets = [0, 128], sizes = [1, 128], strides = [1, 1]} : vector<1x384xf32> to vector<1x128xf32>
    %198 = arith.addf %196, %197 : vector<1x128xf32>
    %199 = arith.negf %198 : vector<1x128xf32>
    %200 = math.exp %199 : vector<1x128xf32>
    %cst_81 = arith.constant 1.000000e+00 : f32
    %201 = vector.broadcast %cst_81 : f32 to vector<1x128xf32>
    %202 = arith.addf %201, %200 : vector<1x128xf32>
    %203 = arith.divf %201, %202 : vector<1x128xf32>
    %204 = vector.extract_strided_slice %187 {offsets = [0, 256], sizes = [1, 128], strides = [1, 1]} : vector<1x384xf32> to vector<1x128xf32>
    %205 = vector.extract_strided_slice %184 {offsets = [0, 256], sizes = [1, 128], strides = [1, 1]} : vector<1x384xf32> to vector<1x128xf32>
    %206 = arith.mulf %195, %205 : vector<1x128xf32>
    %207 = arith.addf %204, %206 : vector<1x128xf32>
    %208 = math.tanh %207 : vector<1x128xf32>
    %cst_82 = arith.constant 1.000000e+00 : f32
    %209 = vector.broadcast %cst_82 : f32 to vector<1x128xf32>
    %210 = arith.subf %209, %203 : vector<1x128xf32>
    %211 = arith.mulf %210, %208 : vector<1x128xf32>
    %212 = arith.mulf %203, %180 : vector<1x128xf32>
    %213 = arith.addf %211, %212 : vector<1x128xf32>
    %c16_i32_83 = arith.constant 16 : i32
    %214 = arith.muli %arg0, %c16_i32_83 : i32
    %215 = arith.addi %214, %c4_i32 : i32
    %c40_i32_84 = arith.constant 40 : i32
    %216 = arith.cmpi slt, %215, %c40_i32_84 : i32
    %217 = arith.select %216, %213, %180 : vector<1x128xf32>
    %c0_85 = arith.constant 0 : index
    %c0_86 = arith.constant 0 : index
    %218 = vector.load %arg11[%c0_85, %c0_86] : memref<1x128xf32, #tpu.memory_space<vmem>>, vector<1x128xf32>
    tpu.vector_store %arg11[%c0_85, %c0_86], %217 {strides = array<i32>} : memref<1x128xf32, #tpu.memory_space<vmem>>, vector<1x128xf32>,
    %c1_i32_87 = arith.constant 1 : i32
    %219 = arith.muli %c4_i32, %c1_i32_87 : i32
    %220 = arith.index_cast %219 : i32 to index
    %c0_88 = arith.constant 0 : index
    %221 = vector.load %arg13[%220, %c0_88] : memref<16x128xf32, #tpu.memory_space<vmem>>, vector<1x128xf32>
    tpu.vector_store %arg13[%220, %c0_88], %213 {strides = array<i32>} : memref<16x128xf32, #tpu.memory_space<vmem>>, vector<1x128xf32>,
    %c5_i32 = arith.constant 5 : i32
    %c0_89 = arith.constant 0 : index
    %c0_90 = arith.constant 0 : index
    %222 = vector.load %arg11[%c0_89, %c0_90] : memref<1x128xf32, #tpu.memory_space<vmem>>, vector<1x128xf32>
    %223 = arith.truncf %222 : vector<1x128xf32> to vector<1x128xbf16>
    %c0_91 = arith.constant 0 : index
    %c0_92 = arith.constant 0 : index
    %224 = vector.load %arg4[%c0_91, %c0_92] : memref<128x384xbf16, #tpu.memory_space<vmem>>, vector<128x384xbf16>
    %cst_93 = arith.constant dense<0.000000e+00> : vector<1x384xf32>
    %225 = tpu.matmul %223, %224, %cst_93 {dimension_numbers = #tpu.dot_dimension_numbers<[1], [0], [0], [1], [0, 0, 1, 1], [], []>} : vector<1x128xbf16>, vector<128x384xbf16>, vector<1x384xf32> -> vector<1x384xf32>
    %226 = arith.addf %225, %11 : vector<1x384xf32>
    %c1_i32_94 = arith.constant 1 : i32
    %227 = arith.muli %c5_i32, %c1_i32_94 : i32
    %228 = arith.index_cast %227 : i32 to index
    %c0_95 = arith.constant 0 : index
    %229 = vector.load %arg12[%228, %c0_95] : memref<16x384xf32, #tpu.memory_space<vmem>>, vector<1x384xf32>
    %230 = vector.extract_strided_slice %229 {offsets = [0, 0], sizes = [1, 128], strides = [1, 1]} : vector<1x384xf32> to vector<1x128xf32>
    %231 = vector.extract_strided_slice %226 {offsets = [0, 0], sizes = [1, 128], strides = [1, 1]} : vector<1x384xf32> to vector<1x128xf32>
    %232 = arith.addf %230, %231 : vector<1x128xf32>
    %233 = arith.negf %232 : vector<1x128xf32>
    %234 = math.exp %233 : vector<1x128xf32>
    %cst_96 = arith.constant 1.000000e+00 : f32
    %235 = vector.broadcast %cst_96 : f32 to vector<1x128xf32>
    %236 = arith.addf %235, %234 : vector<1x128xf32>
    %237 = arith.divf %235, %236 : vector<1x128xf32>
    %238 = vector.extract_strided_slice %229 {offsets = [0, 128], sizes = [1, 128], strides = [1, 1]} : vector<1x384xf32> to vector<1x128xf32>
    %239 = vector.extract_strided_slice %226 {offsets = [0, 128], sizes = [1, 128], strides = [1, 1]} : vector<1x384xf32> to vector<1x128xf32>
    %240 = arith.addf %238, %239 : vector<1x128xf32>
    %241 = arith.negf %240 : vector<1x128xf32>
    %242 = math.exp %241 : vector<1x128xf32>
    %cst_97 = arith.constant 1.000000e+00 : f32
    %243 = vector.broadcast %cst_97 : f32 to vector<1x128xf32>
    %244 = arith.addf %243, %242 : vector<1x128xf32>
    %245 = arith.divf %243, %244 : vector<1x128xf32>
    %246 = vector.extract_strided_slice %229 {offsets = [0, 256], sizes = [1, 128], strides = [1, 1]} : vector<1x384xf32> to vector<1x128xf32>
    %247 = vector.extract_strided_slice %226 {offsets = [0, 256], sizes = [1, 128], strides = [1, 1]} : vector<1x384xf32> to vector<1x128xf32>
    %248 = arith.mulf %237, %247 : vector<1x128xf32>
    %249 = arith.addf %246, %248 : vector<1x128xf32>
    %250 = math.tanh %249 : vector<1x128xf32>
    %cst_98 = arith.constant 1.000000e+00 : f32
    %251 = vector.broadcast %cst_98 : f32 to vector<1x128xf32>
    %252 = arith.subf %251, %245 : vector<1x128xf32>
    %253 = arith.mulf %252, %250 : vector<1x128xf32>
    %254 = arith.mulf %245, %222 : vector<1x128xf32>
    %255 = arith.addf %253, %254 : vector<1x128xf32>
    %c16_i32_99 = arith.constant 16 : i32
    %256 = arith.muli %arg0, %c16_i32_99 : i32
    %257 = arith.addi %256, %c5_i32 : i32
    %c40_i32_100 = arith.constant 40 : i32
    %258 = arith.cmpi slt, %257, %c40_i32_100 : i32
    %259 = arith.select %258, %255, %222 : vector<1x128xf32>
    %c0_101 = arith.constant 0 : index
    %c0_102 = arith.constant 0 : index
    %260 = vector.load %arg11[%c0_101, %c0_102] : memref<1x128xf32, #tpu.memory_space<vmem>>, vector<1x128xf32>
    tpu.vector_store %arg11[%c0_101, %c0_102], %259 {strides = array<i32>} : memref<1x128xf32, #tpu.memory_space<vmem>>, vector<1x128xf32>,
    %c1_i32_103 = arith.constant 1 : i32
    %261 = arith.muli %c5_i32, %c1_i32_103 : i32
    %262 = arith.index_cast %261 : i32 to index
    %c0_104 = arith.constant 0 : index
    %263 = vector.load %arg13[%262, %c0_104] : memref<16x128xf32, #tpu.memory_space<vmem>>, vector<1x128xf32>
    tpu.vector_store %arg13[%262, %c0_104], %255 {strides = array<i32>} : memref<16x128xf32, #tpu.memory_space<vmem>>, vector<1x128xf32>,
    %c6_i32 = arith.constant 6 : i32
    %c0_105 = arith.constant 0 : index
    %c0_106 = arith.constant 0 : index
    %264 = vector.load %arg11[%c0_105, %c0_106] : memref<1x128xf32, #tpu.memory_space<vmem>>, vector<1x128xf32>
    %265 = arith.truncf %264 : vector<1x128xf32> to vector<1x128xbf16>
    %c0_107 = arith.constant 0 : index
    %c0_108 = arith.constant 0 : index
    %266 = vector.load %arg4[%c0_107, %c0_108] : memref<128x384xbf16, #tpu.memory_space<vmem>>, vector<128x384xbf16>
    %cst_109 = arith.constant dense<0.000000e+00> : vector<1x384xf32>
    %267 = tpu.matmul %265, %266, %cst_109 {dimension_numbers = #tpu.dot_dimension_numbers<[1], [0], [0], [1], [0, 0, 1, 1], [], []>} : vector<1x128xbf16>, vector<128x384xbf16>, vector<1x384xf32> -> vector<1x384xf32>
    %268 = arith.addf %267, %11 : vector<1x384xf32>
    %c1_i32_110 = arith.constant 1 : i32
    %269 = arith.muli %c6_i32, %c1_i32_110 : i32
    %270 = arith.index_cast %269 : i32 to index
    %c0_111 = arith.constant 0 : index
    %271 = vector.load %arg12[%270, %c0_111] : memref<16x384xf32, #tpu.memory_space<vmem>>, vector<1x384xf32>
    %272 = vector.extract_strided_slice %271 {offsets = [0, 0], sizes = [1, 128], strides = [1, 1]} : vector<1x384xf32> to vector<1x128xf32>
    %273 = vector.extract_strided_slice %268 {offsets = [0, 0], sizes = [1, 128], strides = [1, 1]} : vector<1x384xf32> to vector<1x128xf32>
    %274 = arith.addf %272, %273 : vector<1x128xf32>
    %275 = arith.negf %274 : vector<1x128xf32>
    %276 = math.exp %275 : vector<1x128xf32>
    %cst_112 = arith.constant 1.000000e+00 : f32
    %277 = vector.broadcast %cst_112 : f32 to vector<1x128xf32>
    %278 = arith.addf %277, %276 : vector<1x128xf32>
    %279 = arith.divf %277, %278 : vector<1x128xf32>
    %280 = vector.extract_strided_slice %271 {offsets = [0, 128], sizes = [1, 128], strides = [1, 1]} : vector<1x384xf32> to vector<1x128xf32>
    %281 = vector.extract_strided_slice %268 {offsets = [0, 128], sizes = [1, 128], strides = [1, 1]} : vector<1x384xf32> to vector<1x128xf32>
    %282 = arith.addf %280, %281 : vector<1x128xf32>
    %283 = arith.negf %282 : vector<1x128xf32>
    %284 = math.exp %283 : vector<1x128xf32>
    %cst_113 = arith.constant 1.000000e+00 : f32
    %285 = vector.broadcast %cst_113 : f32 to vector<1x128xf32>
    %286 = arith.addf %285, %284 : vector<1x128xf32>
    %287 = arith.divf %285, %286 : vector<1x128xf32>
    %288 = vector.extract_strided_slice %271 {offsets = [0, 256], sizes = [1, 128], strides = [1, 1]} : vector<1x384xf32> to vector<1x128xf32>
    %289 = vector.extract_strided_slice %268 {offsets = [0, 256], sizes = [1, 128], strides = [1, 1]} : vector<1x384xf32> to vector<1x128xf32>
    %290 = arith.mulf %279, %289 : vector<1x128xf32>
    %291 = arith.addf %288, %290 : vector<1x128xf32>
    %292 = math.tanh %291 : vector<1x128xf32>
    %cst_114 = arith.constant 1.000000e+00 : f32
    %293 = vector.broadcast %cst_114 : f32 to vector<1x128xf32>
    %294 = arith.subf %293, %287 : vector<1x128xf32>
    %295 = arith.mulf %294, %292 : vector<1x128xf32>
    %296 = arith.mulf %287, %264 : vector<1x128xf32>
    %297 = arith.addf %295, %296 : vector<1x128xf32>
    %c16_i32_115 = arith.constant 16 : i32
    %298 = arith.muli %arg0, %c16_i32_115 : i32
    %299 = arith.addi %298, %c6_i32 : i32
    %c40_i32_116 = arith.constant 40 : i32
    %300 = arith.cmpi slt, %299, %c40_i32_116 : i32
    %301 = arith.select %300, %297, %264 : vector<1x128xf32>
    %c0_117 = arith.constant 0 : index
    %c0_118 = arith.constant 0 : index
    %302 = vector.load %arg11[%c0_117, %c0_118] : memref<1x128xf32, #tpu.memory_space<vmem>>, vector<1x128xf32>
    tpu.vector_store %arg11[%c0_117, %c0_118], %301 {strides = array<i32>} : memref<1x128xf32, #tpu.memory_space<vmem>>, vector<1x128xf32>,
    %c1_i32_119 = arith.constant 1 : i32
    %303 = arith.muli %c6_i32, %c1_i32_119 : i32
    %304 = arith.index_cast %303 : i32 to index
    %c0_120 = arith.constant 0 : index
    %305 = vector.load %arg13[%304, %c0_120] : memref<16x128xf32, #tpu.memory_space<vmem>>, vector<1x128xf32>
    tpu.vector_store %arg13[%304, %c0_120], %297 {strides = array<i32>} : memref<16x128xf32, #tpu.memory_space<vmem>>, vector<1x128xf32>,
    %c7_i32 = arith.constant 7 : i32
    %c0_121 = arith.constant 0 : index
    %c0_122 = arith.constant 0 : index
    %306 = vector.load %arg11[%c0_121, %c0_122] : memref<1x128xf32, #tpu.memory_space<vmem>>, vector<1x128xf32>
    %307 = arith.truncf %306 : vector<1x128xf32> to vector<1x128xbf16>
    %c0_123 = arith.constant 0 : index
    %c0_124 = arith.constant 0 : index
    %308 = vector.load %arg4[%c0_123, %c0_124] : memref<128x384xbf16, #tpu.memory_space<vmem>>, vector<128x384xbf16>
    %cst_125 = arith.constant dense<0.000000e+00> : vector<1x384xf32>
    %309 = tpu.matmul %307, %308, %cst_125 {dimension_numbers = #tpu.dot_dimension_numbers<[1], [0], [0], [1], [0, 0, 1, 1], [], []>} : vector<1x128xbf16>, vector<128x384xbf16>, vector<1x384xf32> -> vector<1x384xf32>
    %310 = arith.addf %309, %11 : vector<1x384xf32>
    %c1_i32_126 = arith.constant 1 : i32
    %311 = arith.muli %c7_i32, %c1_i32_126 : i32
    %312 = arith.index_cast %311 : i32 to index
    %c0_127 = arith.constant 0 : index
    %313 = vector.load %arg12[%312, %c0_127] : memref<16x384xf32, #tpu.memory_space<vmem>>, vector<1x384xf32>
    %314 = vector.extract_strided_slice %313 {offsets = [0, 0], sizes = [1, 128], strides = [1, 1]} : vector<1x384xf32> to vector<1x128xf32>
    %315 = vector.extract_strided_slice %310 {offsets = [0, 0], sizes = [1, 128], strides = [1, 1]} : vector<1x384xf32> to vector<1x128xf32>
    %316 = arith.addf %314, %315 : vector<1x128xf32>
    %317 = arith.negf %316 : vector<1x128xf32>
    %318 = math.exp %317 : vector<1x128xf32>
    %cst_128 = arith.constant 1.000000e+00 : f32
    %319 = vector.broadcast %cst_128 : f32 to vector<1x128xf32>
    %320 = arith.addf %319, %318 : vector<1x128xf32>
    %321 = arith.divf %319, %320 : vector<1x128xf32>
    %322 = vector.extract_strided_slice %313 {offsets = [0, 128], sizes = [1, 128], strides = [1, 1]} : vector<1x384xf32> to vector<1x128xf32>
    %323 = vector.extract_strided_slice %310 {offsets = [0, 128], sizes = [1, 128], strides = [1, 1]} : vector<1x384xf32> to vector<1x128xf32>
    %324 = arith.addf %322, %323 : vector<1x128xf32>
    %325 = arith.negf %324 : vector<1x128xf32>
    %326 = math.exp %325 : vector<1x128xf32>
    %cst_129 = arith.constant 1.000000e+00 : f32
    %327 = vector.broadcast %cst_129 : f32 to vector<1x128xf32>
    %328 = arith.addf %327, %326 : vector<1x128xf32>
    %329 = arith.divf %327, %328 : vector<1x128xf32>
    %330 = vector.extract_strided_slice %313 {offsets = [0, 256], sizes = [1, 128], strides = [1, 1]} : vector<1x384xf32> to vector<1x128xf32>
    %331 = vector.extract_strided_slice %310 {offsets = [0, 256], sizes = [1, 128], strides = [1, 1]} : vector<1x384xf32> to vector<1x128xf32>
    %332 = arith.mulf %321, %331 : vector<1x128xf32>
    %333 = arith.addf %330, %332 : vector<1x128xf32>
    %334 = math.tanh %333 : vector<1x128xf32>
    %cst_130 = arith.constant 1.000000e+00 : f32
    %335 = vector.broadcast %cst_130 : f32 to vector<1x128xf32>
    %336 = arith.subf %335, %329 : vector<1x128xf32>
    %337 = arith.mulf %336, %334 : vector<1x128xf32>
    %338 = arith.mulf %329, %306 : vector<1x128xf32>
    %339 = arith.addf %337, %338 : vector<1x128xf32>
    %c16_i32_131 = arith.constant 16 : i32
    %340 = arith.muli %arg0, %c16_i32_131 : i32
    %341 = arith.addi %340, %c7_i32 : i32
    %c40_i32_132 = arith.constant 40 : i32
    %342 = arith.cmpi slt, %341, %c40_i32_132 : i32
    %343 = arith.select %342, %339, %306 : vector<1x128xf32>
    %c0_133 = arith.constant 0 : index
    %c0_134 = arith.constant 0 : index
    %344 = vector.load %arg11[%c0_133, %c0_134] : memref<1x128xf32, #tpu.memory_space<vmem>>, vector<1x128xf32>
    tpu.vector_store %arg11[%c0_133, %c0_134], %343 {strides = array<i32>} : memref<1x128xf32, #tpu.memory_space<vmem>>, vector<1x128xf32>,
    %c1_i32_135 = arith.constant 1 : i32
    %345 = arith.muli %c7_i32, %c1_i32_135 : i32
    %346 = arith.index_cast %345 : i32 to index
    %c0_136 = arith.constant 0 : index
    %347 = vector.load %arg13[%346, %c0_136] : memref<16x128xf32, #tpu.memory_space<vmem>>, vector<1x128xf32>
    tpu.vector_store %arg13[%346, %c0_136], %339 {strides = array<i32>} : memref<16x128xf32, #tpu.memory_space<vmem>>, vector<1x128xf32>,
    %c8_i32 = arith.constant 8 : i32
    %c0_137 = arith.constant 0 : index
    %c0_138 = arith.constant 0 : index
    %348 = vector.load %arg11[%c0_137, %c0_138] : memref<1x128xf32, #tpu.memory_space<vmem>>, vector<1x128xf32>
    %349 = arith.truncf %348 : vector<1x128xf32> to vector<1x128xbf16>
    %c0_139 = arith.constant 0 : index
    %c0_140 = arith.constant 0 : index
    %350 = vector.load %arg4[%c0_139, %c0_140] : memref<128x384xbf16, #tpu.memory_space<vmem>>, vector<128x384xbf16>
    %cst_141 = arith.constant dense<0.000000e+00> : vector<1x384xf32>
    %351 = tpu.matmul %349, %350, %cst_141 {dimension_numbers = #tpu.dot_dimension_numbers<[1], [0], [0], [1], [0, 0, 1, 1], [], []>} : vector<1x128xbf16>, vector<128x384xbf16>, vector<1x384xf32> -> vector<1x384xf32>
    %352 = arith.addf %351, %11 : vector<1x384xf32>
    %c1_i32_142 = arith.constant 1 : i32
    %353 = arith.muli %c8_i32, %c1_i32_142 : i32
    %354 = arith.index_cast %353 : i32 to index
    %c0_143 = arith.constant 0 : index
    %355 = vector.load %arg12[%354, %c0_143] : memref<16x384xf32, #tpu.memory_space<vmem>>, vector<1x384xf32>
    %356 = vector.extract_strided_slice %355 {offsets = [0, 0], sizes = [1, 128], strides = [1, 1]} : vector<1x384xf32> to vector<1x128xf32>
    %357 = vector.extract_strided_slice %352 {offsets = [0, 0], sizes = [1, 128], strides = [1, 1]} : vector<1x384xf32> to vector<1x128xf32>
    %358 = arith.addf %356, %357 : vector<1x128xf32>
    %359 = arith.negf %358 : vector<1x128xf32>
    %360 = math.exp %359 : vector<1x128xf32>
    %cst_144 = arith.constant 1.000000e+00 : f32
    %361 = vector.broadcast %cst_144 : f32 to vector<1x128xf32>
    %362 = arith.addf %361, %360 : vector<1x128xf32>
    %363 = arith.divf %361, %362 : vector<1x128xf32>
    %364 = vector.extract_strided_slice %355 {offsets = [0, 128], sizes = [1, 128], strides = [1, 1]} : vector<1x384xf32> to vector<1x128xf32>
    %365 = vector.extract_strided_slice %352 {offsets = [0, 128], sizes = [1, 128], strides = [1, 1]} : vector<1x384xf32> to vector<1x128xf32>
    %366 = arith.addf %364, %365 : vector<1x128xf32>
    %367 = arith.negf %366 : vector<1x128xf32>
    %368 = math.exp %367 : vector<1x128xf32>
    %cst_145 = arith.constant 1.000000e+00 : f32
    %369 = vector.broadcast %cst_145 : f32 to vector<1x128xf32>
    %370 = arith.addf %369, %368 : vector<1x128xf32>
    %371 = arith.divf %369, %370 : vector<1x128xf32>
    %372 = vector.extract_strided_slice %355 {offsets = [0, 256], sizes = [1, 128], strides = [1, 1]} : vector<1x384xf32> to vector<1x128xf32>
    %373 = vector.extract_strided_slice %352 {offsets = [0, 256], sizes = [1, 128], strides = [1, 1]} : vector<1x384xf32> to vector<1x128xf32>
    %374 = arith.mulf %363, %373 : vector<1x128xf32>
    %375 = arith.addf %372, %374 : vector<1x128xf32>
    %376 = math.tanh %375 : vector<1x128xf32>
    %cst_146 = arith.constant 1.000000e+00 : f32
    %377 = vector.broadcast %cst_146 : f32 to vector<1x128xf32>
    %378 = arith.subf %377, %371 : vector<1x128xf32>
    %379 = arith.mulf %378, %376 : vector<1x128xf32>
    %380 = arith.mulf %371, %348 : vector<1x128xf32>
    %381 = arith.addf %379, %380 : vector<1x128xf32>
    %c16_i32_147 = arith.constant 16 : i32
    %382 = arith.muli %arg0, %c16_i32_147 : i32
    %383 = arith.addi %382, %c8_i32 : i32
    %c40_i32_148 = arith.constant 40 : i32
    %384 = arith.cmpi slt, %383, %c40_i32_148 : i32
    %385 = arith.select %384, %381, %348 : vector<1x128xf32>
    %c0_149 = arith.constant 0 : index
    %c0_150 = arith.constant 0 : index
    %386 = vector.load %arg11[%c0_149, %c0_150] : memref<1x128xf32, #tpu.memory_space<vmem>>, vector<1x128xf32>
    tpu.vector_store %arg11[%c0_149, %c0_150], %385 {strides = array<i32>} : memref<1x128xf32, #tpu.memory_space<vmem>>, vector<1x128xf32>,
    %c1_i32_151 = arith.constant 1 : i32
    %387 = arith.muli %c8_i32, %c1_i32_151 : i32
    %388 = arith.index_cast %387 : i32 to index
    %c0_152 = arith.constant 0 : index
    %389 = vector.load %arg13[%388, %c0_152] : memref<16x128xf32, #tpu.memory_space<vmem>>, vector<1x128xf32>
    tpu.vector_store %arg13[%388, %c0_152], %381 {strides = array<i32>} : memref<16x128xf32, #tpu.memory_space<vmem>>, vector<1x128xf32>,
    %c9_i32 = arith.constant 9 : i32
    %c0_153 = arith.constant 0 : index
    %c0_154 = arith.constant 0 : index
    %390 = vector.load %arg11[%c0_153, %c0_154] : memref<1x128xf32, #tpu.memory_space<vmem>>, vector<1x128xf32>
    %391 = arith.truncf %390 : vector<1x128xf32> to vector<1x128xbf16>
    %c0_155 = arith.constant 0 : index
    %c0_156 = arith.constant 0 : index
    %392 = vector.load %arg4[%c0_155, %c0_156] : memref<128x384xbf16, #tpu.memory_space<vmem>>, vector<128x384xbf16>
    %cst_157 = arith.constant dense<0.000000e+00> : vector<1x384xf32>
    %393 = tpu.matmul %391, %392, %cst_157 {dimension_numbers = #tpu.dot_dimension_numbers<[1], [0], [0], [1], [0, 0, 1, 1], [], []>} : vector<1x128xbf16>, vector<128x384xbf16>, vector<1x384xf32> -> vector<1x384xf32>
    %394 = arith.addf %393, %11 : vector<1x384xf32>
    %c1_i32_158 = arith.constant 1 : i32
    %395 = arith.muli %c9_i32, %c1_i32_158 : i32
    %396 = arith.index_cast %395 : i32 to index
    %c0_159 = arith.constant 0 : index
    %397 = vector.load %arg12[%396, %c0_159] : memref<16x384xf32, #tpu.memory_space<vmem>>, vector<1x384xf32>
    %398 = vector.extract_strided_slice %397 {offsets = [0, 0], sizes = [1, 128], strides = [1, 1]} : vector<1x384xf32> to vector<1x128xf32>
    %399 = vector.extract_strided_slice %394 {offsets = [0, 0], sizes = [1, 128], strides = [1, 1]} : vector<1x384xf32> to vector<1x128xf32>
    %400 = arith.addf %398, %399 : vector<1x128xf32>
    %401 = arith.negf %400 : vector<1x128xf32>
    %402 = math.exp %401 : vector<1x128xf32>
    %cst_160 = arith.constant 1.000000e+00 : f32
    %403 = vector.broadcast %cst_160 : f32 to vector<1x128xf32>
    %404 = arith.addf %403, %402 : vector<1x128xf32>
    %405 = arith.divf %403, %404 : vector<1x128xf32>
    %406 = vector.extract_strided_slice %397 {offsets = [0, 128], sizes = [1, 128], strides = [1, 1]} : vector<1x384xf32> to vector<1x128xf32>
    %407 = vector.extract_strided_slice %394 {offsets = [0, 128], sizes = [1, 128], strides = [1, 1]} : vector<1x384xf32> to vector<1x128xf32>
    %408 = arith.addf %406, %407 : vector<1x128xf32>
    %409 = arith.negf %408 : vector<1x128xf32>
    %410 = math.exp %409 : vector<1x128xf32>
    %cst_161 = arith.constant 1.000000e+00 : f32
    %411 = vector.broadcast %cst_161 : f32 to vector<1x128xf32>
    %412 = arith.addf %411, %410 : vector<1x128xf32>
    %413 = arith.divf %411, %412 : vector<1x128xf32>
    %414 = vector.extract_strided_slice %397 {offsets = [0, 256], sizes = [1, 128], strides = [1, 1]} : vector<1x384xf32> to vector<1x128xf32>
    %415 = vector.extract_strided_slice %394 {offsets = [0, 256], sizes = [1, 128], strides = [1, 1]} : vector<1x384xf32> to vector<1x128xf32>
    %416 = arith.mulf %405, %415 : vector<1x128xf32>
    %417 = arith.addf %414, %416 : vector<1x128xf32>
    %418 = math.tanh %417 : vector<1x128xf32>
    %cst_162 = arith.constant 1.000000e+00 : f32
    %419 = vector.broadcast %cst_162 : f32 to vector<1x128xf32>
    %420 = arith.subf %419, %413 : vector<1x128xf32>
    %421 = arith.mulf %420, %418 : vector<1x128xf32>
    %422 = arith.mulf %413, %390 : vector<1x128xf32>
    %423 = arith.addf %421, %422 : vector<1x128xf32>
    %c16_i32_163 = arith.constant 16 : i32
    %424 = arith.muli %arg0, %c16_i32_163 : i32
    %425 = arith.addi %424, %c9_i32 : i32
    %c40_i32_164 = arith.constant 40 : i32
    %426 = arith.cmpi slt, %425, %c40_i32_164 : i32
    %427 = arith.select %426, %423, %390 : vector<1x128xf32>
    %c0_165 = arith.constant 0 : index
    %c0_166 = arith.constant 0 : index
    %428 = vector.load %arg11[%c0_165, %c0_166] : memref<1x128xf32, #tpu.memory_space<vmem>>, vector<1x128xf32>
    tpu.vector_store %arg11[%c0_165, %c0_166], %427 {strides = array<i32>} : memref<1x128xf32, #tpu.memory_space<vmem>>, vector<1x128xf32>,
    %c1_i32_167 = arith.constant 1 : i32
    %429 = arith.muli %c9_i32, %c1_i32_167 : i32
    %430 = arith.index_cast %429 : i32 to index
    %c0_168 = arith.constant 0 : index
    %431 = vector.load %arg13[%430, %c0_168] : memref<16x128xf32, #tpu.memory_space<vmem>>, vector<1x128xf32>
    tpu.vector_store %arg13[%430, %c0_168], %423 {strides = array<i32>} : memref<16x128xf32, #tpu.memory_space<vmem>>, vector<1x128xf32>,
    %c10_i32 = arith.constant 10 : i32
    %c0_169 = arith.constant 0 : index
    %c0_170 = arith.constant 0 : index
    %432 = vector.load %arg11[%c0_169, %c0_170] : memref<1x128xf32, #tpu.memory_space<vmem>>, vector<1x128xf32>
    %433 = arith.truncf %432 : vector<1x128xf32> to vector<1x128xbf16>
    %c0_171 = arith.constant 0 : index
    %c0_172 = arith.constant 0 : index
    %434 = vector.load %arg4[%c0_171, %c0_172] : memref<128x384xbf16, #tpu.memory_space<vmem>>, vector<128x384xbf16>
    %cst_173 = arith.constant dense<0.000000e+00> : vector<1x384xf32>
    %435 = tpu.matmul %433, %434, %cst_173 {dimension_numbers = #tpu.dot_dimension_numbers<[1], [0], [0], [1], [0, 0, 1, 1], [], []>} : vector<1x128xbf16>, vector<128x384xbf16>, vector<1x384xf32> -> vector<1x384xf32>
    %436 = arith.addf %435, %11 : vector<1x384xf32>
    %c1_i32_174 = arith.constant 1 : i32
    %437 = arith.muli %c10_i32, %c1_i32_174 : i32
    %438 = arith.index_cast %437 : i32 to index
    %c0_175 = arith.constant 0 : index
    %439 = vector.load %arg12[%438, %c0_175] : memref<16x384xf32, #tpu.memory_space<vmem>>, vector<1x384xf32>
    %440 = vector.extract_strided_slice %439 {offsets = [0, 0], sizes = [1, 128], strides = [1, 1]} : vector<1x384xf32> to vector<1x128xf32>
    %441 = vector.extract_strided_slice %436 {offsets = [0, 0], sizes = [1, 128], strides = [1, 1]} : vector<1x384xf32> to vector<1x128xf32>
    %442 = arith.addf %440, %441 : vector<1x128xf32>
    %443 = arith.negf %442 : vector<1x128xf32>
    %444 = math.exp %443 : vector<1x128xf32>
    %cst_176 = arith.constant 1.000000e+00 : f32
    %445 = vector.broadcast %cst_176 : f32 to vector<1x128xf32>
    %446 = arith.addf %445, %444 : vector<1x128xf32>
    %447 = arith.divf %445, %446 : vector<1x128xf32>
    %448 = vector.extract_strided_slice %439 {offsets = [0, 128], sizes = [1, 128], strides = [1, 1]} : vector<1x384xf32> to vector<1x128xf32>
    %449 = vector.extract_strided_slice %436 {offsets = [0, 128], sizes = [1, 128], strides = [1, 1]} : vector<1x384xf32> to vector<1x128xf32>
    %450 = arith.addf %448, %449 : vector<1x128xf32>
    %451 = arith.negf %450 : vector<1x128xf32>
    %452 = math.exp %451 : vector<1x128xf32>
    %cst_177 = arith.constant 1.000000e+00 : f32
    %453 = vector.broadcast %cst_177 : f32 to vector<1x128xf32>
    %454 = arith.addf %453, %452 : vector<1x128xf32>
    %455 = arith.divf %453, %454 : vector<1x128xf32>
    %456 = vector.extract_strided_slice %439 {offsets = [0, 256], sizes = [1, 128], strides = [1, 1]} : vector<1x384xf32> to vector<1x128xf32>
    %457 = vector.extract_strided_slice %436 {offsets = [0, 256], sizes = [1, 128], strides = [1, 1]} : vector<1x384xf32> to vector<1x128xf32>
    %458 = arith.mulf %447, %457 : vector<1x128xf32>
    %459 = arith.addf %456, %458 : vector<1x128xf32>
    %460 = math.tanh %459 : vector<1x128xf32>
    %cst_178 = arith.constant 1.000000e+00 : f32
    %461 = vector.broadcast %cst_178 : f32 to vector<1x128xf32>
    %462 = arith.subf %461, %455 : vector<1x128xf32>
    %463 = arith.mulf %462, %460 : vector<1x128xf32>
    %464 = arith.mulf %455, %432 : vector<1x128xf32>
    %465 = arith.addf %463, %464 : vector<1x128xf32>
    %c16_i32_179 = arith.constant 16 : i32
    %466 = arith.muli %arg0, %c16_i32_179 : i32
    %467 = arith.addi %466, %c10_i32 : i32
    %c40_i32_180 = arith.constant 40 : i32
    %468 = arith.cmpi slt, %467, %c40_i32_180 : i32
    %469 = arith.select %468, %465, %432 : vector<1x128xf32>
    %c0_181 = arith.constant 0 : index
    %c0_182 = arith.constant 0 : index
    %470 = vector.load %arg11[%c0_181, %c0_182] : memref<1x128xf32, #tpu.memory_space<vmem>>, vector<1x128xf32>
    tpu.vector_store %arg11[%c0_181, %c0_182], %469 {strides = array<i32>} : memref<1x128xf32, #tpu.memory_space<vmem>>, vector<1x128xf32>,
    %c1_i32_183 = arith.constant 1 : i32
    %471 = arith.muli %c10_i32, %c1_i32_183 : i32
    %472 = arith.index_cast %471 : i32 to index
    %c0_184 = arith.constant 0 : index
    %473 = vector.load %arg13[%472, %c0_184] : memref<16x128xf32, #tpu.memory_space<vmem>>, vector<1x128xf32>
    tpu.vector_store %arg13[%472, %c0_184], %465 {strides = array<i32>} : memref<16x128xf32, #tpu.memory_space<vmem>>, vector<1x128xf32>,
    %c11_i32 = arith.constant 11 : i32
    %c0_185 = arith.constant 0 : index
    %c0_186 = arith.constant 0 : index
    %474 = vector.load %arg11[%c0_185, %c0_186] : memref<1x128xf32, #tpu.memory_space<vmem>>, vector<1x128xf32>
    %475 = arith.truncf %474 : vector<1x128xf32> to vector<1x128xbf16>
    %c0_187 = arith.constant 0 : index
    %c0_188 = arith.constant 0 : index
    %476 = vector.load %arg4[%c0_187, %c0_188] : memref<128x384xbf16, #tpu.memory_space<vmem>>, vector<128x384xbf16>
    %cst_189 = arith.constant dense<0.000000e+00> : vector<1x384xf32>
    %477 = tpu.matmul %475, %476, %cst_189 {dimension_numbers = #tpu.dot_dimension_numbers<[1], [0], [0], [1], [0, 0, 1, 1], [], []>} : vector<1x128xbf16>, vector<128x384xbf16>, vector<1x384xf32> -> vector<1x384xf32>
    %478 = arith.addf %477, %11 : vector<1x384xf32>
    %c1_i32_190 = arith.constant 1 : i32
    %479 = arith.muli %c11_i32, %c1_i32_190 : i32
    %480 = arith.index_cast %479 : i32 to index
    %c0_191 = arith.constant 0 : index
    %481 = vector.load %arg12[%480, %c0_191] : memref<16x384xf32, #tpu.memory_space<vmem>>, vector<1x384xf32>
    %482 = vector.extract_strided_slice %481 {offsets = [0, 0], sizes = [1, 128], strides = [1, 1]} : vector<1x384xf32> to vector<1x128xf32>
    %483 = vector.extract_strided_slice %478 {offsets = [0, 0], sizes = [1, 128], strides = [1, 1]} : vector<1x384xf32> to vector<1x128xf32>
    %484 = arith.addf %482, %483 : vector<1x128xf32>
    %485 = arith.negf %484 : vector<1x128xf32>
    %486 = math.exp %485 : vector<1x128xf32>
    %cst_192 = arith.constant 1.000000e+00 : f32
    %487 = vector.broadcast %cst_192 : f32 to vector<1x128xf32>
    %488 = arith.addf %487, %486 : vector<1x128xf32>
    %489 = arith.divf %487, %488 : vector<1x128xf32>
    %490 = vector.extract_strided_slice %481 {offsets = [0, 128], sizes = [1, 128], strides = [1, 1]} : vector<1x384xf32> to vector<1x128xf32>
    %491 = vector.extract_strided_slice %478 {offsets = [0, 128], sizes = [1, 128], strides = [1, 1]} : vector<1x384xf32> to vector<1x128xf32>
    %492 = arith.addf %490, %491 : vector<1x128xf32>
    %493 = arith.negf %492 : vector<1x128xf32>
    %494 = math.exp %493 : vector<1x128xf32>
    %cst_193 = arith.constant 1.000000e+00 : f32
    %495 = vector.broadcast %cst_193 : f32 to vector<1x128xf32>
    %496 = arith.addf %495, %494 : vector<1x128xf32>
    %497 = arith.divf %495, %496 : vector<1x128xf32>
    %498 = vector.extract_strided_slice %481 {offsets = [0, 256], sizes = [1, 128], strides = [1, 1]} : vector<1x384xf32> to vector<1x128xf32>
    %499 = vector.extract_strided_slice %478 {offsets = [0, 256], sizes = [1, 128], strides = [1, 1]} : vector<1x384xf32> to vector<1x128xf32>
    %500 = arith.mulf %489, %499 : vector<1x128xf32>
    %501 = arith.addf %498, %500 : vector<1x128xf32>
    %502 = math.tanh %501 : vector<1x128xf32>
    %cst_194 = arith.constant 1.000000e+00 : f32
    %503 = vector.broadcast %cst_194 : f32 to vector<1x128xf32>
    %504 = arith.subf %503, %497 : vector<1x128xf32>
    %505 = arith.mulf %504, %502 : vector<1x128xf32>
    %506 = arith.mulf %497, %474 : vector<1x128xf32>
    %507 = arith.addf %505, %506 : vector<1x128xf32>
    %c16_i32_195 = arith.constant 16 : i32
    %508 = arith.muli %arg0, %c16_i32_195 : i32
    %509 = arith.addi %508, %c11_i32 : i32
    %c40_i32_196 = arith.constant 40 : i32
    %510 = arith.cmpi slt, %509, %c40_i32_196 : i32
    %511 = arith.select %510, %507, %474 : vector<1x128xf32>
    %c0_197 = arith.constant 0 : index
    %c0_198 = arith.constant 0 : index
    %512 = vector.load %arg11[%c0_197, %c0_198] : memref<1x128xf32, #tpu.memory_space<vmem>>, vector<1x128xf32>
    tpu.vector_store %arg11[%c0_197, %c0_198], %511 {strides = array<i32>} : memref<1x128xf32, #tpu.memory_space<vmem>>, vector<1x128xf32>,
    %c1_i32_199 = arith.constant 1 : i32
    %513 = arith.muli %c11_i32, %c1_i32_199 : i32
    %514 = arith.index_cast %513 : i32 to index
    %c0_200 = arith.constant 0 : index
    %515 = vector.load %arg13[%514, %c0_200] : memref<16x128xf32, #tpu.memory_space<vmem>>, vector<1x128xf32>
    tpu.vector_store %arg13[%514, %c0_200], %507 {strides = array<i32>} : memref<16x128xf32, #tpu.memory_space<vmem>>, vector<1x128xf32>,
    %c12_i32 = arith.constant 12 : i32
    %c0_201 = arith.constant 0 : index
    %c0_202 = arith.constant 0 : index
    %516 = vector.load %arg11[%c0_201, %c0_202] : memref<1x128xf32, #tpu.memory_space<vmem>>, vector<1x128xf32>
    %517 = arith.truncf %516 : vector<1x128xf32> to vector<1x128xbf16>
    %c0_203 = arith.constant 0 : index
    %c0_204 = arith.constant 0 : index
    %518 = vector.load %arg4[%c0_203, %c0_204] : memref<128x384xbf16, #tpu.memory_space<vmem>>, vector<128x384xbf16>
    %cst_205 = arith.constant dense<0.000000e+00> : vector<1x384xf32>
    %519 = tpu.matmul %517, %518, %cst_205 {dimension_numbers = #tpu.dot_dimension_numbers<[1], [0], [0], [1], [0, 0, 1, 1], [], []>} : vector<1x128xbf16>, vector<128x384xbf16>, vector<1x384xf32> -> vector<1x384xf32>
    %520 = arith.addf %519, %11 : vector<1x384xf32>
    %c1_i32_206 = arith.constant 1 : i32
    %521 = arith.muli %c12_i32, %c1_i32_206 : i32
    %522 = arith.index_cast %521 : i32 to index
    %c0_207 = arith.constant 0 : index
    %523 = vector.load %arg12[%522, %c0_207] : memref<16x384xf32, #tpu.memory_space<vmem>>, vector<1x384xf32>
    %524 = vector.extract_strided_slice %523 {offsets = [0, 0], sizes = [1, 128], strides = [1, 1]} : vector<1x384xf32> to vector<1x128xf32>
    %525 = vector.extract_strided_slice %520 {offsets = [0, 0], sizes = [1, 128], strides = [1, 1]} : vector<1x384xf32> to vector<1x128xf32>
    %526 = arith.addf %524, %525 : vector<1x128xf32>
    %527 = arith.negf %526 : vector<1x128xf32>
    %528 = math.exp %527 : vector<1x128xf32>
    %cst_208 = arith.constant 1.000000e+00 : f32
    %529 = vector.broadcast %cst_208 : f32 to vector<1x128xf32>
    %530 = arith.addf %529, %528 : vector<1x128xf32>
    %531 = arith.divf %529, %530 : vector<1x128xf32>
    %532 = vector.extract_strided_slice %523 {offsets = [0, 128], sizes = [1, 128], strides = [1, 1]} : vector<1x384xf32> to vector<1x128xf32>
    %533 = vector.extract_strided_slice %520 {offsets = [0, 128], sizes = [1, 128], strides = [1, 1]} : vector<1x384xf32> to vector<1x128xf32>
    %534 = arith.addf %532, %533 : vector<1x128xf32>
    %535 = arith.negf %534 : vector<1x128xf32>
    %536 = math.exp %535 : vector<1x128xf32>
    %cst_209 = arith.constant 1.000000e+00 : f32
    %537 = vector.broadcast %cst_209 : f32 to vector<1x128xf32>
    %538 = arith.addf %537, %536 : vector<1x128xf32>
    %539 = arith.divf %537, %538 : vector<1x128xf32>
    %540 = vector.extract_strided_slice %523 {offsets = [0, 256], sizes = [1, 128], strides = [1, 1]} : vector<1x384xf32> to vector<1x128xf32>
    %541 = vector.extract_strided_slice %520 {offsets = [0, 256], sizes = [1, 128], strides = [1, 1]} : vector<1x384xf32> to vector<1x128xf32>
    %542 = arith.mulf %531, %541 : vector<1x128xf32>
    %543 = arith.addf %540, %542 : vector<1x128xf32>
    %544 = math.tanh %543 : vector<1x128xf32>
    %cst_210 = arith.constant 1.000000e+00 : f32
    %545 = vector.broadcast %cst_210 : f32 to vector<1x128xf32>
    %546 = arith.subf %545, %539 : vector<1x128xf32>
    %547 = arith.mulf %546, %544 : vector<1x128xf32>
    %548 = arith.mulf %539, %516 : vector<1x128xf32>
    %549 = arith.addf %547, %548 : vector<1x128xf32>
    %c16_i32_211 = arith.constant 16 : i32
    %550 = arith.muli %arg0, %c16_i32_211 : i32
    %551 = arith.addi %550, %c12_i32 : i32
    %c40_i32_212 = arith.constant 40 : i32
    %552 = arith.cmpi slt, %551, %c40_i32_212 : i32
    %553 = arith.select %552, %549, %516 : vector<1x128xf32>
    %c0_213 = arith.constant 0 : index
    %c0_214 = arith.constant 0 : index
    %554 = vector.load %arg11[%c0_213, %c0_214] : memref<1x128xf32, #tpu.memory_space<vmem>>, vector<1x128xf32>
    tpu.vector_store %arg11[%c0_213, %c0_214], %553 {strides = array<i32>} : memref<1x128xf32, #tpu.memory_space<vmem>>, vector<1x128xf32>,
    %c1_i32_215 = arith.constant 1 : i32
    %555 = arith.muli %c12_i32, %c1_i32_215 : i32
    %556 = arith.index_cast %555 : i32 to index
    %c0_216 = arith.constant 0 : index
    %557 = vector.load %arg13[%556, %c0_216] : memref<16x128xf32, #tpu.memory_space<vmem>>, vector<1x128xf32>
    tpu.vector_store %arg13[%556, %c0_216], %549 {strides = array<i32>} : memref<16x128xf32, #tpu.memory_space<vmem>>, vector<1x128xf32>,
    %c13_i32 = arith.constant 13 : i32
    %c0_217 = arith.constant 0 : index
    %c0_218 = arith.constant 0 : index
    %558 = vector.load %arg11[%c0_217, %c0_218] : memref<1x128xf32, #tpu.memory_space<vmem>>, vector<1x128xf32>
    %559 = arith.truncf %558 : vector<1x128xf32> to vector<1x128xbf16>
    %c0_219 = arith.constant 0 : index
    %c0_220 = arith.constant 0 : index
    %560 = vector.load %arg4[%c0_219, %c0_220] : memref<128x384xbf16, #tpu.memory_space<vmem>>, vector<128x384xbf16>
    %cst_221 = arith.constant dense<0.000000e+00> : vector<1x384xf32>
    %561 = tpu.matmul %559, %560, %cst_221 {dimension_numbers = #tpu.dot_dimension_numbers<[1], [0], [0], [1], [0, 0, 1, 1], [], []>} : vector<1x128xbf16>, vector<128x384xbf16>, vector<1x384xf32> -> vector<1x384xf32>
    %562 = arith.addf %561, %11 : vector<1x384xf32>
    %c1_i32_222 = arith.constant 1 : i32
    %563 = arith.muli %c13_i32, %c1_i32_222 : i32
    %564 = arith.index_cast %563 : i32 to index
    %c0_223 = arith.constant 0 : index
    %565 = vector.load %arg12[%564, %c0_223] : memref<16x384xf32, #tpu.memory_space<vmem>>, vector<1x384xf32>
    %566 = vector.extract_strided_slice %565 {offsets = [0, 0], sizes = [1, 128], strides = [1, 1]} : vector<1x384xf32> to vector<1x128xf32>
    %567 = vector.extract_strided_slice %562 {offsets = [0, 0], sizes = [1, 128], strides = [1, 1]} : vector<1x384xf32> to vector<1x128xf32>
    %568 = arith.addf %566, %567 : vector<1x128xf32>
    %569 = arith.negf %568 : vector<1x128xf32>
    %570 = math.exp %569 : vector<1x128xf32>
    %cst_224 = arith.constant 1.000000e+00 : f32
    %571 = vector.broadcast %cst_224 : f32 to vector<1x128xf32>
    %572 = arith.addf %571, %570 : vector<1x128xf32>
    %573 = arith.divf %571, %572 : vector<1x128xf32>
    %574 = vector.extract_strided_slice %565 {offsets = [0, 128], sizes = [1, 128], strides = [1, 1]} : vector<1x384xf32> to vector<1x128xf32>
    %575 = vector.extract_strided_slice %562 {offsets = [0, 128], sizes = [1, 128], strides = [1, 1]} : vector<1x384xf32> to vector<1x128xf32>
    %576 = arith.addf %574, %575 : vector<1x128xf32>
    %577 = arith.negf %576 : vector<1x128xf32>
    %578 = math.exp %577 : vector<1x128xf32>
    %cst_225 = arith.constant 1.000000e+00 : f32
    %579 = vector.broadcast %cst_225 : f32 to vector<1x128xf32>
    %580 = arith.addf %579, %578 : vector<1x128xf32>
    %581 = arith.divf %579, %580 : vector<1x128xf32>
    %582 = vector.extract_strided_slice %565 {offsets = [0, 256], sizes = [1, 128], strides = [1, 1]} : vector<1x384xf32> to vector<1x128xf32>
    %583 = vector.extract_strided_slice %562 {offsets = [0, 256], sizes = [1, 128], strides = [1, 1]} : vector<1x384xf32> to vector<1x128xf32>
    %584 = arith.mulf %573, %583 : vector<1x128xf32>
    %585 = arith.addf %582, %584 : vector<1x128xf32>
    %586 = math.tanh %585 : vector<1x128xf32>
    %cst_226 = arith.constant 1.000000e+00 : f32
    %587 = vector.broadcast %cst_226 : f32 to vector<1x128xf32>
    %588 = arith.subf %587, %581 : vector<1x128xf32>
    %589 = arith.mulf %588, %586 : vector<1x128xf32>
    %590 = arith.mulf %581, %558 : vector<1x128xf32>
    %591 = arith.addf %589, %590 : vector<1x128xf32>
    %c16_i32_227 = arith.constant 16 : i32
    %592 = arith.muli %arg0, %c16_i32_227 : i32
    %593 = arith.addi %592, %c13_i32 : i32
    %c40_i32_228 = arith.constant 40 : i32
    %594 = arith.cmpi slt, %593, %c40_i32_228 : i32
    %595 = arith.select %594, %591, %558 : vector<1x128xf32>
    %c0_229 = arith.constant 0 : index
    %c0_230 = arith.constant 0 : index
    %596 = vector.load %arg11[%c0_229, %c0_230] : memref<1x128xf32, #tpu.memory_space<vmem>>, vector<1x128xf32>
    tpu.vector_store %arg11[%c0_229, %c0_230], %595 {strides = array<i32>} : memref<1x128xf32, #tpu.memory_space<vmem>>, vector<1x128xf32>,
    %c1_i32_231 = arith.constant 1 : i32
    %597 = arith.muli %c13_i32, %c1_i32_231 : i32
    %598 = arith.index_cast %597 : i32 to index
    %c0_232 = arith.constant 0 : index
    %599 = vector.load %arg13[%598, %c0_232] : memref<16x128xf32, #tpu.memory_space<vmem>>, vector<1x128xf32>
    tpu.vector_store %arg13[%598, %c0_232], %591 {strides = array<i32>} : memref<16x128xf32, #tpu.memory_space<vmem>>, vector<1x128xf32>,
    %c14_i32 = arith.constant 14 : i32
    %c0_233 = arith.constant 0 : index
    %c0_234 = arith.constant 0 : index
    %600 = vector.load %arg11[%c0_233, %c0_234] : memref<1x128xf32, #tpu.memory_space<vmem>>, vector<1x128xf32>
    %601 = arith.truncf %600 : vector<1x128xf32> to vector<1x128xbf16>
    %c0_235 = arith.constant 0 : index
    %c0_236 = arith.constant 0 : index
    %602 = vector.load %arg4[%c0_235, %c0_236] : memref<128x384xbf16, #tpu.memory_space<vmem>>, vector<128x384xbf16>
    %cst_237 = arith.constant dense<0.000000e+00> : vector<1x384xf32>
    %603 = tpu.matmul %601, %602, %cst_237 {dimension_numbers = #tpu.dot_dimension_numbers<[1], [0], [0], [1], [0, 0, 1, 1], [], []>} : vector<1x128xbf16>, vector<128x384xbf16>, vector<1x384xf32> -> vector<1x384xf32>
    %604 = arith.addf %603, %11 : vector<1x384xf32>
    %c1_i32_238 = arith.constant 1 : i32
    %605 = arith.muli %c14_i32, %c1_i32_238 : i32
    %606 = arith.index_cast %605 : i32 to index
    %c0_239 = arith.constant 0 : index
    %607 = vector.load %arg12[%606, %c0_239] : memref<16x384xf32, #tpu.memory_space<vmem>>, vector<1x384xf32>
    %608 = vector.extract_strided_slice %607 {offsets = [0, 0], sizes = [1, 128], strides = [1, 1]} : vector<1x384xf32> to vector<1x128xf32>
    %609 = vector.extract_strided_slice %604 {offsets = [0, 0], sizes = [1, 128], strides = [1, 1]} : vector<1x384xf32> to vector<1x128xf32>
    %610 = arith.addf %608, %609 : vector<1x128xf32>
    %611 = arith.negf %610 : vector<1x128xf32>
    %612 = math.exp %611 : vector<1x128xf32>
    %cst_240 = arith.constant 1.000000e+00 : f32
    %613 = vector.broadcast %cst_240 : f32 to vector<1x128xf32>
    %614 = arith.addf %613, %612 : vector<1x128xf32>
    %615 = arith.divf %613, %614 : vector<1x128xf32>
    %616 = vector.extract_strided_slice %607 {offsets = [0, 128], sizes = [1, 128], strides = [1, 1]} : vector<1x384xf32> to vector<1x128xf32>
    %617 = vector.extract_strided_slice %604 {offsets = [0, 128], sizes = [1, 128], strides = [1, 1]} : vector<1x384xf32> to vector<1x128xf32>
    %618 = arith.addf %616, %617 : vector<1x128xf32>
    %619 = arith.negf %618 : vector<1x128xf32>
    %620 = math.exp %619 : vector<1x128xf32>
    %cst_241 = arith.constant 1.000000e+00 : f32
    %621 = vector.broadcast %cst_241 : f32 to vector<1x128xf32>
    %622 = arith.addf %621, %620 : vector<1x128xf32>
    %623 = arith.divf %621, %622 : vector<1x128xf32>
    %624 = vector.extract_strided_slice %607 {offsets = [0, 256], sizes = [1, 128], strides = [1, 1]} : vector<1x384xf32> to vector<1x128xf32>
    %625 = vector.extract_strided_slice %604 {offsets = [0, 256], sizes = [1, 128], strides = [1, 1]} : vector<1x384xf32> to vector<1x128xf32>
    %626 = arith.mulf %615, %625 : vector<1x128xf32>
    %627 = arith.addf %624, %626 : vector<1x128xf32>
    %628 = math.tanh %627 : vector<1x128xf32>
    %cst_242 = arith.constant 1.000000e+00 : f32
    %629 = vector.broadcast %cst_242 : f32 to vector<1x128xf32>
    %630 = arith.subf %629, %623 : vector<1x128xf32>
    %631 = arith.mulf %630, %628 : vector<1x128xf32>
    %632 = arith.mulf %623, %600 : vector<1x128xf32>
    %633 = arith.addf %631, %632 : vector<1x128xf32>
    %c16_i32_243 = arith.constant 16 : i32
    %634 = arith.muli %arg0, %c16_i32_243 : i32
    %635 = arith.addi %634, %c14_i32 : i32
    %c40_i32_244 = arith.constant 40 : i32
    %636 = arith.cmpi slt, %635, %c40_i32_244 : i32
    %637 = arith.select %636, %633, %600 : vector<1x128xf32>
    %c0_245 = arith.constant 0 : index
    %c0_246 = arith.constant 0 : index
    %638 = vector.load %arg11[%c0_245, %c0_246] : memref<1x128xf32, #tpu.memory_space<vmem>>, vector<1x128xf32>
    tpu.vector_store %arg11[%c0_245, %c0_246], %637 {strides = array<i32>} : memref<1x128xf32, #tpu.memory_space<vmem>>, vector<1x128xf32>,
    %c1_i32_247 = arith.constant 1 : i32
    %639 = arith.muli %c14_i32, %c1_i32_247 : i32
    %640 = arith.index_cast %639 : i32 to index
    %c0_248 = arith.constant 0 : index
    %641 = vector.load %arg13[%640, %c0_248] : memref<16x128xf32, #tpu.memory_space<vmem>>, vector<1x128xf32>
    tpu.vector_store %arg13[%640, %c0_248], %633 {strides = array<i32>} : memref<16x128xf32, #tpu.memory_space<vmem>>, vector<1x128xf32>,
    %c15_i32 = arith.constant 15 : i32
    %c0_249 = arith.constant 0 : index
    %c0_250 = arith.constant 0 : index
    %642 = vector.load %arg11[%c0_249, %c0_250] : memref<1x128xf32, #tpu.memory_space<vmem>>, vector<1x128xf32>
    %643 = arith.truncf %642 : vector<1x128xf32> to vector<1x128xbf16>
    %c0_251 = arith.constant 0 : index
    %c0_252 = arith.constant 0 : index
    %644 = vector.load %arg4[%c0_251, %c0_252] : memref<128x384xbf16, #tpu.memory_space<vmem>>, vector<128x384xbf16>
    %cst_253 = arith.constant dense<0.000000e+00> : vector<1x384xf32>
    %645 = tpu.matmul %643, %644, %cst_253 {dimension_numbers = #tpu.dot_dimension_numbers<[1], [0], [0], [1], [0, 0, 1, 1], [], []>} : vector<1x128xbf16>, vector<128x384xbf16>, vector<1x384xf32> -> vector<1x384xf32>
    %646 = arith.addf %645, %11 : vector<1x384xf32>
    %c1_i32_254 = arith.constant 1 : i32
    %647 = arith.muli %c15_i32, %c1_i32_254 : i32
    %648 = arith.index_cast %647 : i32 to index
    %c0_255 = arith.constant 0 : index
    %649 = vector.load %arg12[%648, %c0_255] : memref<16x384xf32, #tpu.memory_space<vmem>>, vector<1x384xf32>
    %650 = vector.extract_strided_slice %649 {offsets = [0, 0], sizes = [1, 128], strides = [1, 1]} : vector<1x384xf32> to vector<1x128xf32>
    %651 = vector.extract_strided_slice %646 {offsets = [0, 0], sizes = [1, 128], strides = [1, 1]} : vector<1x384xf32> to vector<1x128xf32>
    %652 = arith.addf %650, %651 : vector<1x128xf32>
    %653 = arith.negf %652 : vector<1x128xf32>
    %654 = math.exp %653 : vector<1x128xf32>
    %cst_256 = arith.constant 1.000000e+00 : f32
    %655 = vector.broadcast %cst_256 : f32 to vector<1x128xf32>
    %656 = arith.addf %655, %654 : vector<1x128xf32>
    %657 = arith.divf %655, %656 : vector<1x128xf32>
    %658 = vector.extract_strided_slice %649 {offsets = [0, 128], sizes = [1, 128], strides = [1, 1]} : vector<1x384xf32> to vector<1x128xf32>
    %659 = vector.extract_strided_slice %646 {offsets = [0, 128], sizes = [1, 128], strides = [1, 1]} : vector<1x384xf32> to vector<1x128xf32>
    %660 = arith.addf %658, %659 : vector<1x128xf32>
    %661 = arith.negf %660 : vector<1x128xf32>
    %662 = math.exp %661 : vector<1x128xf32>
    %cst_257 = arith.constant 1.000000e+00 : f32
    %663 = vector.broadcast %cst_257 : f32 to vector<1x128xf32>
    %664 = arith.addf %663, %662 : vector<1x128xf32>
    %665 = arith.divf %663, %664 : vector<1x128xf32>
    %666 = vector.extract_strided_slice %649 {offsets = [0, 256], sizes = [1, 128], strides = [1, 1]} : vector<1x384xf32> to vector<1x128xf32>
    %667 = vector.extract_strided_slice %646 {offsets = [0, 256], sizes = [1, 128], strides = [1, 1]} : vector<1x384xf32> to vector<1x128xf32>
    %668 = arith.mulf %657, %667 : vector<1x128xf32>
    %669 = arith.addf %666, %668 : vector<1x128xf32>
    %670 = math.tanh %669 : vector<1x128xf32>
    %cst_258 = arith.constant 1.000000e+00 : f32
    %671 = vector.broadcast %cst_258 : f32 to vector<1x128xf32>
    %672 = arith.subf %671, %665 : vector<1x128xf32>
    %673 = arith.mulf %672, %670 : vector<1x128xf32>
    %674 = arith.mulf %665, %642 : vector<1x128xf32>
    %675 = arith.addf %673, %674 : vector<1x128xf32>
    %c16_i32_259 = arith.constant 16 : i32
    %676 = arith.muli %arg0, %c16_i32_259 : i32
    %677 = arith.addi %676, %c15_i32 : i32
    %c40_i32_260 = arith.constant 40 : i32
    %678 = arith.cmpi slt, %677, %c40_i32_260 : i32
    %679 = arith.select %678, %675, %642 : vector<1x128xf32>
    %c0_261 = arith.constant 0 : index
    %c0_262 = arith.constant 0 : index
    %680 = vector.load %arg11[%c0_261, %c0_262] : memref<1x128xf32, #tpu.memory_space<vmem>>, vector<1x128xf32>
    tpu.vector_store %arg11[%c0_261, %c0_262], %679 {strides = array<i32>} : memref<1x128xf32, #tpu.memory_space<vmem>>, vector<1x128xf32>,
    %c1_i32_263 = arith.constant 1 : i32
    %681 = arith.muli %c15_i32, %c1_i32_263 : i32
    %682 = arith.index_cast %681 : i32 to index
    %c0_264 = arith.constant 0 : index
    %683 = vector.load %arg13[%682, %c0_264] : memref<16x128xf32, #tpu.memory_space<vmem>>, vector<1x128xf32>
    tpu.vector_store %arg13[%682, %c0_264], %675 {strides = array<i32>} : memref<16x128xf32, #tpu.memory_space<vmem>>, vector<1x128xf32>,
    %c16_i32_265 = arith.constant 16 : i32
    %c0_266 = arith.constant 0 : index
    %c0_267 = arith.constant 0 : index
    %684 = vector.load %arg13[%c0_266, %c0_267] : memref<16x128xf32, #tpu.memory_space<vmem>>, vector<16x128xf32>
    %685 = arith.truncf %684 : vector<16x128xf32> to vector<16x128xbf16>
    %c0_268 = arith.constant 0 : index
    %c0_269 = arith.constant 0 : index
    %686 = vector.load %arg7[%c0_268, %c0_269] : memref<128x128xbf16, #tpu.memory_space<vmem>>, vector<128x128xbf16>
    %cst_270 = arith.constant dense<0.000000e+00> : vector<16x128xf32>
    %687 = tpu.matmul %685, %686, %cst_270 {dimension_numbers = #tpu.dot_dimension_numbers<[1], [0], [0], [1], [0, 0, 1, 1], [], []>} : vector<16x128xbf16>, vector<128x128xbf16>, vector<16x128xf32> -> vector<16x128xf32>
    %c0_271 = arith.constant 0 : index
    %c0_272 = arith.constant 0 : index
    %688 = vector.load %arg8[%c0_271, %c0_272] : memref<1x128xf32, #tpu.memory_space<vmem>>, vector<1x128xf32>
    %689 = vector.broadcast %688 : vector<1x128xf32> to vector<16x128xf32>
    %690 = arith.addf %687, %689 : vector<16x128xf32>
    %c0_273 = arith.constant 0 : index
    %c0_274 = arith.constant 0 : index
    %691 = vector.load %arg9[%c0_273, %c0_274] : memref<16x128xf32, #tpu.memory_space<vmem>>, vector<16x128xf32>
    tpu.vector_store %arg9[%c0_273, %c0_274], %690 {strides = array<i32>} : memref<16x128xf32, #tpu.memory_space<vmem>>, vector<16x128xf32>,
    %c2_i32_275 = arith.constant 2 : i32
    %692 = arith.cmpi eq, %arg0, %c2_i32_275 : i32
    %693 = arith.extui %692 : i1 to i32
    %c0_i32_276 = arith.constant 0 : i32
    %694 = arith.cmpi ne, %693, %c0_i32_276 : i32
    scf.if %694 {
      %c0_277 = arith.constant 0 : index
      %c0_278 = arith.constant 0 : index
      %695 = vector.load %arg11[%c0_277, %c0_278] : memref<1x128xf32, #tpu.memory_space<vmem>>, vector<1x128xf32>
      %c0_279 = arith.constant 0 : index
      %c0_280 = arith.constant 0 : index
      %696 = vector.load %arg10[%c0_279, %c0_280] : memref<1x128xf32, #tpu.memory_space<vmem>>, vector<1x128xf32>
      tpu.vector_store %arg10[%c0_279, %c0_280], %695 {strides = array<i32>} : memref<1x128xf32, #tpu.memory_space<vmem>>, vector<1x128xf32>,
    } else {
    }
    return
  }
  func.func @transform_0(%arg0: i32) -> (i32, i32) {
    %c0_i32 = arith.constant 0 : i32
    %c0_i32_0 = arith.constant 0 : i32
    return %arg0, %c0_i32 : i32, i32
  }
  func.func @transform_1(%arg0: i32) -> (i32, i32) {
    %c0_i32 = arith.constant 0 : i32
    %c0_i32_0 = arith.constant 0 : i32
    %c0_i32_1 = arith.constant 0 : i32
    return %c0_i32, %c0_i32_0 : i32, i32
  }
  func.func @transform_2(%arg0: i32) -> (i32, i32) {
    %c0_i32 = arith.constant 0 : i32
    %c0_i32_0 = arith.constant 0 : i32
    %c0_i32_1 = arith.constant 0 : i32
    return %c0_i32, %c0_i32_0 : i32, i32
  }
  func.func @transform_3(%arg0: i32) -> (i32, i32) {
    %c0_i32 = arith.constant 0 : i32
    %c0_i32_0 = arith.constant 0 : i32
    %c0_i32_1 = arith.constant 0 : i32
    return %c0_i32, %c0_i32_0 : i32, i32
  }
  func.func @transform_4(%arg0: i32) -> (i32, i32) {
    %c0_i32 = arith.constant 0 : i32
    %c0_i32_0 = arith.constant 0 : i32
    %c0_i32_1 = arith.constant 0 : i32
    return %c0_i32, %c0_i32_0 : i32, i32
  }
  func.func @transform_5(%arg0: i32) -> (i32, i32) {
    %c0_i32 = arith.constant 0 : i32
    %c0_i32_0 = arith.constant 0 : i32
    %c0_i32_1 = arith.constant 0 : i32
    return %c0_i32, %c0_i32_0 : i32, i32
  }
  func.func @transform_6(%arg0: i32) -> (i32, i32) {
    %c0_i32 = arith.constant 0 : i32
    %c0_i32_0 = arith.constant 0 : i32
    %c0_i32_1 = arith.constant 0 : i32
    return %c0_i32, %c0_i32_0 : i32, i32
  }
  func.func @transform_7(%arg0: i32) -> (i32, i32) {
    %c0_i32 = arith.constant 0 : i32
    %c0_i32_0 = arith.constant 0 : i32
    %c0_i32_1 = arith.constant 0 : i32
    return %c0_i32, %c0_i32_0 : i32, i32
  }
  func.func @transform_8(%arg0: i32) -> (i32, i32) {
    %c0_i32 = arith.constant 0 : i32
    %c0_i32_0 = arith.constant 0 : i32
    return %arg0, %c0_i32 : i32, i32
  }
  func.func @transform_9(%arg0: i32) -> (i32, i32) {
    %c0_i32 = arith.constant 0 : i32
    %c0_i32_0 = arith.constant 0 : i32
    %c0_i32_1 = arith.constant 0 : i32
    return %c0_i32, %c0_i32_0 : i32, i32
  }
}

</mosaic_0001>

<llo_original>
// kernel: tpu_custom_call.1
$region0: #{tpu_custom_call.1}
  #allocation0 [shape = 'u32[]', space=smem, size = 0x4, offset = 0x4, fixed_abs, tag = 'smem constant byte address 0x4 - core index']
  #allocation1 [shape = 'u32[72,128]{1,0:T(1,128)}', space=vmem, size = 0x9000, scoped, tag = 'internal scratch']
  #allocation2 [shape = 'f32[1,128]{1,0:T(1,128)}', space=vmem, size = 0x200, scoped, tag = 'scratch operand']
  #allocation3 [shape = 'f32[16,384]{1,0:T(8,128)}', space=vmem, size = 0x6000, scoped, tag = 'scratch operand']
  #allocation4 [shape = 'f32[16,128]{1,0:T(8,128)}', space=vmem, size = 0x2000, scoped, tag = 'scratch operand']
  %s0 = inlined_call_operand.vmem [shape: f32[48,16], index: 0, kind: input, shape index: {}]
  %s1 = inlined_call_operand.hbm [shape: bf16[16,384], index: 1, kind: input, shape index: {}]
  %s2 = inlined_call_operand.vmem [shape: f32[1,384], index: 2, kind: input, shape index: {}]
  %s3 = inlined_call_operand.hbm [shape: bf16[128,384], index: 3, kind: input, shape index: {}]
  %s4 = inlined_call_operand.hbm [shape: f32[1,384], index: 4, kind: input, shape index: {}]
  %s5 = inlined_call_operand.vmem [shape: f32[1,128], index: 5, kind: input, shape index: {}]
  %s6 = inlined_call_operand.vmem [shape: bf16[128,128], index: 6, kind: input, shape index: {}]
  %s7 = inlined_call_operand.vmem [shape: f32[1,128], index: 7, kind: input, shape index: {}]
  %s8 = inlined_call_operand.hbm [shape: f32[48,128], index: 8, kind: output, shape index: {0}]
  %s9 = inlined_call_operand.hbm [shape: f32[1,128], index: 9, kind: output, shape index: {1}]
  %10 = xla_tuple %s8, %s9
  %s11 = sld [smem:[#allocation0]]
  $region93: #{tpu_custom_call.1} parent=0
    _
  %s13 = ssub.s32 1, %s11
  %s14 = scalar_select 0, %s13, %s11
  $region1: #{tpu_custom_call.1} parent=0
    #allocation5 [shape = 'u8[12288]{0}', space=vmem, size = 0x3000, scoped, tag = 'input window, operand 1, single buffered']
    #allocation6 [shape = 's32[2]{0}', space=sflag, size = 0x8, scoped, tag = 'scoped memory for tpu_custom_call.1']
    #allocation7 [shape = 's32[2]{0}', space=sflag, size = 0x8, scoped, tag = 'scoped memory for tpu_custom_call.1']
    #allocation8 [shape = 'u8[98304]{0}', space=vmem, size = 0x18000, scoped, tag = 'input window, operand 3, single buffered']
    #allocation9 [shape = 's32[1]{0}', space=sflag, size = 0x4, scoped, tag = 'scoped memory for tpu_custom_call.1']
    #allocation10 [shape = 'u8[1536]{0}', space=vmem, size = 0x800, scoped, tag = 'input window, operand 4, single buffered']
    #allocation11 [shape = 'u8[16384]{0}', space=vmem, size = 0x4000, scoped, tag = 'output window, operand 0']
    #allocation12 [shape = 'u8[512]{0}', space=vmem, size = 0x400, scoped, tag = 'output window, operand 1, single buffered']
    #allocation13 [shape = 's32[1]{0}', space=sflag, size = 0x4, scoped, tag = 'scoped memory for tpu_custom_call.1']
    %15 = vsyncpa [#allocation6], 0
    %16 = vsyncpa [#allocation9], 0
    %17 = vsyncpa [#allocation7], 0
    %s18 = scalar_lea.sflag [#allocation7], 1
    %19 = vsyncpa %s18, 0
    %20 = vsyncpa [#allocation13], 0
    loop: start=0, step=1, limit=5
    $region2: #{tpu_custom_call.1} parent=1 // loop_pre_header
      _
    $region3: #{tpu_custom_call.1} parent=1 // loop_header
      %s22 = sphi 0, %s26
      %p23 = scmp.ge.s32.totalorder %s22, 5
      %s32 = sphi 0, %s34
      %s35 = sphi 0, %s32
      %s36 = sphi 0, %s35
      %s52 = sphi 0, %s36
      %s56 = sphi 0, %s56
      %s58 = sphi 0, %s56
      %s59 = sphi 0, %s58
      %s73 = sphi 0, %s59
      %s77 = sphi 0, %s77
      %s79 = sphi 0, %s77
      %s80 = sphi 0, %s79
      %s94 = sphi 0, %s80
      %s98 = sphi 0, %s98
      %s100 = sphi 0, %s98
      %s101 = sphi 0, %s100
      %s115 = sphi 0, %s101
      %s119 = sphi 0, %s119
      %s121 = sphi 0, %s119
      %s122 = sphi 0, %s121
      %s136 = sphi 0, %s122
      %s140 = sphi 0, %s140
      %s142 = sphi 0, %s140
      %s143 = sphi 0, %s142
      %s157 = sphi 0, %s143
      %s161 = sphi 0, %s161
      %s163 = sphi 0, %s161
      %s164 = sphi 0, %s163
      %s178 = sphi 0, %s164
      %s182 = sphi 0, %s182
      %s184 = sphi 0, %s182
      %s185 = sphi 0, %s184
      %s199 = sphi 0, %s185
      %s205 = sphi 0, %s207
      %s208 = sphi 0, %s205
      %s209 = sphi 0, %s208
      %s225 = sphi 0, %s209
      %s229 = sphi 0, %s229
      %s231 = sphi 0, %s229
      %s232 = sphi 0, %s231
      %s246 = sphi 0, %s232
    $region4: #{tpu_custom_call.1} parent=1 // loop_header_branch
      %25 = sbr.rel (%p23) target = $region8
    $region5: #{tpu_custom_call.1} parent=1 // loop_body
      %s27 = ssub.s32 %s22, 1
      %s28 = ssub.s32 %s22, 2
      %s29 = sadd.s32 %s22, 1
      %s30 = ssub.s32 %s22, %s29
      %p31 = scmp.eq.s32.totalorder %s30, 0
      %s33 = sadd.s32 %s32, 1
      %s34 = scalar_select %p31, %s32, %s33
      %p37 = pneg %p31
      %p38 = scmp.eq.s32.totalorder %s22, 2
      %p39 = por %p37, %p38
      %p40 = scmp.ne.s32.totalorder %s32, %s35
      %p41 = scmp.eq.s32.totalorder %s22, 0
      %p42 = por %p40, %p41
      %p43 = scmp.ne.s32.totalorder %s32, %s35
      %p44 = scmp.eq.s32.totalorder %s27, 2
      %p45 = por %p43, %p44
      %p46 = scmp.ne.s32.totalorder %s35, %s36
      %p47 = scmp.eq.s32.totalorder %s27, 0
      %p48 = por %p46, %p47
      %p49 = scmp.ne.s32.totalorder %s35, %s36
      %p50 = scmp.eq.s32.totalorder %s28, 2
      %p51 = por %p49, %p50
      %p53 = scmp.ne.s32.totalorder %s36, %s52
      %p54 = scmp.eq.s32.totalorder %s28, 0
      %p55 = por %p53, %p54
      %s57 = sadd.s32 %s56, 1
      %p60 = scmp.eq.s32.totalorder %s22, 2
      %p61 = scmp.ne.s32.totalorder %s56, %s58
      %p62 = scmp.eq.s32.totalorder %s22, 0
      %p63 = por %p61, %p62
      %p64 = scmp.ne.s32.totalorder %s56, %s58
      %p65 = scmp.eq.s32.totalorder %s27, 2
      %p66 = por %p64, %p65
      %p67 = scmp.ne.s32.totalorder %s58, %s59
      %p68 = scmp.eq.s32.totalorder %s27, 0
      %p69 = por %p67, %p68
      %p70 = scmp.ne.s32.totalorder %s58, %s59
      %p71 = scmp.eq.s32.totalorder %s28, 2
      %p72 = por %p70, %p71
      %p74 = scmp.ne.s32.totalorder %s59, %s73
      %p75 = scmp.eq.s32.totalorder %s28, 0
      %p76 = por %p74, %p75
      %s78 = sadd.s32 %s77, 1
      %p81 = scmp.eq.s32.totalorder %s22, 2
      %p82 = scmp.ne.s32.totalorder %s77, %s79
      %p83 = scmp.eq.s32.totalorder %s22, 0
      %p84 = por %p82, %p83
      %p85 = scmp.ne.s32.totalorder %s77, %s79
      %p86 = scmp.eq.s32.totalorder %s27, 2
      %p87 = por %p85, %p86
      %p88 = scmp.ne.s32.totalorder %s79, %s80
      %p89 = scmp.eq.s32.totalorder %s27, 0
      %p90 = por %p88, %p89
      %p91 = scmp.ne.s32.totalorder %s79, %s80
      %p92 = scmp.eq.s32.totalorder %s28, 2
      %p93 = por %p91, %p92
      %p95 = scmp.ne.s32.totalorder %s80, %s94
      %p96 = scmp.eq.s32.totalorder %s28, 0
      %p97 = por %p95, %p96
      %s99 = sadd.s32 %s98, 1
      %p102 = scmp.eq.s32.totalorder %s22, 2
      %p103 = scmp.ne.s32.totalorder %s98, %s100
      %p104 = scmp.eq.s32.totalorder %s22, 0
      %p105 = por %p103, %p104
      %p106 = scmp.ne.s32.totalorder %s98, %s100
      %p107 = scmp.eq.s32.totalorder %s27, 2
      %p108 = por %p106, %p107
      %p109 = scmp.ne.s32.totalorder %s100, %s101
      %p110 = scmp.eq.s32.totalorder %s27, 0
      %p111 = por %p109, %p110
      %p112 = scmp.ne.s32.totalorder %s100, %s101
      %p113 = scmp.eq.s32.totalorder %s28, 2
      %p114 = por %p112, %p113
      %p116 = scmp.ne.s32.totalorder %s101, %s115
      %p117 = scmp.eq.s32.totalorder %s28, 0
      %p118 = por %p116, %p117
      %s120 = sadd.s32 %s119, 1
      %p123 = scmp.eq.s32.totalorder %s22, 2
      %p124 = scmp.ne.s32.totalorder %s119, %s121
      %p125 = scmp.eq.s32.totalorder %s22, 0
      %p126 = por %p124, %p125
      %p127 = scmp.ne.s32.totalorder %s119, %s121
      %p128 = scmp.eq.s32.totalorder %s27, 2
      %p129 = por %p127, %p128
      %p130 = scmp.ne.s32.totalorder %s121, %s122
      %p131 = scmp.eq.s32.totalorder %s27, 0
      %p132 = por %p130, %p131
      %p133 = scmp.ne.s32.totalorder %s121, %s122
      %p134 = scmp.eq.s32.totalorder %s28, 2
      %p135 = por %p133, %p134
      %p137 = scmp.ne.s32.totalorder %s122, %s136
      %p138 = scmp.eq.s32.totalorder %s28, 0
      %p139 = por %p137, %p138
      %s141 = sadd.s32 %s140, 1
      %p144 = scmp.eq.s32.totalorder %s22, 2
      %p145 = scmp.ne.s32.totalorder %s140, %s142
      %p146 = scmp.eq.s32.totalorder %s22, 0
      %p147 = por %p145, %p146
      %p148 = scmp.ne.s32.totalorder %s140, %s142
      %p149 = scmp.eq.s32.totalorder %s27, 2
      %p150 = por %p148, %p149
      %p151 = scmp.ne.s32.totalorder %s142, %s143
      %p152 = scmp.eq.s32.totalorder %s27, 0
      %p153 = por %p151, %p152
      %p154 = scmp.ne.s32.totalorder %s142, %s143
      %p155 = scmp.eq.s32.totalorder %s28, 2
      %p156 = por %p154, %p155
      %p158 = scmp.ne.s32.totalorder %s143, %s157
      %p159 = scmp.eq.s32.totalorder %s28, 0
      %p160 = por %p158, %p159
      %s162 = sadd.s32 %s161, 1
      %p165 = scmp.eq.s32.totalorder %s22, 2
      %p166 = scmp.ne.s32.totalorder %s161, %s163
      %p167 = scmp.eq.s32.totalorder %s22, 0
      %p168 = por %p166, %p167
      %p169 = scmp.ne.s32.totalorder %s161, %s163
      %p170 = scmp.eq.s32.totalorder %s27, 2
      %p171 = por %p169, %p170
      %p172 = scmp.ne.s32.totalorder %s163, %s164
      %p173 = scmp.eq.s32.totalorder %s27, 0
      %p174 = por %p172, %p173
      %p175 = scmp.ne.s32.totalorder %s163, %s164
      %p176 = scmp.eq.s32.totalorder %s28, 2
      %p177 = por %p175, %p176
      %p179 = scmp.ne.s32.totalorder %s164, %s178
      %p180 = scmp.eq.s32.totalorder %s28, 0
      %p181 = por %p179, %p180
      %s183 = sadd.s32 %s182, 1
      %p186 = scmp.eq.s32.totalorder %s22, 2
      %p187 = scmp.ne.s32.totalorder %s182, %s184
      %p188 = scmp.eq.s32.totalorder %s22, 0
      %p189 = por %p187, %p188
      %p190 = scmp.ne.s32.totalorder %s182, %s184
      %p191 = scmp.eq.s32.totalorder %s27, 2
      %p192 = por %p190, %p191
      %p193 = scmp.ne.s32.totalorder %s184, %s185
      %p194 = scmp.eq.s32.totalorder %s27, 0
      %p195 = por %p193, %p194
      %p196 = scmp.ne.s32.totalorder %s184, %s185
      %p197 = scmp.eq.s32.totalorder %s28, 2
      %p198 = por %p196, %p197
      %p200 = scmp.ne.s32.totalorder %s185, %s199
      %p201 = scmp.eq.s32.totalorder %s28, 0
      %p202 = por %p200, %p201
      %s203 = ssub.s32 %s22, %s29
      %p204 = scmp.eq.s32.totalorder %s203, 0
      %s206 = sadd.s32 %s205, 1
      %s207 = scalar_select %p204, %s205, %s206
      %p210 = pneg %p204
      %p211 = scmp.eq.s32.totalorder %s22, 2
      %p212 = por %p210, %p211
      %p213 = scmp.ne.s32.totalorder %s205, %s208
      %p214 = scmp.eq.s32.totalorder %s22, 0
      %p215 = por %p213, %p214
      %p216 = scmp.ne.s32.totalorder %s205, %s208
      %p217 = scmp.eq.s32.totalorder %s27, 2
      %p218 = por %p216, %p217
      %p219 = scmp.ne.s32.totalorder %s208, %s209
      %p220 = scmp.eq.s32.totalorder %s27, 0
      %p221 = por %p219, %p220
      %p222 = scmp.ne.s32.totalorder %s208, %s209
      %p223 = scmp.eq.s32.totalorder %s28, 2
      %p224 = por %p222, %p223
      %p226 = scmp.ne.s32.totalorder %s209, %s225
      %p227 = scmp.eq.s32.totalorder %s28, 0
      %p228 = por %p226, %p227
      %s230 = sadd.s32 %s229, 1
      %p233 = scmp.eq.s32.totalorder %s22, 2
      %p234 = scmp.ne.s32.totalorder %s229, %s231
      %p235 = scmp.eq.s32.totalorder %s22, 0
      %p236 = por %p234, %p235
      %p237 = scmp.ne.s32.totalorder %s229, %s231
      %p238 = scmp.eq.s32.totalorder %s27, 2
      %p239 = por %p237, %p238
      %p240 = scmp.ne.s32.totalorder %s231, %s232
      %p241 = scmp.eq.s32.totalorder %s27, 0
      %p242 = por %p240, %p241
      %p243 = scmp.ne.s32.totalorder %s231, %s232
      %p244 = scmp.eq.s32.totalorder %s28, 2
      %p245 = por %p243, %p244
      %p247 = scmp.ne.s32.totalorder %s232, %s246
      %p248 = scmp.eq.s32.totalorder %s28, 0
      %p249 = por %p247, %p248
      %p250 = scmp.le.s32.totalorder 1, %s22
      %p251 = scmp.lt.s32.totalorder %s22, 4
      %p252 = pnand %p250, %p251
      %p253 = pneg %p252
      // Predicated region
      $region9: #{tpu_custom_call.1} parent=5 // pred_check
        _
      $region10: #{tpu_custom_call.1} parent=5 // pred_check_branch
        %255 = sbr.rel (%p252) target = $region12
      $region11: #{tpu_custom_call.1} parent=5 // pred_region
        %s256 = ssub.s32 %s22, 1
        // Predicated region
        $region13: #{tpu_custom_call.1} parent=11 // pred_check
          %p257 = pneg %p69
        $region14: #{tpu_custom_call.1} parent=11 // pred_check_branch
          %259 = sbr.rel (%p257) target = $region16
        $region15: #{tpu_custom_call.1} parent=11 // pred_region
          %261 = vsyncadd [#allocation6], 0
          %s262 = sshll.u32 %s1, 4
          %s263 = int_to_ptr.hbm [resolvable:$true] %s262
          %s264 = sshll.u32 [#allocation5], 4
          %s265 = int_to_ptr.vmem [resolvable:$true] %s264
          %270 = dma.hbm_to_vmem [thread:$0]  %s263, 384, %s265, [#allocation6], 192, 192, 12
        $region16: #{tpu_custom_call.1} parent=11 // pred_fallthru
          _
        // Predicated region
        $region17: #{tpu_custom_call.1} parent=11 // pred_check
          %p271 = pneg %p90
        $region18: #{tpu_custom_call.1} parent=11 // pred_check_branch
          %273 = sbr.rel (%p271) target = $region20
        $region19: #{tpu_custom_call.1} parent=11 // pred_region
          _
        $region20: #{tpu_custom_call.1} parent=11 // pred_fallthru
          _
        // Predicated region
        $region21: #{tpu_custom_call.1} parent=11 // pred_check
          %p274 = pneg %p111
        $region22: #{tpu_custom_call.1} parent=11 // pred_check_branch
          %276 = sbr.rel (%p274) target = $region24
        $region23: #{tpu_custom_call.1} parent=11 // pred_region
          %278 = vsyncadd [#allocation9], 0
          %s279 = sshll.u32 %s3, 4
          %s280 = int_to_ptr.hbm [resolvable:$true] %s279
          %s281 = sshll.u32 [#allocation8], 4
          %s282 = int_to_ptr.vmem [resolvable:$true] %s281
          %287 = dma.hbm_to_vmem [thread:$0]  %s280, 3072, %s282, [#allocation9], 192, 192, 12
        $region24: #{tpu_custom_call.1} parent=11 // pred_fallthru
          _
        // Predicated region
        $region25: #{tpu_custom_call.1} parent=11 // pred_check
          %p288 = pneg %p132
        $region26: #{tpu_custom_call.1} parent=11 // pred_check_branch
          %290 = sbr.rel (%p288) target = $region28
        $region27: #{tpu_custom_call.1} parent=11 // pred_region
          %292 = vsyncadd [#allocation9], 0
          %s294 = sshll.u32 %s4, 4
          %s295 = int_to_ptr.hbm [resolvable:$true] %s294
          %s296 = sshll.u32 [#allocation10], 4
          %s297 = int_to_ptr.vmem [resolvable:$true] %s296
          %299 = dma.hbm_to_vmem [thread:$0]  %s295, 48, %s297, [#allocation9]
        $region28: #{tpu_custom_call.1} parent=11 // pred_fallthru
          _
        // Predicated region
        $region29: #{tpu_custom_call.1} parent=11 // pred_check
          %p300 = pneg %p153
        $region30: #{tpu_custom_call.1} parent=11 // pred_check_branch
          %302 = sbr.rel (%p300) target = $region32
        $region31: #{tpu_custom_call.1} parent=11 // pred_region
          _
        $region32: #{tpu_custom_call.1} parent=11 // pred_fallthru
          _
        // Predicated region
        $region33: #{tpu_custom_call.1} parent=11 // pred_check
          %p303 = pneg %p174
        $region34: #{tpu_custom_call.1} parent=11 // pred_check_branch
          %305 = sbr.rel (%p303) target = $region36
        $region35: #{tpu_custom_call.1} parent=11 // pred_region
          _
        $region36: #{tpu_custom_call.1} parent=11 // pred_fallthru
          _
        // Predicated region
        $region37: #{tpu_custom_call.1} parent=11 // pred_check
          %p306 = pneg %p195
        $region38: #{tpu_custom_call.1} parent=11 // pred_check_branch
          %308 = sbr.rel (%p306) target = $region40
        $region39: #{tpu_custom_call.1} parent=11 // pred_region
          _
        $region40: #{tpu_custom_call.1} parent=11 // pred_fallthru
          _
      $region12: #{tpu_custom_call.1} parent=5 // pred_fallthru
        _
      %p309 = scmp.lt.s32.totalorder %s22, 3
      // Predicated region
      $region41: #{tpu_custom_call.1} parent=5 // pred_check
        %p310 = pneg %p309
      $region42: #{tpu_custom_call.1} parent=5 // pred_check_branch
        %312 = sbr.rel (%p310) target = $region44
      $region43: #{tpu_custom_call.1} parent=5 // pred_region
        // Predicated region
        $region45: #{tpu_custom_call.1} parent=43 // pred_check
          %p313 = pneg %p42
        $region46: #{tpu_custom_call.1} parent=43 // pred_check_branch
          %315 = sbr.rel (%p313) target = $region48
        $region47: #{tpu_custom_call.1} parent=43 // pred_region
          %s316 = smul.u32 2, %s22
          %p317 = scmp.lt.s32.totalorder %s316, 5
          %s318 = scalar_select %p317, %s316, 5
          %s319 = smul.addr %s318, 8
          %s320 = scalar_lea.vmem %s0, %s319
          %s321 = smul.u32 2, %s22
        $region48: #{tpu_custom_call.1} parent=43 // pred_fallthru
          _
      $region44: #{tpu_custom_call.1} parent=5 // pred_fallthru
        _
      %p322 = scmp.le.s32.totalorder 1, %s22
      %p323 = scmp.lt.s32.totalorder %s22, 4
      %p324 = pnand %p322, %p323
      %p325 = pneg %p324
      // Predicated region
      $region49: #{tpu_custom_call.1} parent=5 // pred_check
        _
      $region50: #{tpu_custom_call.1} parent=5 // pred_check_branch
        %327 = sbr.rel (%p324) target = $region52
      $region51: #{tpu_custom_call.1} parent=5 // pred_region
        %s328 = ssub.s32 %s22, 1
        // Predicated region
        $region53: #{tpu_custom_call.1} parent=51 // pred_check
          %p329 = pneg %p69
        $region54: #{tpu_custom_call.1} parent=51 // pred_check_branch
          %331 = sbr.rel (%p329) target = $region56
        $region55: #{tpu_custom_call.1} parent=51 // pred_region
          %333 = dma.done [#allocation6], 384
        $region56: #{tpu_custom_call.1} parent=51 // pred_fallthru
          _
        // Predicated region
        $region57: #{tpu_custom_call.1} parent=51 // pred_check
          %p334 = pneg %p111
        $region58: #{tpu_custom_call.1} parent=51 // pred_check_branch
          %336 = sbr.rel (%p334) target = $region60
        $region59: #{tpu_custom_call.1} parent=51 // pred_region
          %338 = dma.done [#allocation9], 3072
        $region60: #{tpu_custom_call.1} parent=51 // pred_fallthru
          _
        // Predicated region
        $region61: #{tpu_custom_call.1} parent=51 // pred_check
          %p339 = pneg %p132
        $region62: #{tpu_custom_call.1} parent=51 // pred_check_branch
          %341 = sbr.rel (%p339) target = $region64
        $region63: #{tpu_custom_call.1} parent=51 // pred_region
          %343 = dma.done [#allocation9], 48
        $region64: #{tpu_custom_call.1} parent=51 // pred_fallthru
          _
        %s344 = smul.u32 2, %s27
        %p345 = scmp.lt.s32.totalorder %s344, 5
        %s346 = scalar_select %p345, %s344, 5
        %s347 = smul.addr %s346, 8
        %s348 = scalar_lea.vmem %s0, %s347
        %p349 = pneg %p48
        %p350 = pneg %p45
        %p351 = pneg %p69
        %p352 = pneg %p66
        %p353 = pneg %p90
        %p354 = pneg %p87
        %p355 = pneg %p111
        %p356 = pneg %p108
        %p357 = pneg %p132
        %p358 = pneg %p129
        %p359 = pneg %p153
        %p360 = pneg %p150
        %p361 = pneg %p174
        %p362 = pneg %p171
        %p363 = pneg %p195
        %p364 = pneg %p192
        %p365 = pneg %p221
        %p366 = pneg %p218
        %s367 = sand.u32 %s208, 1
        %s368 = scalar_lea.sflag [#allocation7], %s367
        %s369 = sand.u32 %s208, 1
        %s370 = smul.addr %s369, 16
        %s371 = scalar_lea.vmem [#allocation11], %s370
        %p372 = pneg %p242
        %p373 = pneg %p239
        %s374 = smul.u32 2, %s27
        %p375 = scmp.lt.s32.totalorder %s374, 5
        %s376 = scalar_select %p375, %s374, 5
        %s377 = smul.addr %s376, 8
        %s378 = scalar_lea.vmem %s0, %s377
        %s379 = smul.u32 2, %s27
        %s380 = smul.u32 2, %s27
        %p382 = scmp.eq.s32.totalorder %s27, 0
        // Predicated region
        $region65: #{tpu_custom_call.1} parent=51 // pred_check
          %p383 = pneg %p382
        $region66: #{tpu_custom_call.1} parent=51 // pred_check_branch
          %385 = sbr.rel (%p383) target = $region68
        $region67: #{tpu_custom_call.1} parent=51 // pred_region
          %v386 = vld [vmem:[%s5] sm:$0x1]
          %387 = vst [vmem:[#allocation2] sm:$0x1] %v386
        $region68: #{tpu_custom_call.1} parent=51 // pred_fallthru
          _
        %v388 = vld [vmem:[%s378] sm:$0xff]
        %v389 = vld [vmem:[%s378 + $0x8] sm:$0xff]
        %v390 = vpack.c.bf16 %v389, %v388
        %v391 = vld [vmem:[#allocation5] sm:$0xff]
        %v392 = vld [vmem:[#allocation5 + $0x8] sm:$0xf]
        %v393 = vld [vmem:[#allocation5 + $0xc] sm:$0xff]
        %v394 = vld [vmem:[#allocation5 + $0x14] sm:$0xf]
        %v395 = vld [vmem:[%s2] sm:$0x7]
        %v397 = vperm.slane %v395, 0
        %v398 = vperm.slane %v395, 1
        %v399 = vperm.slane %v395, 2
        %v407 = vunpack.c.l.b16 %v391
        %v408 = vunpack.c.h.b16 %v391
        %v409 = vunpack.c.l.b16 %v392
        %v410 = vunpack.c.l.b16 %v393
        %v411 = vunpack.c.h.b16 %v393
        %v412 = vunpack.c.l.b16 %v394
        %v413 = vpack.c.b16 %v410, %v407
        %v414 = vpack.c.b16 %v411, %v408
        %v415 = vpack.c.b16 %v412, %v409
        %vm419 = vcmask 130048
        %v421 = vsel %vm419, %v390, 0
        %423 = vmatpush.bf16.msra.mxu0 0
        %424 = vmatpush.bf16.msra.mxu0 0
        %425 = vmatpush.bf16.msra.mxu0 0
        %426 = vmatpush.bf16.msra.mxu0 0
        %427 = vmatpush.bf16.msra.mxu0 0
        %428 = vmatpush.bf16.msra.mxu0 0
        %429 = vmatpush.bf16.msra.mxu0 0
        %430 = vmatpush.bf16.msra.mxu0 %v413
        %431 = vmatmul.bf16.gmra.mxu0 %v421
        %v432 = vpop.f32.mrf.mxu0
        %v433 = vadd.f32 %v397, %v432
        %v434 = vpop.f32.mrf.mxu0
        %v435 = vadd.f32 %v397, %v434
        %436 = vdwg.mxu0
        %437 = vmatpush.bf16.msra.mxu0 0
        %438 = vmatpush.bf16.msra.mxu0 0
        %439 = vmatpush.bf16.msra.mxu0 0
        %440 = vmatpush.bf16.msra.mxu0 0
        %441 = vmatpush.bf16.msra.mxu0 0
        %442 = vmatpush.bf16.msra.mxu0 0
        %443 = vmatpush.bf16.msra.mxu0 0
        %444 = vmatpush.bf16.msra.mxu0 %v414
        %445 = vmatmul.bf16.gmra.mxu0 %v421
        %v446 = vpop.f32.mrf.mxu0
        %v447 = vadd.f32 %v398, %v446
        %v448 = vpop.f32.mrf.mxu0
        %v449 = vadd.f32 %v398, %v448
        %450 = vdwg.mxu0
        %451 = vmatpush.bf16.msra.mxu0 0
        %452 = vmatpush.bf16.msra.mxu0 0
        %453 = vmatpush.bf16.msra.mxu0 0
        %454 = vmatpush.bf16.msra.mxu0 0
        %455 = vmatpush.bf16.msra.mxu0 0
        %456 = vmatpush.bf16.msra.mxu0 0
        %457 = vmatpush.bf16.msra.mxu0 0
        %458 = vmatpush.bf16.msra.mxu0 %v415
        %459 = vmatmul.bf16.gmra.mxu0 %v421
        %v460 = vpop.f32.mrf.mxu0
        %v461 = vadd.f32 %v399, %v460
        %v462 = vpop.f32.mrf.mxu0
        %v463 = vadd.f32 %v399, %v462
        %464 = vdwg.mxu0
        %465 = vst [vmem:[#allocation3] sm:$0xff] %v433
        %466 = vst [vmem:[#allocation3 + $0x8] sm:$0xff] %v447
        %467 = vst [vmem:[#allocation3 + $0x10] sm:$0xff] %v461
        %468 = vst [vmem:[#allocation3 + $0x18] sm:$0xff] %v435
        %469 = vst [vmem:[#allocation3 + $0x20] sm:$0xff] %v449
        %470 = vst [vmem:[#allocation3 + $0x28] sm:$0xff] %v463
        %v471 = vld [vmem:[#allocation10] sm:$0x7]
        %v472 = vld [vmem:[#allocation2] sm:$0x1]
        %v473 = vpack.c.bf16 %v472, %v472
        %v474 = vld [vmem:[#allocation8] sm:$0xff]
        %v475 = vld [vmem:[#allocation8 + $0x8] sm:$0xf]
        %v476 = vld [vmem:[#allocation8 + $0xc] sm:$0xff]
        %v477 = vld [vmem:[#allocation8 + $0x14] sm:$0xf]
        %v478 = vld [vmem:[#allocation8 + $0x18] sm:$0xff]
        %v479 = vld [vmem:[#allocation8 + $0x20] sm:$0xf]
        %v480 = vld [vmem:[#allocation8 + $0x24] sm:$0xff]
        %v481 = vld [vmem:[#allocation8 + $0x2c] sm:$0xf]
        %v482 = vld [vmem:[#allocation8 + $0x30] sm:$0xff]
        %v483 = vld [vmem:[#allocation8 + $0x38] sm:$0xf]
        %v484 = vld [vmem:[#allocation8 + $0x3c] sm:$0xff]
        %v485 = vld [vmem:[#allocation8 + $0x44] sm:$0xf]
        %v486 = vld [vmem:[#allocation8 + $0x48] sm:$0xff]
        %v487 = vld [vmem:[#allocation8 + $0x50] sm:$0xf]
        %v488 = vld [vmem:[#allocation8 + $0x54] sm:$0xff]
        %v489 = vld [vmem:[#allocation8 + $0x5c] sm:$0xf]
        %v490 = vld [vmem:[#allocation8 + $0x60] sm:$0xff]
        %v491 = vld [vmem:[#allocation8 + $0x68] sm:$0xf]
        %v492 = vld [vmem:[#allocation8 + $0x6c] sm:$0xff]
        %v493 = vld [vmem:[#allocation8 + $0x74] sm:$0xf]
        %v494 = vld [vmem:[#allocation8 + $0x78] sm:$0xff]
        %v495 = vld [vmem:[#allocation8 + $0x80] sm:$0xf]
        %v496 = vld [vmem:[#allocation8 + $0x84] sm:$0xff]
        %v497 = vld [vmem:[#allocation8 + $0x8c] sm:$0xf]
        %v498 = vld [vmem:[#allocation8 + $0x90] sm:$0xff]
        %v499 = vld [vmem:[#allocation8 + $0x98] sm:$0xf]
        %v500 = vld [vmem:[#allocation8 + $0x9c] sm:$0xff]
        %v501 = vld [vmem:[#allocation8 + $0xa4] sm:$0xf]
        %v502 = vld [vmem:[#allocation8 + $0xa8] sm:$0xff]
        %v503 = vld [vmem:[#allocation8 + $0xb0] sm:$0xf]
        %v504 = vld [vmem:[#allocation8 + $0xb4] sm:$0xff]
        %v505 = vld [vmem:[#allocation8 + $0xbc] sm:$0xf]
        %v538 = vunpack.c.l.b16 %v474
        %v539 = vunpack.c.h.b16 %v474
        %v540 = vunpack.c.l.b16 %v475
        %v541 = vunpack.c.l.b16 %v476
        %v542 = vunpack.c.h.b16 %v476
        %v543 = vunpack.c.l.b16 %v477
        %v544 = vunpack.c.l.b16 %v478
        %v545 = vunpack.c.h.b16 %v478
        %v546 = vunpack.c.l.b16 %v479
        %v547 = vunpack.c.l.b16 %v480
        %v548 = vunpack.c.h.b16 %v480
        %v549 = vunpack.c.l.b16 %v481
        %v550 = vunpack.c.l.b16 %v482
        %v551 = vunpack.c.h.b16 %v482
        %v552 = vunpack.c.l.b16 %v483
        %v553 = vunpack.c.l.b16 %v484
        %v554 = vunpack.c.h.b16 %v484
        %v555 = vunpack.c.l.b16 %v485
        %v556 = vunpack.c.l.b16 %v486
        %v557 = vunpack.c.h.b16 %v486
        %v558 = vunpack.c.l.b16 %v487
        %v559 = vunpack.c.l.b16 %v488
        %v560 = vunpack.c.h.b16 %v488
        %v561 = vunpack.c.l.b16 %v489
        %v562 = vunpack.c.l.b16 %v490
        %v563 = vunpack.c.h.b16 %v490
        %v564 = vunpack.c.l.b16 %v491
        %v565 = vunpack.c.l.b16 %v492
        %v566 = vunpack.c.h.b16 %v492
        %v567 = vunpack.c.l.b16 %v493
        %v568 = vunpack.c.l.b16 %v494
        %v569 = vunpack.c.h.b16 %v494
        %v570 = vunpack.c.l.b16 %v495
        %v571 = vunpack.c.l.b16 %v496
        %v572 = vunpack.c.h.b16 %v496
        %v573 = vunpack.c.l.b16 %v497
        %v574 = vunpack.c.l.b16 %v498
        %v575 = vunpack.c.h.b16 %v498
        %v576 = vunpack.c.l.b16 %v499
        %v577 = vunpack.c.l.b16 %v500
        %v578 = vunpack.c.h.b16 %v500
        %v579 = vunpack.c.l.b16 %v501
        %v580 = vunpack.c.l.b16 %v502
        %v581 = vunpack.c.h.b16 %v502
        %v582 = vunpack.c.l.b16 %v503
        %v583 = vunpack.c.l.b16 %v504
        %v584 = vunpack.c.h.b16 %v504
        %v585 = vunpack.c.l.b16 %v505
        %v586 = vpack.c.b16 %v541, %v538
        %v587 = vpack.c.b16 %v542, %v539
        %v588 = vpack.c.b16 %v543, %v540
        %v589 = vpack.c.b16 %v547, %v544
        %v590 = vpack.c.b16 %v548, %v545
        %v591 = vpack.c.b16 %v549, %v546
        %v592 = vpack.c.b16 %v553, %v550
        %v593 = vpack.c.b16 %v554, %v551
        %v594 = vpack.c.b16 %v555, %v552
        %v595 = vpack.c.b16 %v559, %v556
        %v596 = vpack.c.b16 %v560, %v557
        %v597 = vpack.c.b16 %v561, %v558
        %v598 = vpack.c.b16 %v565, %v562
        %v599 = vpack.c.b16 %v566, %v563
        %v600 = vpack.c.b16 %v567, %v564
        %v601 = vpack.c.b16 %v571, %v568
        %v602 = vpack.c.b16 %v572, %v569
        %v603 = vpack.c.b16 %v573, %v570
        %v604 = vpack.c.b16 %v577, %v574
        %v605 = vpack.c.b16 %v578, %v575
        %v606 = vpack.c.b16 %v579, %v576
        %v607 = vpack.c.b16 %v583, %v580
        %v608 = vpack.c.b16 %v584, %v581
        %v609 = vpack.c.b16 %v585, %v582
        %v635 = vperm.slane %v471, 0
        %v636 = vperm.slane %v471, 1
        %v637 = vperm.slane %v471, 2
        %641 = vmatpush.bf16.msra.mxu0 %v607
        %642 = vmatpush.bf16.msra.mxu0 %v604
        %643 = vmatpush.bf16.msra.mxu0 %v601
        %644 = vmatpush.bf16.msra.mxu0 %v598
        %645 = vmatpush.bf16.msra.mxu0 %v595
        %646 = vmatpush.bf16.msra.mxu0 %v592
        %647 = vmatpush.bf16.msra.mxu0 %v589
        %648 = vmatpush.bf16.msra.mxu0 %v586
        %649 = vmatmul.bf16.gmra.mxu0 %v473
        %v650 = vpop.f32.mrf.mxu0
        %v651 = vadd.f32 %v635, %v650
        %v652 = vpop.f32.mrf.mxu0
        %653 = vdwg.mxu0
        %654 = vmatpush.bf16.msra.mxu0 %v608
        %655 = vmatpush.bf16.msra.mxu0 %v605
        %656 = vmatpush.bf16.msra.mxu0 %v602
        %657 = vmatpush.bf16.msra.mxu0 %v599
        %658 = vmatpush.bf16.msra.mxu0 %v596
        %659 = vmatpush.bf16.msra.mxu0 %v593
        %660 = vmatpush.bf16.msra.mxu0 %v590
        %661 = vmatpush.bf16.msra.mxu0 %v587
        %662 = vmatmul.bf16.gmra.mxu0 %v473
        %v663 = vpop.f32.mrf.mxu0
        %v664 = vadd.f32 %v636, %v663
        %v665 = vpop.f32.mrf.mxu0
        %666 = vdwg.mxu0
        %667 = vmatpush.bf16.msra.mxu0 %v609
        %668 = vmatpush.bf16.msra.mxu0 %v606
        %669 = vmatpush.bf16.msra.mxu0 %v603
        %670 = vmatpush.bf16.msra.mxu0 %v600
        %671 = vmatpush.bf16.msra.mxu0 %v597
        %672 = vmatpush.bf16.msra.mxu0 %v594
        %673 = vmatpush.bf16.msra.mxu0 %v591
        %674 = vmatpush.bf16.msra.mxu0 %v588
        %675 = vmatmul.bf16.gmra.mxu0 %v473
        %v676 = vpop.f32.mrf.mxu0
        %v677 = vadd.f32 %v637, %v676
        %v678 = vpop.f32.mrf.mxu0
        %679 = vdwg.mxu0
        %v680 = vld [vmem:[#allocation3] ss:$8 sm:$0x7]
        %v681 = vadd.f32 %v680, %v651
        %v682 = vxor.u32 %v681, 2147483648
        %v683 = vmul.f32 %v682, 1.442695
        %v684 = vpow.pop %v683
        %v685 = vadd.f32 %v684, 1.0
        %v686 = vrcp.pop %v685
        %v687 = vmul.f32 %v685, %v686
        %v688 = vsub.f32 1.0, %v687
        %v689 = vmul.f32 %v686, %v688
        %v690 = vadd.f32 %v686, %v689
        %vm691 = vweird.f32 %v685
        %vm692 = vweird.f32 %v686
        %vm693 = vmor %vm691, %vm692
        %v694 = vsel %vm693, %v686, %v690
        %v695 = vand.u32 2147483647, %v685
        %vm696 = vcmp.eq.f32.partialorder %v695, 8.507059e+37
        %v697 = vand.u32 %v685, 2147483648
        %v698 = vor.u32 1.1754944e-38, %v697
        %v699 = vsel %vm696, %v698, %v694
        %v700 = vmul.f32 1.0, %v699
        %v702 = vrot.slane %v680, 1
        %v704 = vadd.f32 %v702, %v664
        %v705 = vxor.u32 %v704, 2147483648
        %v706 = vmul.f32 %v705, 1.442695
        %v707 = vpow.pop %v706
        %v708 = vadd.f32 %v707, 1.0
        %v709 = vrcp.pop %v708
        %v710 = vmul.f32 %v708, %v709
        %v711 = vsub.f32 1.0, %v710
        %v712 = vmul.f32 %v709, %v711
        %v713 = vadd.f32 %v709, %v712
        %vm714 = vweird.f32 %v708
        %vm715 = vweird.f32 %v709
        %vm716 = vmor %vm714, %vm715
        %v717 = vsel %vm716, %v709, %v713
        %v718 = vand.u32 2147483647, %v708
        %vm719 = vcmp.eq.f32.partialorder %v718, 8.507059e+37
        %v720 = vand.u32 %v708, 2147483648
        %v721 = vor.u32 1.1754944e-38, %v720
        %v722 = vsel %vm719, %v721, %v717
        %v723 = vmul.f32 1.0, %v722
        %v724 = vmul.f32 %v700, %v677
        %v725 = vrot.slane %v680, 2
        %v727 = vadd.f32 %v725, %v724
        %v728 = vtanh.pop %v727
        %v729 = vsub.f32 1.0, %v723
        %v730 = vmul.f32 %v729, %v728
        %v731 = vmul.f32 %v723, %v472
        %v732 = vadd.f32 %v730, %v731
        %s733 = smul.u32 %s27, 16
        %p734 = scmp.lt.s32.totalorder %s733, 40
        %s735 = scalar_select %p734, 1, 0
        %v736 = vstv %s735
        %vm737 = vcmp.eq.s32.totalorder %v736, 1
        %v738 = vsel %vm737, %v732, %v472
        %739 = vst [vmem:[#allocation2] sm:$0x1] %v738
        %740 = vst [vmem:[#allocation4] sm:$0x1] %v732
        %v741 = vld [vmem:[#allocation2] sm:$0x1]
        %v742 = vpack.c.bf16 %v741, %v741
        %v743 = vld [vmem:[#allocation8] sm:$0xff]
        %v744 = vld [vmem:[#allocation8 + $0x8] sm:$0xf]
        %v745 = vld [vmem:[#allocation8 + $0xc] sm:$0xff]
        %v746 = vld [vmem:[#allocation8 + $0x14] sm:$0xf]
        %v747 = vld [vmem:[#allocation8 + $0x18] sm:$0xff]
        %v748 = vld [vmem:[#allocation8 + $0x20] sm:$0xf]
        %v749 = vld [vmem:[#allocation8 + $0x24] sm:$0xff]
        %v750 = vld [vmem:[#allocation8 + $0x2c] sm:$0xf]
        %v751 = vld [vmem:[#allocation8 + $0x30] sm:$0xff]
        %v752 = vld [vmem:[#allocation8 + $0x38] sm:$0xf]
        %v753 = vld [vmem:[#allocation8 + $0x3c] sm:$0xff]
        %v754 = vld [vmem:[#allocation8 + $0x44] sm:$0xf]
        %v755 = vld [vmem:[#allocation8 + $0x48] sm:$0xff]
        %v756 = vld [vmem:[#allocation8 + $0x50] sm:$0xf]
        %v757 = vld [vmem:[#allocation8 + $0x54] sm:$0xff]
        %v758 = vld [vmem:[#allocation8 + $0x5c] sm:$0xf]
        %v759 = vld [vmem:[#allocation8 + $0x60] sm:$0xff]
        %v760 = vld [vmem:[#allocation8 + $0x68] sm:$0xf]
        %v761 = vld [vmem:[#allocation8 + $0x6c] sm:$0xff]
        %v762 = vld [vmem:[#allocation8 + $0x74] sm:$0xf]
        %v763 = vld [vmem:[#allocation8 + $0x78] sm:$0xff]
        %v764 = vld [vmem:[#allocation8 + $0x80] sm:$0xf]
        %v765 = vld [vmem:[#allocation8 + $0x84] sm:$0xff]
        %v766 = vld [vmem:[#allocation8 + $0x8c] sm:$0xf]
        %v767 = vld [vmem:[#allocation8 + $0x90] sm:$0xff]
        %v768 = vld [vmem:[#allocation8 + $0x98] sm:$0xf]
        %v769 = vld [vmem:[#allocation8 + $0x9c] sm:$0xff]
        %v770 = vld [vmem:[#allocation8 + $0xa4] sm:$0xf]
        %v771 = vld [vmem:[#allocation8 + $0xa8] sm:$0xff]
        %v772 = vld [vmem:[#allocation8 + $0xb0] sm:$0xf]
        %v773 = vld [vmem:[#allocation8 + $0xb4] sm:$0xff]
        %v774 = vld [vmem:[#allocation8 + $0xbc] sm:$0xf]
        %v807 = vunpack.c.l.b16 %v743
        %v808 = vunpack.c.h.b16 %v743
        %v809 = vunpack.c.l.b16 %v744
        %v810 = vunpack.c.l.b16 %v745
        %v811 = vunpack.c.h.b16 %v745
        %v812 = vunpack.c.l.b16 %v746
        %v813 = vunpack.c.l.b16 %v747
        %v814 = vunpack.c.h.b16 %v747
        %v815 = vunpack.c.l.b16 %v748
        %v816 = vunpack.c.l.b16 %v749
        %v817 = vunpack.c.h.b16 %v749
        %v818 = vunpack.c.l.b16 %v750
        %v819 = vunpack.c.l.b16 %v751
        %v820 = vunpack.c.h.b16 %v751
        %v821 = vunpack.c.l.b16 %v752
        %v822 = vunpack.c.l.b16 %v753
        %v823 = vunpack.c.h.b16 %v753
        %v824 = vunpack.c.l.b16 %v754
        %v825 = vunpack.c.l.b16 %v755
        %v826 = vunpack.c.h.b16 %v755
        %v827 = vunpack.c.l.b16 %v756
        %v828 = vunpack.c.l.b16 %v757
        %v829 = vunpack.c.h.b16 %v757
        %v830 = vunpack.c.l.b16 %v758
        %v831 = vunpack.c.l.b16 %v759
        %v832 = vunpack.c.h.b16 %v759
        %v833 = vunpack.c.l.b16 %v760
        %v834 = vunpack.c.l.b16 %v761
        %v835 = vunpack.c.h.b16 %v761
        %v836 = vunpack.c.l.b16 %v762
        %v837 = vunpack.c.l.b16 %v763
        %v838 = vunpack.c.h.b16 %v763
        %v839 = vunpack.c.l.b16 %v764
        %v840 = vunpack.c.l.b16 %v765
        %v841 = vunpack.c.h.b16 %v765
        %v842 = vunpack.c.l.b16 %v766
        %v843 = vunpack.c.l.b16 %v767
        %v844 = vunpack.c.h.b16 %v767
        %v845 = vunpack.c.l.b16 %v768
        %v846 = vunpack.c.l.b16 %v769
        %v847 = vunpack.c.h.b16 %v769
        %v848 = vunpack.c.l.b16 %v770
        %v849 = vunpack.c.l.b16 %v771
        %v850 = vunpack.c.h.b16 %v771
        %v851 = vunpack.c.l.b16 %v772
        %v852 = vunpack.c.l.b16 %v773
        %v853 = vunpack.c.h.b16 %v773
        %v854 = vunpack.c.l.b16 %v774
        %v855 = vpack.c.b16 %v810, %v807
        %v856 = vpack.c.b16 %v811, %v808
        %v857 = vpack.c.b16 %v812, %v809
        %v858 = vpack.c.b16 %v816, %v813
        %v859 = vpack.c.b16 %v817, %v814
        %v860 = vpack.c.b16 %v818, %v815
        %v861 = vpack.c.b16 %v822, %v819
        %v862 = vpack.c.b16 %v823, %v820
        %v863 = vpack.c.b16 %v824, %v821
        %v864 = vpack.c.b16 %v828, %v825
        %v865 = vpack.c.b16 %v829, %v826
        %v866 = vpack.c.b16 %v830, %v827
        %v867 = vpack.c.b16 %v834, %v831
        %v868 = vpack.c.b16 %v835, %v832
        %v869 = vpack.c.b16 %v836, %v833
        %v870 = vpack.c.b16 %v840, %v837
        %v871 = vpack.c.b16 %v841, %v838
        %v872 = vpack.c.b16 %v842, %v839
        %v873 = vpack.c.b16 %v846, %v843
        %v874 = vpack.c.b16 %v847, %v844
        %v875 = vpack.c.b16 %v848, %v845
        %v876 = vpack.c.b16 %v852, %v849
        %v877 = vpack.c.b16 %v853, %v850
        %v878 = vpack.c.b16 %v854, %v851
        %903 = vmatpush.bf16.msra.mxu0 %v876
        %904 = vmatpush.bf16.msra.mxu0 %v873
        %905 = vmatpush.bf16.msra.mxu0 %v870
        %906 = vmatpush.bf16.msra.mxu0 %v867
        %907 = vmatpush.bf16.msra.mxu0 %v864
        %908 = vmatpush.bf16.msra.mxu0 %v861
        %909 = vmatpush.bf16.msra.mxu0 %v858
        %910 = vmatpush.bf16.msra.mxu0 %v855
        %911 = vmatmul.bf16.gmra.mxu0 %v742
        %v912 = vpop.f32.mrf.mxu0
        %v913 = vadd.f32 %v635, %v912
        %v914 = vpop.f32.mrf.mxu0
        %915 = vdwg.mxu0
        %916 = vmatpush.bf16.msra.mxu0 %v877
        %917 = vmatpush.bf16.msra.mxu0 %v874
        %918 = vmatpush.bf16.msra.mxu0 %v871
        %919 = vmatpush.bf16.msra.mxu0 %v868
        %920 = vmatpush.bf16.msra.mxu0 %v865
        %921 = vmatpush.bf16.msra.mxu0 %v862
        %922 = vmatpush.bf16.msra.mxu0 %v859
        %923 = vmatpush.bf16.msra.mxu0 %v856
        %924 = vmatmul.bf16.gmra.mxu0 %v742
        %v925 = vpop.f32.mrf.mxu0
        %v926 = vadd.f32 %v636, %v925
        %v927 = vpop.f32.mrf.mxu0
        %928 = vdwg.mxu0
        %929 = vmatpush.bf16.msra.mxu0 %v878
        %930 = vmatpush.bf16.msra.mxu0 %v875
        %931 = vmatpush.bf16.msra.mxu0 %v872
        %932 = vmatpush.bf16.msra.mxu0 %v869
        %933 = vmatpush.bf16.msra.mxu0 %v866
        %934 = vmatpush.bf16.msra.mxu0 %v863
        %935 = vmatpush.bf16.msra.mxu0 %v860
        %936 = vmatpush.bf16.msra.mxu0 %v857
        %937 = vmatmul.bf16.gmra.mxu0 %v742
        %v938 = vpop.f32.mrf.mxu0
        %v939 = vadd.f32 %v637, %v938
        %v940 = vpop.f32.mrf.mxu0
        %941 = vdwg.mxu0
        %s942 = scalar_lea.vmem [#allocation3], 1
        %v943 = vld [vmem:[%s942] ss:$8 sm:$0x7]
        %v944 = vadd.f32 %v943, %v913
        %v945 = vxor.u32 %v944, 2147483648
        %v946 = vmul.f32 %v945, 1.442695
        %v947 = vpow.pop %v946
        %v948 = vadd.f32 %v947, 1.0
        %v949 = vrcp.pop %v948
        %v950 = vmul.f32 %v948, %v949
        %v951 = vsub.f32 1.0, %v950
        %v952 = vmul.f32 %v949, %v951
        %v953 = vadd.f32 %v949, %v952
        %vm954 = vweird.f32 %v948
        %vm955 = vweird.f32 %v949
        %vm956 = vmor %vm954, %vm955
        %v957 = vsel %vm956, %v949, %v953
        %v958 = vand.u32 2147483647, %v948
        %vm959 = vcmp.eq.f32.partialorder %v958, 8.507059e+37
        %v960 = vand.u32 %v948, 2147483648
        %v961 = vor.u32 1.1754944e-38, %v960
        %v962 = vsel %vm959, %v961, %v957
        %v963 = vmul.f32 1.0, %v962
        %v965 = vrot.slane %v943, 1
        %v967 = vadd.f32 %v965, %v926
        %v968 = vxor.u32 %v967, 2147483648
        %v969 = vmul.f32 %v968, 1.442695
        %v970 = vpow.pop %v969
        %v971 = vadd.f32 %v970, 1.0
        %v972 = vrcp.pop %v971
        %v973 = vmul.f32 %v971, %v972
        %v974 = vsub.f32 1.0, %v973
        %v975 = vmul.f32 %v972, %v974
        %v976 = vadd.f32 %v972, %v975
        %vm977 = vweird.f32 %v971
        %vm978 = vweird.f32 %v972
        %vm979 = vmor %vm977, %vm978
        %v980 = vsel %vm979, %v972, %v976
        %v981 = vand.u32 2147483647, %v971
        %vm982 = vcmp.eq.f32.partialorder %v981, 8.507059e+37
        %v983 = vand.u32 %v971, 2147483648
        %v984 = vor.u32 1.1754944e-38, %v983
        %v985 = vsel %vm982, %v984, %v980
        %v986 = vmul.f32 1.0, %v985
        %v987 = vmul.f32 %v963, %v939
        %v988 = vrot.slane %v943, 2
        %v990 = vadd.f32 %v988, %v987
        %v991 = vtanh.pop %v990
        %v992 = vsub.f32 1.0, %v986
        %v993 = vmul.f32 %v992, %v991
        %v994 = vmul.f32 %v986, %v741
        %v995 = vadd.f32 %v993, %v994
        %s996 = sadd.s32 %s733, 1
        %p997 = scmp.lt.s32.totalorder %s996, 40
        %s998 = scalar_select %p997, 1, 0
        %v999 = vstv %s998
        %vm1000 = vcmp.eq.s32.totalorder %v999, 1
        %v1001 = vsel %vm1000, %v995, %v741
        %1002 = vst [vmem:[#allocation2] sm:$0x1] %v1001
        %1003 = vst [vmem:[#allocation4 + $0x1] sm:$0x1] %v995
        %v1004 = vld [vmem:[#allocation2] sm:$0x1]
        %v1005 = vpack.c.bf16 %v1004, %v1004
        %v1006 = vld [vmem:[#allocation8] sm:$0xff]
        %v1007 = vld [vmem:[#allocation8 + $0x8] sm:$0xf]
        %v1008 = vld [vmem:[#allocation8 + $0xc] sm:$0xff]
        %v1009 = vld [vmem:[#allocation8 + $0x14] sm:$0xf]
        %v1010 = vld [vmem:[#allocation8 + $0x18] sm:$0xff]
        %v1011 = vld [vmem:[#allocation8 + $0x20] sm:$0xf]
        %v1012 = vld [vmem:[#allocation8 + $0x24] sm:$0xff]
        %v1013 = vld [vmem:[#allocation8 + $0x2c] sm:$0xf]
        %v1014 = vld [vmem:[#allocation8 + $0x30] sm:$0xff]
        %v1015 = vld [vmem:[#allocation8 + $0x38] sm:$0xf]
        %v1016 = vld [vmem:[#allocation8 + $0x3c] sm:$0xff]
        %v1017 = vld [vmem:[#allocation8 + $0x44] sm:$0xf]
        %v1018 = vld [vmem:[#allocation8 + $0x48] sm:$0xff]
        %v1019 = vld [vmem:[#allocation8 + $0x50] sm:$0xf]
        %v1020 = vld [vmem:[#allocation8 + $0x54] sm:$0xff]
        %v1021 = vld [vmem:[#allocation8 + $0x5c] sm:$0xf]
        %v1022 = vld [vmem:[#allocation8 + $0x60] sm:$0xff]
        %v1023 = vld [vmem:[#allocation8 + $0x68] sm:$0xf]
        %v1024 = vld [vmem:[#allocation8 + $0x6c] sm:$0xff]
        %v1025 = vld [vmem:[#allocation8 + $0x74] sm:$0xf]
        %v1026 = vld [vmem:[#allocation8 + $0x78] sm:$0xff]
        %v1027 = vld [vmem:[#allocation8 + $0x80] sm:$0xf]
        %v1028 = vld [vmem:[#allocation8 + $0x84] sm:$0xff]
        %v1029 = vld [vmem:[#allocation8 + $0x8c] sm:$0xf]
        %v1030 = vld [vmem:[#allocation8 + $0x90] sm:$0xff]
        %v1031 = vld [vmem:[#allocation8 + $0x98] sm:$0xf]
        %v1032 = vld [vmem:[#allocation8 + $0x9c] sm:$0xff]
        %v1033 = vld [vmem:[#allocation8 + $0xa4] sm:$0xf]
        %v1034 = vld [vmem:[#allocation8 + $0xa8] sm:$0xff]
        %v1035 = vld [vmem:[#allocation8 + $0xb0] sm:$0xf]
        %v1036 = vld [vmem:[#allocation8 + $0xb4] sm:$0xff]
        %v1037 = vld [vmem:[#allocation8 + $0xbc] sm:$0xf]
        %v1070 = vunpack.c.l.b16 %v1006
        %v1071 = vunpack.c.h.b16 %v1006
        %v1072 = vunpack.c.l.b16 %v1007
        %v1073 = vunpack.c.l.b16 %v1008
        %v1074 = vunpack.c.h.b16 %v1008
        %v1075 = vunpack.c.l.b16 %v1009
        %v1076 = vunpack.c.l.b16 %v1010
        %v1077 = vunpack.c.h.b16 %v1010
        %v1078 = vunpack.c.l.b16 %v1011
        %v1079 = vunpack.c.l.b16 %v1012
        %v1080 = vunpack.c.h.b16 %v1012
        %v1081 = vunpack.c.l.b16 %v1013
        %v1082 = vunpack.c.l.b16 %v1014
        %v1083 = vunpack.c.h.b16 %v1014
        %v1084 = vunpack.c.l.b16 %v1015
        %v1085 = vunpack.c.l.b16 %v1016
        %v1086 = vunpack.c.h.b16 %v1016
        %v1087 = vunpack.c.l.b16 %v1017
        %v1088 = vunpack.c.l.b16 %v1018
        %v1089 = vunpack.c.h.b16 %v1018
        %v1090 = vunpack.c.l.b16 %v1019
        %v1091 = vunpack.c.l.b16 %v1020
        %v1092 = vunpack.c.h.b16 %v1020
        %v1093 = vunpack.c.l.b16 %v1021
        %v1094 = vunpack.c.l.b16 %v1022
        %v1095 = vunpack.c.h.b16 %v1022
        %v1096 = vunpack.c.l.b16 %v1023
        %v1097 = vunpack.c.l.b16 %v1024
        %v1098 = vunpack.c.h.b16 %v1024
        %v1099 = vunpack.c.l.b16 %v1025
        %v1100 = vunpack.c.l.b16 %v1026
        %v1101 = vunpack.c.h.b16 %v1026
        %v1102 = vunpack.c.l.b16 %v1027
        %v1103 = vunpack.c.l.b16 %v1028
        %v1104 = vunpack.c.h.b16 %v1028
        %v1105 = vunpack.c.l.b16 %v1029
        %v1106 = vunpack.c.l.b16 %v1030
        %v1107 = vunpack.c.h.b16 %v1030
        %v1108 = vunpack.c.l.b16 %v1031
        %v1109 = vunpack.c.l.b16 %v1032
        %v1110 = vunpack.c.h.b16 %v1032
        %v1111 = vunpack.c.l.b16 %v1033
        %v1112 = vunpack.c.l.b16 %v1034
        %v1113 = vunpack.c.h.b16 %v1034
        %v1114 = vunpack.c.l.b16 %v1035
        %v1115 = vunpack.c.l.b16 %v1036
        %v1116 = vunpack.c.h.b16 %v1036
        %v1117 = vunpack.c.l.b16 %v1037
        %v1118 = vpack.c.b16 %v1073, %v1070
        %v1119 = vpack.c.b16 %v1074, %v1071
        %v1120 = vpack.c.b16 %v1075, %v1072
        %v1121 = vpack.c.b16 %v1079, %v1076
        %v1122 = vpack.c.b16 %v1080, %v1077
        %v1123 = vpack.c.b16 %v1081, %v1078
        %v1124 = vpack.c.b16 %v1085, %v1082
        %v1125 = vpack.c.b16 %v1086, %v1083
        %v1126 = vpack.c.b16 %v1087, %v1084
        %v1127 = vpack.c.b16 %v1091, %v1088
        %v1128 = vpack.c.b16 %v1092, %v1089
        %v1129 = vpack.c.b16 %v1093, %v1090
        %v1130 = vpack.c.b16 %v1097, %v1094
        %v1131 = vpack.c.b16 %v1098, %v1095
        %v1132 = vpack.c.b16 %v1099, %v1096
        %v1133 = vpack.c.b16 %v1103, %v1100
        %v1134 = vpack.c.b16 %v1104, %v1101
        %v1135 = vpack.c.b16 %v1105, %v1102
        %v1136 = vpack.c.b16 %v1109, %v1106
        %v1137 = vpack.c.b16 %v1110, %v1107
        %v1138 = vpack.c.b16 %v1111, %v1108
        %v1139 = vpack.c.b16 %v1115, %v1112
        %v1140 = vpack.c.b16 %v1116, %v1113
        %v1141 = vpack.c.b16 %v1117, %v1114
        %1166 = vmatpush.bf16.msra.mxu0 %v1139
        %1167 = vmatpush.bf16.msra.mxu0 %v1136
        %1168 = vmatpush.bf16.msra.mxu0 %v1133
        %1169 = vmatpush.bf16.msra.mxu0 %v1130
        %1170 = vmatpush.bf16.msra.mxu0 %v1127
        %1171 = vmatpush.bf16.msra.mxu0 %v1124
        %1172 = vmatpush.bf16.msra.mxu0 %v1121
        %1173 = vmatpush.bf16.msra.mxu0 %v1118
        %1174 = vmatmul.bf16.gmra.mxu0 %v1005
        %v1175 = vpop.f32.mrf.mxu0
        %v1176 = vadd.f32 %v635, %v1175
        %v1177 = vpop.f32.mrf.mxu0
        %1178 = vdwg.mxu0
        %1179 = vmatpush.bf16.msra.mxu0 %v1140
        %1180 = vmatpush.bf16.msra.mxu0 %v1137
        %1181 = vmatpush.bf16.msra.mxu0 %v1134
        %1182 = vmatpush.bf16.msra.mxu0 %v1131
        %1183 = vmatpush.bf16.msra.mxu0 %v1128
        %1184 = vmatpush.bf16.msra.mxu0 %v1125
        %1185 = vmatpush.bf16.msra.mxu0 %v1122
        %1186 = vmatpush.bf16.msra.mxu0 %v1119
        %1187 = vmatmul.bf16.gmra.mxu0 %v1005
        %v1188 = vpop.f32.mrf.mxu0
        %v1189 = vadd.f32 %v636, %v1188
        %v1190 = vpop.f32.mrf.mxu0
        %1191 = vdwg.mxu0
        %1192 = vmatpush.bf16.msra.mxu0 %v1141
        %1193 = vmatpush.bf16.msra.mxu0 %v1138
        %1194 = vmatpush.bf16.msra.mxu0 %v1135
        %1195 = vmatpush.bf16.msra.mxu0 %v1132
        %1196 = vmatpush.bf16.msra.mxu0 %v1129
        %1197 = vmatpush.bf16.msra.mxu0 %v1126
        %1198 = vmatpush.bf16.msra.mxu0 %v1123
        %1199 = vmatpush.bf16.msra.mxu0 %v1120
        %1200 = vmatmul.bf16.gmra.mxu0 %v1005
        %v1201 = vpop.f32.mrf.mxu0
        %v1202 = vadd.f32 %v637, %v1201
        %v1203 = vpop.f32.mrf.mxu0
        %1204 = vdwg.mxu0
        %s1205 = scalar_lea.vmem [#allocation3], 2
        %v1206 = vld [vmem:[%s1205] ss:$8 sm:$0x7]
        %v1207 = vadd.f32 %v1206, %v1176
        %v1208 = vxor.u32 %v1207, 2147483648
        %v1209 = vmul.f32 %v1208, 1.442695
        %v1210 = vpow.pop %v1209
        %v1211 = vadd.f32 %v1210, 1.0
        %v1212 = vrcp.pop %v1211
        %v1213 = vmul.f32 %v1211, %v1212
        %v1214 = vsub.f32 1.0, %v1213
        %v1215 = vmul.f32 %v1212, %v1214
        %v1216 = vadd.f32 %v1212, %v1215
        %vm1217 = vweird.f32 %v1211
        %vm1218 = vweird.f32 %v1212
        %vm1219 = vmor %vm1217, %vm1218
        %v1220 = vsel %vm1219, %v1212, %v1216
        %v1221 = vand.u32 2147483647, %v1211
        %vm1222 = vcmp.eq.f32.partialorder %v1221, 8.507059e+37
        %v1223 = vand.u32 %v1211, 2147483648
        %v1224 = vor.u32 1.1754944e-38, %v1223
        %v1225 = vsel %vm1222, %v1224, %v1220
        %v1226 = vmul.f32 1.0, %v1225
        %v1228 = vrot.slane %v1206, 1
        %v1230 = vadd.f32 %v1228, %v1189
        %v1231 = vxor.u32 %v1230, 2147483648
        %v1232 = vmul.f32 %v1231, 1.442695
        %v1233 = vpow.pop %v1232
        %v1234 = vadd.f32 %v1233, 1.0
        %v1235 = vrcp.pop %v1234
        %v1236 = vmul.f32 %v1234, %v1235
        %v1237 = vsub.f32 1.0, %v1236
        %v1238 = vmul.f32 %v1235, %v1237
        %v1239 = vadd.f32 %v1235, %v1238
        %vm1240 = vweird.f32 %v1234
        %vm1241 = vweird.f32 %v1235
        %vm1242 = vmor %vm1240, %vm1241
        %v1243 = vsel %vm1242, %v1235, %v1239
        %v1244 = vand.u32 2147483647, %v1234
        %vm1245 = vcmp.eq.f32.partialorder %v1244, 8.507059e+37
        %v1246 = vand.u32 %v1234, 2147483648
        %v1247 = vor.u32 1.1754944e-38, %v1246
        %v1248 = vsel %vm1245, %v1247, %v1243
        %v1249 = vmul.f32 1.0, %v1248
        %v1250 = vmul.f32 %v1226, %v1202
        %v1251 = vrot.slane %v1206, 2
        %v1253 = vadd.f32 %v1251, %v1250
        %v1254 = vtanh.pop %v1253
        %v1255 = vsub.f32 1.0, %v1249
        %v1256 = vmul.f32 %v1255, %v1254
        %v1257 = vmul.f32 %v1249, %v1004
        %v1258 = vadd.f32 %v1256, %v1257
        %s1259 = sadd.s32 %s733, 2
        %p1260 = scmp.lt.s32.totalorder %s1259, 40
        %s1261 = scalar_select %p1260, 1, 0
        %v1262 = vstv %s1261
        %vm1263 = vcmp.eq.s32.totalorder %v1262, 1
        %v1264 = vsel %vm1263, %v1258, %v1004
        %1265 = vst [vmem:[#allocation2] sm:$0x1] %v1264
        %1266 = vst [vmem:[#allocation4 + $0x2] sm:$0x1] %v1258
        %v1267 = vld [vmem:[#allocation2] sm:$0x1]
        %v1268 = vpack.c.bf16 %v1267, %v1267
        %v1269 = vld [vmem:[#allocation8] sm:$0xff]
        %v1270 = vld [vmem:[#allocation8 + $0x8] sm:$0xf]
        %v1271 = vld [vmem:[#allocation8 + $0xc] sm:$0xff]
        %v1272 = vld [vmem:[#allocation8 + $0x14] sm:$0xf]
        %v1273 = vld [vmem:[#allocation8 + $0x18] sm:$0xff]
        %v1274 = vld [vmem:[#allocation8 + $0x20] sm:$0xf]
        %v1275 = vld [vmem:[#allocation8 + $0x24] sm:$0xff]
        %v1276 = vld [vmem:[#allocation8 + $0x2c] sm:$0xf]
        %v1277 = vld [vmem:[#allocation8 + $0x30] sm:$0xff]
        %v1278 = vld [vmem:[#allocation8 + $0x38] sm:$0xf]
        %v1279 = vld [vmem:[#allocation8 + $0x3c] sm:$0xff]
        %v1280 = vld [vmem:[#allocation8 + $0x44] sm:$0xf]
        %v1281 = vld [vmem:[#allocation8 + $0x48] sm:$0xff]
        %v1282 = vld [vmem:[#allocation8 + $0x50] sm:$0xf]
        %v1283 = vld [vmem:[#allocation8 + $0x54] sm:$0xff]
        %v1284 = vld [vmem:[#allocation8 + $0x5c] sm:$0xf]
        %v1285 = vld [vmem:[#allocation8 + $0x60] sm:$0xff]
        %v1286 = vld [vmem:[#allocation8 + $0x68] sm:$0xf]
        %v1287 = vld [vmem:[#allocation8 + $0x6c] sm:$0xff]
        %v1288 = vld [vmem:[#allocation8 + $0x74] sm:$0xf]
        %v1289 = vld [vmem:[#allocation8 + $0x78] sm:$0xff]
        %v1290 = vld [vmem:[#allocation8 + $0x80] sm:$0xf]
        %v1291 = vld [vmem:[#allocation8 + $0x84] sm:$0xff]
        %v1292 = vld [vmem:[#allocation8 + $0x8c] sm:$0xf]
        %v1293 = vld [vmem:[#allocation8 + $0x90] sm:$0xff]
        %v1294 = vld [vmem:[#allocation8 + $0x98] sm:$0xf]
        %v1295 = vld [vmem:[#allocation8 + $0x9c] sm:$0xff]
        %v1296 = vld [vmem:[#allocation8 + $0xa4] sm:$0xf]
        %v1297 = vld [vmem:[#allocation8 + $0xa8] sm:$0xff]
        %v1298 = vld [vmem:[#allocation8 + $0xb0] sm:$0xf]
        %v1299 = vld [vmem:[#allocation8 + $0xb4] sm:$0xff]
        %v1300 = vld [vmem:[#allocation8 + $0xbc] sm:$0xf]
        %v1333 = vunpack.c.l.b16 %v1269
        %v1334 = vunpack.c.h.b16 %v1269
        %v1335 = vunpack.c.l.b16 %v1270
        %v1336 = vunpack.c.l.b16 %v1271
        %v1337 = vunpack.c.h.b16 %v1271
        %v1338 = vunpack.c.l.b16 %v1272
        %v1339 = vunpack.c.l.b16 %v1273
        %v1340 = vunpack.c.h.b16 %v1273
        %v1341 = vunpack.c.l.b16 %v1274
        %v1342 = vunpack.c.l.b16 %v1275
        %v1343 = vunpack.c.h.b16 %v1275
        %v1344 = vunpack.c.l.b16 %v1276
        %v1345 = vunpack.c.l.b16 %v1277
        %v1346 = vunpack.c.h.b16 %v1277
        %v1347 = vunpack.c.l.b16 %v1278
        %v1348 = vunpack.c.l.b16 %v1279
        %v1349 = vunpack.c.h.b16 %v1279
        %v1350 = vunpack.c.l.b16 %v1280
        %v1351 = vunpack.c.l.b16 %v1281
        %v1352 = vunpack.c.h.b16 %v1281
        %v1353 = vunpack.c.l.b16 %v1282
        %v1354 = vunpack.c.l.b16 %v1283
        %v1355 = vunpack.c.h.b16 %v1283
        %v1356 = vunpack.c.l.b16 %v1284
        %v1357 = vunpack.c.l.b16 %v1285
        %v1358 = vunpack.c.h.b16 %v1285
        %v1359 = vunpack.c.l.b16 %v1286
        %v1360 = vunpack.c.l.b16 %v1287
        %v1361 = vunpack.c.h.b16 %v1287
        %v1362 = vunpack.c.l.b16 %v1288
        %v1363 = vunpack.c.l.b16 %v1289
        %v1364 = vunpack.c.h.b16 %v1289
        %v1365 = vunpack.c.l.b16 %v1290
        %v1366 = vunpack.c.l.b16 %v1291
        %v1367 = vunpack.c.h.b16 %v1291
        %v1368 = vunpack.c.l.b16 %v1292
        %v1369 = vunpack.c.l.b16 %v1293
        %v1370 = vunpack.c.h.b16 %v1293
        %v1371 = vunpack.c.l.b16 %v1294
        %v1372 = vunpack.c.l.b16 %v1295
        %v1373 = vunpack.c.h.b16 %v1295
        %v1374 = vunpack.c.l.b16 %v1296
        %v1375 = vunpack.c.l.b16 %v1297
        %v1376 = vunpack.c.h.b16 %v1297
        %v1377 = vunpack.c.l.b16 %v1298
        %v1378 = vunpack.c.l.b16 %v1299
        %v1379 = vunpack.c.h.b16 %v1299
        %v1380 = vunpack.c.l.b16 %v1300
        %v1381 = vpack.c.b16 %v1336, %v1333
        %v1382 = vpack.c.b16 %v1337, %v1334
        %v1383 = vpack.c.b16 %v1338, %v1335
        %v1384 = vpack.c.b16 %v1342, %v1339
        %v1385 = vpack.c.b16 %v1343, %v1340
        %v1386 = vpack.c.b16 %v1344, %v1341
        %v1387 = vpack.c.b16 %v1348, %v1345
        %v1388 = vpack.c.b16 %v1349, %v1346
        %v1389 = vpack.c.b16 %v1350, %v1347
        %v1390 = vpack.c.b16 %v1354, %v1351
        %v1391 = vpack.c.b16 %v1355, %v1352
        %v1392 = vpack.c.b16 %v1356, %v1353
        %v1393 = vpack.c.b16 %v1360, %v1357
        %v1394 = vpack.c.b16 %v1361, %v1358
        %v1395 = vpack.c.b16 %v1362, %v1359
        %v1396 = vpack.c.b16 %v1366, %v1363
        %v1397 = vpack.c.b16 %v1367, %v1364
        %v1398 = vpack.c.b16 %v1368, %v1365
        %v1399 = vpack.c.b16 %v1372, %v1369
        %v1400 = vpack.c.b16 %v1373, %v1370
        %v1401 = vpack.c.b16 %v1374, %v1371
        %v1402 = vpack.c.b16 %v1378, %v1375
        %v1403 = vpack.c.b16 %v1379, %v1376
        %v1404 = vpack.c.b16 %v1380, %v1377
        %1429 = vmatpush.bf16.msra.mxu0 %v1402
        %1430 = vmatpush.bf16.msra.mxu0 %v1399
        %1431 = vmatpush.bf16.msra.mxu0 %v1396
        %1432 = vmatpush.bf16.msra.mxu0 %v1393
        %1433 = vmatpush.bf16.msra.mxu0 %v1390
        %1434 = vmatpush.bf16.msra.mxu0 %v1387
        %1435 = vmatpush.bf16.msra.mxu0 %v1384
        %1436 = vmatpush.bf16.msra.mxu0 %v1381
        %1437 = vmatmul.bf16.gmra.mxu0 %v1268
        %v1438 = vpop.f32.mrf.mxu0
        %v1439 = vadd.f32 %v635, %v1438
        %v1440 = vpop.f32.mrf.mxu0
        %1441 = vdwg.mxu0
        %1442 = vmatpush.bf16.msra.mxu0 %v1403
        %1443 = vmatpush.bf16.msra.mxu0 %v1400
        %1444 = vmatpush.bf16.msra.mxu0 %v1397
        %1445 = vmatpush.bf16.msra.mxu0 %v1394
        %1446 = vmatpush.bf16.msra.mxu0 %v1391
        %1447 = vmatpush.bf16.msra.mxu0 %v1388
        %1448 = vmatpush.bf16.msra.mxu0 %v1385
        %1449 = vmatpush.bf16.msra.mxu0 %v1382
        %1450 = vmatmul.bf16.gmra.mxu0 %v1268
        %v1451 = vpop.f32.mrf.mxu0
        %v1452 = vadd.f32 %v636, %v1451
        %v1453 = vpop.f32.mrf.mxu0
        %1454 = vdwg.mxu0
        %1455 = vmatpush.bf16.msra.mxu0 %v1404
        %1456 = vmatpush.bf16.msra.mxu0 %v1401
        %1457 = vmatpush.bf16.msra.mxu0 %v1398
        %1458 = vmatpush.bf16.msra.mxu0 %v1395
        %1459 = vmatpush.bf16.msra.mxu0 %v1392
        %1460 = vmatpush.bf16.msra.mxu0 %v1389
        %1461 = vmatpush.bf16.msra.mxu0 %v1386
        %1462 = vmatpush.bf16.msra.mxu0 %v1383
        %1463 = vmatmul.bf16.gmra.mxu0 %v1268
        %v1464 = vpop.f32.mrf.mxu0
        %v1465 = vadd.f32 %v637, %v1464
        %v1466 = vpop.f32.mrf.mxu0
        %1467 = vdwg.mxu0
        %s1468 = scalar_lea.vmem [#allocation3], 3
        %v1469 = vld [vmem:[%s1468] ss:$8 sm:$0x7]
        %v1470 = vadd.f32 %v1469, %v1439
        %v1471 = vxor.u32 %v1470, 2147483648
        %v1472 = vmul.f32 %v1471, 1.442695
        %v1473 = vpow.pop %v1472
        %v1474 = vadd.f32 %v1473, 1.0
        %v1475 = vrcp.pop %v1474
        %v1476 = vmul.f32 %v1474, %v1475
        %v1477 = vsub.f32 1.0, %v1476
        %v1478 = vmul.f32 %v1475, %v1477
        %v1479 = vadd.f32 %v1475, %v1478
        %vm1480 = vweird.f32 %v1474
        %vm1481 = vweird.f32 %v1475
        %vm1482 = vmor %vm1480, %vm1481
        %v1483 = vsel %vm1482, %v1475, %v1479
        %v1484 = vand.u32 2147483647, %v1474
        %vm1485 = vcmp.eq.f32.partialorder %v1484, 8.507059e+37
        %v1486 = vand.u32 %v1474, 2147483648
        %v1487 = vor.u32 1.1754944e-38, %v1486
        %v1488 = vsel %vm1485, %v1487, %v1483
        %v1489 = vmul.f32 1.0, %v1488
        %v1491 = vrot.slane %v1469, 1
        %v1493 = vadd.f32 %v1491, %v1452
        %v1494 = vxor.u32 %v1493, 2147483648
        %v1495 = vmul.f32 %v1494, 1.442695
        %v1496 = vpow.pop %v1495
        %v1497 = vadd.f32 %v1496, 1.0
        %v1498 = vrcp.pop %v1497
        %v1499 = vmul.f32 %v1497, %v1498
        %v1500 = vsub.f32 1.0, %v1499
        %v1501 = vmul.f32 %v1498, %v1500
        %v1502 = vadd.f32 %v1498, %v1501
        %vm1503 = vweird.f32 %v1497
        %vm1504 = vweird.f32 %v1498
        %vm1505 = vmor %vm1503, %vm1504
        %v1506 = vsel %vm1505, %v1498, %v1502
        %v1507 = vand.u32 2147483647, %v1497
        %vm1508 = vcmp.eq.f32.partialorder %v1507, 8.507059e+37
        %v1509 = vand.u32 %v1497, 2147483648
        %v1510 = vor.u32 1.1754944e-38, %v1509
        %v1511 = vsel %vm1508, %v1510, %v1506
        %v1512 = vmul.f32 1.0, %v1511
        %v1513 = vmul.f32 %v1489, %v1465
        %v1514 = vrot.slane %v1469, 2
        %v1516 = vadd.f32 %v1514, %v1513
        %v1517 = vtanh.pop %v1516
        %v1518 = vsub.f32 1.0, %v1512
        %v1519 = vmul.f32 %v1518, %v1517
        %v1520 = vmul.f32 %v1512, %v1267
        %v1521 = vadd.f32 %v1519, %v1520
        %s1522 = sadd.s32 %s733, 3
        %p1523 = scmp.lt.s32.totalorder %s1522, 40
        %s1524 = scalar_select %p1523, 1, 0
        %v1525 = vstv %s1524
        %vm1526 = vcmp.eq.s32.totalorder %v1525, 1
        %v1527 = vsel %vm1526, %v1521, %v1267
        %1528 = vst [vmem:[#allocation2] sm:$0x1] %v1527
        %1529 = vst [vmem:[#allocation4 + $0x3] sm:$0x1] %v1521
        %v1530 = vld [vmem:[#allocation2] sm:$0x1]
        %v1531 = vpack.c.bf16 %v1530, %v1530
        %v1532 = vld [vmem:[#allocation8] sm:$0xff]
        %v1533 = vld [vmem:[#allocation8 + $0x8] sm:$0xf]
        %v1534 = vld [vmem:[#allocation8 + $0xc] sm:$0xff]
        %v1535 = vld [vmem:[#allocation8 + $0x14] sm:$0xf]
        %v1536 = vld [vmem:[#allocation8 + $0x18] sm:$0xff]
        %v1537 = vld [vmem:[#allocation8 + $0x20] sm:$0xf]
        %v1538 = vld [vmem:[#allocation8 + $0x24] sm:$0xff]
        %v1539 = vld [vmem:[#allocation8 + $0x2c] sm:$0xf]
        %v1540 = vld [vmem:[#allocation8 + $0x30] sm:$0xff]
        %v1541 = vld [vmem:[#allocation8 + $0x38] sm:$0xf]
        %v1542 = vld [vmem:[#allocation8 + $0x3c] sm:$0xff]
        %v1543 = vld [vmem:[#allocation8 + $0x44] sm:$0xf]
        %v1544 = vld [vmem:[#allocation8 + $0x48] sm:$0xff]
        %v1545 = vld [vmem:[#allocation8 + $0x50] sm:$0xf]
        %v1546 = vld [vmem:[#allocation8 + $0x54] sm:$0xff]
        %v1547 = vld [vmem:[#allocation8 + $0x5c] sm:$0xf]
        %v1548 = vld [vmem:[#allocation8 + $0x60] sm:$0xff]
        %v1549 = vld [vmem:[#allocation8 + $0x68] sm:$0xf]
        %v1550 = vld [vmem:[#allocation8 + $0x6c] sm:$0xff]
        %v1551 = vld [vmem:[#allocation8 + $0x74] sm:$0xf]
        %v1552 = vld [vmem:[#allocation8 + $0x78] sm:$0xff]
        %v1553 = vld [vmem:[#allocation8 + $0x80] sm:$0xf]
        %v1554 = vld [vmem:[#allocation8 + $0x84] sm:$0xff]
        %v1555 = vld [vmem:[#allocation8 + $0x8c] sm:$0xf]
        %v1556 = vld [vmem:[#allocation8 + $0x90] sm:$0xff]
        %v1557 = vld [vmem:[#allocation8 + $0x98] sm:$0xf]
        %v1558 = vld [vmem:[#allocation8 + $0x9c] sm:$0xff]
        %v1559 = vld [vmem:[#allocation8 + $0xa4] sm:$0xf]
        %v1560 = vld [vmem:[#allocation8 + $0xa8] sm:$0xff]
        %v1561 = vld [vmem:[#allocation8 + $0xb0] sm:$0xf]
        %v1562 = vld [vmem:[#allocation8 + $0xb4] sm:$0xff]
        %v1563 = vld [vmem:[#allocation8 + $0xbc] sm:$0xf]
        %v1596 = vunpack.c.l.b16 %v1532
        %v1597 = vunpack.c.h.b16 %v1532
        %v1598 = vunpack.c.l.b16 %v1533
        %v1599 = vunpack.c.l.b16 %v1534
        %v1600 = vunpack.c.h.b16 %v1534
        %v1601 = vunpack.c.l.b16 %v1535
        %v1602 = vunpack.c.l.b16 %v1536
        %v1603 = vunpack.c.h.b16 %v1536
        %v1604 = vunpack.c.l.b16 %v1537
        %v1605 = vunpack.c.l.b16 %v1538
        %v1606 = vunpack.c.h.b16 %v1538
        %v1607 = vunpack.c.l.b16 %v1539
        %v1608 = vunpack.c.l.b16 %v1540
        %v1609 = vunpack.c.h.b16 %v1540
        %v1610 = vunpack.c.l.b16 %v1541
        %v1611 = vunpack.c.l.b16 %v1542
        %v1612 = vunpack.c.h.b16 %v1542
        %v1613 = vunpack.c.l.b16 %v1543
        %v1614 = vunpack.c.l.b16 %v1544
        %v1615 = vunpack.c.h.b16 %v1544
        %v1616 = vunpack.c.l.b16 %v1545
        %v1617 = vunpack.c.l.b16 %v1546
        %v1618 = vunpack.c.h.b16 %v1546
        %v1619 = vunpack.c.l.b16 %v1547
        %v1620 = vunpack.c.l.b16 %v1548
        %v1621 = vunpack.c.h.b16 %v1548
        %v1622 = vunpack.c.l.b16 %v1549
        %v1623 = vunpack.c.l.b16 %v1550
        %v1624 = vunpack.c.h.b16 %v1550
        %v1625 = vunpack.c.l.b16 %v1551
        %v1626 = vunpack.c.l.b16 %v1552
        %v1627 = vunpack.c.h.b16 %v1552
        %v1628 = vunpack.c.l.b16 %v1553
        %v1629 = vunpack.c.l.b16 %v1554
        %v1630 = vunpack.c.h.b16 %v1554
        %v1631 = vunpack.c.l.b16 %v1555
        %v1632 = vunpack.c.l.b16 %v1556
        %v1633 = vunpack.c.h.b16 %v1556
        %v1634 = vunpack.c.l.b16 %v1557
        %v1635 = vunpack.c.l.b16 %v1558
        %v1636 = vunpack.c.h.b16 %v1558
        %v1637 = vunpack.c.l.b16 %v1559
        %v1638 = vunpack.c.l.b16 %v1560
        %v1639 = vunpack.c.h.b16 %v1560
        %v1640 = vunpack.c.l.b16 %v1561
        %v1641 = vunpack.c.l.b16 %v1562
        %v1642 = vunpack.c.h.b16 %v1562
        %v1643 = vunpack.c.l.b16 %v1563
        %v1644 = vpack.c.b16 %v1599, %v1596
        %v1645 = vpack.c.b16 %v1600, %v1597
        %v1646 = vpack.c.b16 %v1601, %v1598
        %v1647 = vpack.c.b16 %v1605, %v1602
        %v1648 = vpack.c.b16 %v1606, %v1603
        %v1649 = vpack.c.b16 %v1607, %v1604
        %v1650 = vpack.c.b16 %v1611, %v1608
        %v1651 = vpack.c.b16 %v1612, %v1609
        %v1652 = vpack.c.b16 %v1613, %v1610
        %v1653 = vpack.c.b16 %v1617, %v1614
        %v1654 = vpack.c.b16 %v1618, %v1615
        %v1655 = vpack.c.b16 %v1619, %v1616
        %v1656 = vpack.c.b16 %v1623, %v1620
        %v1657 = vpack.c.b16 %v1624, %v1621
        %v1658 = vpack.c.b16 %v1625, %v1622
        %v1659 = vpack.c.b16 %v1629, %v1626
        %v1660 = vpack.c.b16 %v1630, %v1627
        %v1661 = vpack.c.b16 %v1631, %v1628
        %v1662 = vpack.c.b16 %v1635, %v1632
        %v1663 = vpack.c.b16 %v1636, %v1633
        %v1664 = vpack.c.b16 %v1637, %v1634
        %v1665 = vpack.c.b16 %v1641, %v1638
        %v1666 = vpack.c.b16 %v1642, %v1639
        %v1667 = vpack.c.b16 %v1643, %v1640
        %1692 = vmatpush.bf16.msra.mxu0 %v1665
        %1693 = vmatpush.bf16.msra.mxu0 %v1662
        %1694 = vmatpush.bf16.msra.mxu0 %v1659
        %1695 = vmatpush.bf16.msra.mxu0 %v1656
        %1696 = vmatpush.bf16.msra.mxu0 %v1653
        %1697 = vmatpush.bf16.msra.mxu0 %v1650
        %1698 = vmatpush.bf16.msra.mxu0 %v1647
        %1699 = vmatpush.bf16.msra.mxu0 %v1644
        %1700 = vmatmul.bf16.gmra.mxu0 %v1531
        %v1701 = vpop.f32.mrf.mxu0
        %v1702 = vadd.f32 %v635, %v1701
        %v1703 = vpop.f32.mrf.mxu0
        %1704 = vdwg.mxu0
        %1705 = vmatpush.bf16.msra.mxu0 %v1666
        %1706 = vmatpush.bf16.msra.mxu0 %v1663
        %1707 = vmatpush.bf16.msra.mxu0 %v1660
        %1708 = vmatpush.bf16.msra.mxu0 %v1657
        %1709 = vmatpush.bf16.msra.mxu0 %v1654
        %1710 = vmatpush.bf16.msra.mxu0 %v1651
        %1711 = vmatpush.bf16.msra.mxu0 %v1648
        %1712 = vmatpush.bf16.msra.mxu0 %v1645
        %1713 = vmatmul.bf16.gmra.mxu0 %v1531
        %v1714 = vpop.f32.mrf.mxu0
        %v1715 = vadd.f32 %v636, %v1714
        %v1716 = vpop.f32.mrf.mxu0
        %1717 = vdwg.mxu0
        %1718 = vmatpush.bf16.msra.mxu0 %v1667
        %1719 = vmatpush.bf16.msra.mxu0 %v1664
        %1720 = vmatpush.bf16.msra.mxu0 %v1661
        %1721 = vmatpush.bf16.msra.mxu0 %v1658
        %1722 = vmatpush.bf16.msra.mxu0 %v1655
        %1723 = vmatpush.bf16.msra.mxu0 %v1652
        %1724 = vmatpush.bf16.msra.mxu0 %v1649
        %1725 = vmatpush.bf16.msra.mxu0 %v1646
        %1726 = vmatmul.bf16.gmra.mxu0 %v1531
        %v1727 = vpop.f32.mrf.mxu0
        %v1728 = vadd.f32 %v637, %v1727
        %v1729 = vpop.f32.mrf.mxu0
        %1730 = vdwg.mxu0
        %s1731 = scalar_lea.vmem [#allocation3], 4
        %v1732 = vld [vmem:[%s1731] ss:$8 sm:$0x7]
        %v1733 = vadd.f32 %v1732, %v1702
        %v1734 = vxor.u32 %v1733, 2147483648
        %v1735 = vmul.f32 %v1734, 1.442695
        %v1736 = vpow.pop %v1735
        %v1737 = vadd.f32 %v1736, 1.0
        %v1738 = vrcp.pop %v1737
        %v1739 = vmul.f32 %v1737, %v1738
        %v1740 = vsub.f32 1.0, %v1739
        %v1741 = vmul.f32 %v1738, %v1740
        %v1742 = vadd.f32 %v1738, %v1741
        %vm1743 = vweird.f32 %v1737
        %vm1744 = vweird.f32 %v1738
        %vm1745 = vmor %vm1743, %vm1744
        %v1746 = vsel %vm1745, %v1738, %v1742
        %v1747 = vand.u32 2147483647, %v1737
        %vm1748 = vcmp.eq.f32.partialorder %v1747, 8.507059e+37
        %v1749 = vand.u32 %v1737, 2147483648
        %v1750 = vor.u32 1.1754944e-38, %v1749
        %v1751 = vsel %vm1748, %v1750, %v1746
        %v1752 = vmul.f32 1.0, %v1751
        %v1754 = vrot.slane %v1732, 1
        %v1756 = vadd.f32 %v1754, %v1715
        %v1757 = vxor.u32 %v1756, 2147483648
        %v1758 = vmul.f32 %v1757, 1.442695
        %v1759 = vpow.pop %v1758
        %v1760 = vadd.f32 %v1759, 1.0
        %v1761 = vrcp.pop %v1760
        %v1762 = vmul.f32 %v1760, %v1761
        %v1763 = vsub.f32 1.0, %v1762
        %v1764 = vmul.f32 %v1761, %v1763
        %v1765 = vadd.f32 %v1761, %v1764
        %vm1766 = vweird.f32 %v1760
        %vm1767 = vweird.f32 %v1761
        %vm1768 = vmor %vm1766, %vm1767
        %v1769 = vsel %vm1768, %v1761, %v1765
        %v1770 = vand.u32 2147483647, %v1760
        %vm1771 = vcmp.eq.f32.partialorder %v1770, 8.507059e+37
        %v1772 = vand.u32 %v1760, 2147483648
        %v1773 = vor.u32 1.1754944e-38, %v1772
        %v1774 = vsel %vm1771, %v1773, %v1769
        %v1775 = vmul.f32 1.0, %v1774
        %v1776 = vmul.f32 %v1752, %v1728
        %v1777 = vrot.slane %v1732, 2
        %v1779 = vadd.f32 %v1777, %v1776
        %v1780 = vtanh.pop %v1779
        %v1781 = vsub.f32 1.0, %v1775
        %v1782 = vmul.f32 %v1781, %v1780
        %v1783 = vmul.f32 %v1775, %v1530
        %v1784 = vadd.f32 %v1782, %v1783
        %s1785 = sadd.s32 %s733, 4
        %p1786 = scmp.lt.s32.totalorder %s1785, 40
        %s1787 = scalar_select %p1786, 1, 0
        %v1788 = vstv %s1787
        %vm1789 = vcmp.eq.s32.totalorder %v1788, 1
        %v1790 = vsel %vm1789, %v1784, %v1530
        %1791 = vst [vmem:[#allocation2] sm:$0x1] %v1790
        %1792 = vst [vmem:[#allocation4 + $0x4] sm:$0x1] %v1784
        %v1793 = vld [vmem:[#allocation2] sm:$0x1]
        %v1794 = vpack.c.bf16 %v1793, %v1793
        %v1795 = vld [vmem:[#allocation8] sm:$0xff]
        %v1796 = vld [vmem:[#allocation8 + $0x8] sm:$0xf]
        %v1797 = vld [vmem:[#allocation8 + $0xc] sm:$0xff]
        %v1798 = vld [vmem:[#allocation8 + $0x14] sm:$0xf]
        %v1799 = vld [vmem:[#allocation8 + $0x18] sm:$0xff]
        %v1800 = vld [vmem:[#allocation8 + $0x20] sm:$0xf]
        %v1801 = vld [vmem:[#allocation8 + $0x24] sm:$0xff]
        %v1802 = vld [vmem:[#allocation8 + $0x2c] sm:$0xf]
        %v1803 = vld [vmem:[#allocation8 + $0x30] sm:$0xff]
        %v1804 = vld [vmem:[#allocation8 + $0x38] sm:$0xf]
        %v1805 = vld [vmem:[#allocation8 + $0x3c] sm:$0xff]
        %v1806 = vld [vmem:[#allocation8 + $0x44] sm:$0xf]
        %v1807 = vld [vmem:[#allocation8 + $0x48] sm:$0xff]
        %v1808 = vld [vmem:[#allocation8 + $0x50] sm:$0xf]
        %v1809 = vld [vmem:[#allocation8 + $0x54] sm:$0xff]
        %v1810 = vld [vmem:[#allocation8 + $0x5c] sm:$0xf]
        %v1811 = vld [vmem:[#allocation8 + $0x60] sm:$0xff]
        %v1812 = vld [vmem:[#allocation8 + $0x68] sm:$0xf]
        %v1813 = vld [vmem:[#allocation8 + $0x6c] sm:$0xff]
        %v1814 = vld [vmem:[#allocation8 + $0x74] sm:$0xf]
        %v1815 = vld [vmem:[#allocation8 + $0x78] sm:$0xff]
        %v1816 = vld [vmem:[#allocation8 + $0x80] sm:$0xf]
        %v1817 = vld [vmem:[#allocation8 + $0x84] sm:$0xff]
        %v1818 = vld [vmem:[#allocation8 + $0x8c] sm:$0xf]
        %v1819 = vld [vmem:[#allocation8 + $0x90] sm:$0xff]
        %v1820 = vld [vmem:[#allocation8 + $0x98] sm:$0xf]
        %v1821 = vld [vmem:[#allocation8 + $0x9c] sm:$0xff]
        %v1822 = vld [vmem:[#allocation8 + $0xa4] sm:$0xf]
        %v1823 = vld [vmem:[#allocation8 + $0xa8] sm:$0xff]
        %v1824 = vld [vmem:[#allocation8 + $0xb0] sm:$0xf]
        %v1825 = vld [vmem:[#allocation8 + $0xb4] sm:$0xff]
        %v1826 = vld [vmem:[#allocation8 + $0xbc] sm:$0xf]
        %v1859 = vunpack.c.l.b16 %v1795
        %v1860 = vunpack.c.h.b16 %v1795
        %v1861 = vunpack.c.l.b16 %v1796
        %v1862 = vunpack.c.l.b16 %v1797
        %v1863 = vunpack.c.h.b16 %v1797
        %v1864 = vunpack.c.l.b16 %v1798
        %v1865 = vunpack.c.l.b16 %v1799
        %v1866 = vunpack.c.h.b16 %v1799
        %v1867 = vunpack.c.l.b16 %v1800
        %v1868 = vunpack.c.l.b16 %v1801
        %v1869 = vunpack.c.h.b16 %v1801
        %v1870 = vunpack.c.l.b16 %v1802
        %v1871 = vunpack.c.l.b16 %v1803
        %v1872 = vunpack.c.h.b16 %v1803
        %v1873 = vunpack.c.l.b16 %v1804
        %v1874 = vunpack.c.l.b16 %v1805
        %v1875 = vunpack.c.h.b16 %v1805
        %v1876 = vunpack.c.l.b16 %v1806
        %v1877 = vunpack.c.l.b16 %v1807
        %v1878 = vunpack.c.h.b16 %v1807
        %v1879 = vunpack.c.l.b16 %v1808
        %v1880 = vunpack.c.l.b16 %v1809
        %v1881 = vunpack.c.h.b16 %v1809
        %v1882 = vunpack.c.l.b16 %v1810
        %v1883 = vunpack.c.l.b16 %v1811
        %v1884 = vunpack.c.h.b16 %v1811
        %v1885 = vunpack.c.l.b16 %v1812
        %v1886 = vunpack.c.l.b16 %v1813
        %v1887 = vunpack.c.h.b16 %v1813
        %v1888 = vunpack.c.l.b16 %v1814
        %v1889 = vunpack.c.l.b16 %v1815
        %v1890 = vunpack.c.h.b16 %v1815
        %v1891 = vunpack.c.l.b16 %v1816
        %v1892 = vunpack.c.l.b16 %v1817
        %v1893 = vunpack.c.h.b16 %v1817
        %v1894 = vunpack.c.l.b16 %v1818
        %v1895 = vunpack.c.l.b16 %v1819
        %v1896 = vunpack.c.h.b16 %v1819
        %v1897 = vunpack.c.l.b16 %v1820
        %v1898 = vunpack.c.l.b16 %v1821
        %v1899 = vunpack.c.h.b16 %v1821
        %v1900 = vunpack.c.l.b16 %v1822
        %v1901 = vunpack.c.l.b16 %v1823
        %v1902 = vunpack.c.h.b16 %v1823
        %v1903 = vunpack.c.l.b16 %v1824
        %v1904 = vunpack.c.l.b16 %v1825
        %v1905 = vunpack.c.h.b16 %v1825
        %v1906 = vunpack.c.l.b16 %v1826
        %v1907 = vpack.c.b16 %v1862, %v1859
        %v1908 = vpack.c.b16 %v1863, %v1860
        %v1909 = vpack.c.b16 %v1864, %v1861
        %v1910 = vpack.c.b16 %v1868, %v1865
        %v1911 = vpack.c.b16 %v1869, %v1866
        %v1912 = vpack.c.b16 %v1870, %v1867
        %v1913 = vpack.c.b16 %v1874, %v1871
        %v1914 = vpack.c.b16 %v1875, %v1872
        %v1915 = vpack.c.b16 %v1876, %v1873
        %v1916 = vpack.c.b16 %v1880, %v1877
        %v1917 = vpack.c.b16 %v1881, %v1878
        %v1918 = vpack.c.b16 %v1882, %v1879
        %v1919 = vpack.c.b16 %v1886, %v1883
        %v1920 = vpack.c.b16 %v1887, %v1884
        %v1921 = vpack.c.b16 %v1888, %v1885
        %v1922 = vpack.c.b16 %v1892, %v1889
        %v1923 = vpack.c.b16 %v1893, %v1890
        %v1924 = vpack.c.b16 %v1894, %v1891
        %v1925 = vpack.c.b16 %v1898, %v1895
        %v1926 = vpack.c.b16 %v1899, %v1896
        %v1927 = vpack.c.b16 %v1900, %v1897
        %v1928 = vpack.c.b16 %v1904, %v1901
        %v1929 = vpack.c.b16 %v1905, %v1902
        %v1930 = vpack.c.b16 %v1906, %v1903
        %1955 = vmatpush.bf16.msra.mxu0 %v1928
        %1956 = vmatpush.bf16.msra.mxu0 %v1925
        %1957 = vmatpush.bf16.msra.mxu0 %v1922
        %1958 = vmatpush.bf16.msra.mxu0 %v1919
        %1959 = vmatpush.bf16.msra.mxu0 %v1916
        %1960 = vmatpush.bf16.msra.mxu0 %v1913
        %1961 = vmatpush.bf16.msra.mxu0 %v1910
        %1962 = vmatpush.bf16.msra.mxu0 %v1907
        %1963 = vmatmul.bf16.gmra.mxu0 %v1794
        %v1964 = vpop.f32.mrf.mxu0
        %v1965 = vadd.f32 %v635, %v1964
        %v1966 = vpop.f32.mrf.mxu0
        %1967 = vdwg.mxu0
        %1968 = vmatpush.bf16.msra.mxu0 %v1929
        %1969 = vmatpush.bf16.msra.mxu0 %v1926
        %1970 = vmatpush.bf16.msra.mxu0 %v1923
        %1971 = vmatpush.bf16.msra.mxu0 %v1920
        %1972 = vmatpush.bf16.msra.mxu0 %v1917
        %1973 = vmatpush.bf16.msra.mxu0 %v1914
        %1974 = vmatpush.bf16.msra.mxu0 %v1911
        %1975 = vmatpush.bf16.msra.mxu0 %v1908
        %1976 = vmatmul.bf16.gmra.mxu0 %v1794
        %v1977 = vpop.f32.mrf.mxu0
        %v1978 = vadd.f32 %v636, %v1977
        %v1979 = vpop.f32.mrf.mxu0
        %1980 = vdwg.mxu0
        %1981 = vmatpush.bf16.msra.mxu0 %v1930
        %1982 = vmatpush.bf16.msra.mxu0 %v1927
        %1983 = vmatpush.bf16.msra.mxu0 %v1924
        %1984 = vmatpush.bf16.msra.mxu0 %v1921
        %1985 = vmatpush.bf16.msra.mxu0 %v1918
        %1986 = vmatpush.bf16.msra.mxu0 %v1915
        %1987 = vmatpush.bf16.msra.mxu0 %v1912
        %1988 = vmatpush.bf16.msra.mxu0 %v1909
        %1989 = vmatmul.bf16.gmra.mxu0 %v1794
        %v1990 = vpop.f32.mrf.mxu0
        %v1991 = vadd.f32 %v637, %v1990
        %v1992 = vpop.f32.mrf.mxu0
        %1993 = vdwg.mxu0
        %s1994 = scalar_lea.vmem [#allocation3], 5
        %v1995 = vld [vmem:[%s1994] ss:$8 sm:$0x7]
        %v1996 = vadd.f32 %v1995, %v1965
        %v1997 = vxor.u32 %v1996, 2147483648
        %v1998 = vmul.f32 %v1997, 1.442695
        %v1999 = vpow.pop %v1998
        %v2000 = vadd.f32 %v1999, 1.0
        %v2001 = vrcp.pop %v2000
        %v2002 = vmul.f32 %v2000, %v2001
        %v2003 = vsub.f32 1.0, %v2002
        %v2004 = vmul.f32 %v2001, %v2003
        %v2005 = vadd.f32 %v2001, %v2004
        %vm2006 = vweird.f32 %v2000
        %vm2007 = vweird.f32 %v2001
        %vm2008 = vmor %vm2006, %vm2007
        %v2009 = vsel %vm2008, %v2001, %v2005
        %v2010 = vand.u32 2147483647, %v2000
        %vm2011 = vcmp.eq.f32.partialorder %v2010, 8.507059e+37
        %v2012 = vand.u32 %v2000, 2147483648
        %v2013 = vor.u32 1.1754944e-38, %v2012
        %v2014 = vsel %vm2011, %v2013, %v2009
        %v2015 = vmul.f32 1.0, %v2014
        %v2017 = vrot.slane %v1995, 1
        %v2019 = vadd.f32 %v2017, %v1978
        %v2020 = vxor.u32 %v2019, 2147483648
        %v2021 = vmul.f32 %v2020, 1.442695
        %v2022 = vpow.pop %v2021
        %v2023 = vadd.f32 %v2022, 1.0
        %v2024 = vrcp.pop %v2023
        %v2025 = vmul.f32 %v2023, %v2024
        %v2026 = vsub.f32 1.0, %v2025
        %v2027 = vmul.f32 %v2024, %v2026
        %v2028 = vadd.f32 %v2024, %v2027
        %vm2029 = vweird.f32 %v2023
        %vm2030 = vweird.f32 %v2024
        %vm2031 = vmor %vm2029, %vm2030
        %v2032 = vsel %vm2031, %v2024, %v2028
        %v2033 = vand.u32 2147483647, %v2023
        %vm2034 = vcmp.eq.f32.partialorder %v2033, 8.507059e+37
        %v2035 = vand.u32 %v2023, 2147483648
        %v2036 = vor.u32 1.1754944e-38, %v2035
        %v2037 = vsel %vm2034, %v2036, %v2032
        %v2038 = vmul.f32 1.0, %v2037
        %v2039 = vmul.f32 %v2015, %v1991
        %v2040 = vrot.slane %v1995, 2
        %v2042 = vadd.f32 %v2040, %v2039
        %v2043 = vtanh.pop %v2042
        %v2044 = vsub.f32 1.0, %v2038
        %v2045 = vmul.f32 %v2044, %v2043
        %v2046 = vmul.f32 %v2038, %v1793
        %v2047 = vadd.f32 %v2045, %v2046
        %s2048 = sadd.s32 %s733, 5
        %p2049 = scmp.lt.s32.totalorder %s2048, 40
        %s2050 = scalar_select %p2049, 1, 0
        %v2051 = vstv %s2050
        %vm2052 = vcmp.eq.s32.totalorder %v2051, 1
        %v2053 = vsel %vm2052, %v2047, %v1793
        %2054 = vst [vmem:[#allocation2] sm:$0x1] %v2053
        %2055 = vst [vmem:[#allocation4 + $0x5] sm:$0x1] %v2047
        %v2056 = vld [vmem:[#allocation2] sm:$0x1]
        %v2057 = vpack.c.bf16 %v2056, %v2056
        %v2058 = vld [vmem:[#allocation8] sm:$0xff]
        %v2059 = vld [vmem:[#allocation8 + $0x8] sm:$0xf]
        %v2060 = vld [vmem:[#allocation8 + $0xc] sm:$0xff]
        %v2061 = vld [vmem:[#allocation8 + $0x14] sm:$0xf]
        %v2062 = vld [vmem:[#allocation8 + $0x18] sm:$0xff]
        %v2063 = vld [vmem:[#allocation8 + $0x20] sm:$0xf]
        %v2064 = vld [vmem:[#allocation8 + $0x24] sm:$0xff]
        %v2065 = vld [vmem:[#allocation8 + $0x2c] sm:$0xf]
        %v2066 = vld [vmem:[#allocation8 + $0x30] sm:$0xff]
        %v2067 = vld [vmem:[#allocation8 + $0x38] sm:$0xf]
        %v2068 = vld [vmem:[#allocation8 + $0x3c] sm:$0xff]
        %v2069 = vld [vmem:[#allocation8 + $0x44] sm:$0xf]
        %v2070 = vld [vmem:[#allocation8 + $0x48] sm:$0xff]
        %v2071 = vld [vmem:[#allocation8 + $0x50] sm:$0xf]
        %v2072 = vld [vmem:[#allocation8 + $0x54] sm:$0xff]
        %v2073 = vld [vmem:[#allocation8 + $0x5c] sm:$0xf]
        %v2074 = vld [vmem:[#allocation8 + $0x60] sm:$0xff]
        %v2075 = vld [vmem:[#allocation8 + $0x68] sm:$0xf]
        %v2076 = vld [vmem:[#allocation8 + $0x6c] sm:$0xff]
        %v2077 = vld [vmem:[#allocation8 + $0x74] sm:$0xf]
        %v2078 = vld [vmem:[#allocation8 + $0x78] sm:$0xff]
        %v2079 = vld [vmem:[#allocation8 + $0x80] sm:$0xf]
        %v2080 = vld [vmem:[#allocation8 + $0x84] sm:$0xff]
        %v2081 = vld [vmem:[#allocation8 + $0x8c] sm:$0xf]
        %v2082 = vld [vmem:[#allocation8 + $0x90] sm:$0xff]
        %v2083 = vld [vmem:[#allocation8 + $0x98] sm:$0xf]
        %v2084 = vld [vmem:[#allocation8 + $0x9c] sm:$0xff]
        %v2085 = vld [vmem:[#allocation8 + $0xa4] sm:$0xf]
        %v2086 = vld [vmem:[#allocation8 + $0xa8] sm:$0xff]
        %v2087 = vld [vmem:[#allocation8 + $0xb0] sm:$0xf]
        %v2088 = vld [vmem:[#allocation8 + $0xb4] sm:$0xff]
        %v2089 = vld [vmem:[#allocation8 + $0xbc] sm:$0xf]
        %v2122 = vunpack.c.l.b16 %v2058
        %v2123 = vunpack.c.h.b16 %v2058
        %v2124 = vunpack.c.l.b16 %v2059
        %v2125 = vunpack.c.l.b16 %v2060
        %v2126 = vunpack.c.h.b16 %v2060
        %v2127 = vunpack.c.l.b16 %v2061
        %v2128 = vunpack.c.l.b16 %v2062
        %v2129 = vunpack.c.h.b16 %v2062
        %v2130 = vunpack.c.l.b16 %v2063
        %v2131 = vunpack.c.l.b16 %v2064
        %v2132 = vunpack.c.h.b16 %v2064
        %v2133 = vunpack.c.l.b16 %v2065
        %v2134 = vunpack.c.l.b16 %v2066
        %v2135 = vunpack.c.h.b16 %v2066
        %v2136 = vunpack.c.l.b16 %v2067
        %v2137 = vunpack.c.l.b16 %v2068
        %v2138 = vunpack.c.h.b16 %v2068
        %v2139 = vunpack.c.l.b16 %v2069
        %v2140 = vunpack.c.l.b16 %v2070
        %v2141 = vunpack.c.h.b16 %v2070
        %v2142 = vunpack.c.l.b16 %v2071
        %v2143 = vunpack.c.l.b16 %v2072
        %v2144 = vunpack.c.h.b16 %v2072
        %v2145 = vunpack.c.l.b16 %v2073
        %v2146 = vunpack.c.l.b16 %v2074
        %v2147 = vunpack.c.h.b16 %v2074
        %v2148 = vunpack.c.l.b16 %v2075
        %v2149 = vunpack.c.l.b16 %v2076
        %v2150 = vunpack.c.h.b16 %v2076
        %v2151 = vunpack.c.l.b16 %v2077
        %v2152 = vunpack.c.l.b16 %v2078
        %v2153 = vunpack.c.h.b16 %v2078
        %v2154 = vunpack.c.l.b16 %v2079
        %v2155 = vunpack.c.l.b16 %v2080
        %v2156 = vunpack.c.h.b16 %v2080
        %v2157 = vunpack.c.l.b16 %v2081
        %v2158 = vunpack.c.l.b16 %v2082
        %v2159 = vunpack.c.h.b16 %v2082
        %v2160 = vunpack.c.l.b16 %v2083
        %v2161 = vunpack.c.l.b16 %v2084
        %v2162 = vunpack.c.h.b16 %v2084
        %v2163 = vunpack.c.l.b16 %v2085
        %v2164 = vunpack.c.l.b16 %v2086
        %v2165 = vunpack.c.h.b16 %v2086
        %v2166 = vunpack.c.l.b16 %v2087
        %v2167 = vunpack.c.l.b16 %v2088
        %v2168 = vunpack.c.h.b16 %v2088
        %v2169 = vunpack.c.l.b16 %v2089
        %v2170 = vpack.c.b16 %v2125, %v2122
        %v2171 = vpack.c.b16 %v2126, %v2123
        %v2172 = vpack.c.b16 %v2127, %v2124
        %v2173 = vpack.c.b16 %v2131, %v2128
        %v2174 = vpack.c.b16 %v2132, %v2129
        %v2175 = vpack.c.b16 %v2133, %v2130
        %v2176 = vpack.c.b16 %v2137, %v2134
        %v2177 = vpack.c.b16 %v2138, %v2135
        %v2178 = vpack.c.b16 %v2139, %v2136
        %v2179 = vpack.c.b16 %v2143, %v2140
        %v2180 = vpack.c.b16 %v2144, %v2141
        %v2181 = vpack.c.b16 %v2145, %v2142
        %v2182 = vpack.c.b16 %v2149, %v2146
        %v2183 = vpack.c.b16 %v2150, %v2147
        %v2184 = vpack.c.b16 %v2151, %v2148
        %v2185 = vpack.c.b16 %v2155, %v2152
        %v2186 = vpack.c.b16 %v2156, %v2153
        %v2187 = vpack.c.b16 %v2157, %v2154
        %v2188 = vpack.c.b16 %v2161, %v2158
        %v2189 = vpack.c.b16 %v2162, %v2159
        %v2190 = vpack.c.b16 %v2163, %v2160
        %v2191 = vpack.c.b16 %v2167, %v2164
        %v2192 = vpack.c.b16 %v2168, %v2165
        %v2193 = vpack.c.b16 %v2169, %v2166
        %2218 = vmatpush.bf16.msra.mxu0 %v2191
        %2219 = vmatpush.bf16.msra.mxu0 %v2188
        %2220 = vmatpush.bf16.msra.mxu0 %v2185
        %2221 = vmatpush.bf16.msra.mxu0 %v2182
        %2222 = vmatpush.bf16.msra.mxu0 %v2179
        %2223 = vmatpush.bf16.msra.mxu0 %v2176
        %2224 = vmatpush.bf16.msra.mxu0 %v2173
        %2225 = vmatpush.bf16.msra.mxu0 %v2170
        %2226 = vmatmul.bf16.gmra.mxu0 %v2057
        %v2227 = vpop.f32.mrf.mxu0
        %v2228 = vadd.f32 %v635, %v2227
        %v2229 = vpop.f32.mrf.mxu0
        %2230 = vdwg.mxu0
        %2231 = vmatpush.bf16.msra.mxu0 %v2192
        %2232 = vmatpush.bf16.msra.mxu0 %v2189
        %2233 = vmatpush.bf16.msra.mxu0 %v2186
        %2234 = vmatpush.bf16.msra.mxu0 %v2183
        %2235 = vmatpush.bf16.msra.mxu0 %v2180
        %2236 = vmatpush.bf16.msra.mxu0 %v2177
        %2237 = vmatpush.bf16.msra.mxu0 %v2174
        %2238 = vmatpush.bf16.msra.mxu0 %v2171
        %2239 = vmatmul.bf16.gmra.mxu0 %v2057
        %v2240 = vpop.f32.mrf.mxu0
        %v2241 = vadd.f32 %v636, %v2240
        %v2242 = vpop.f32.mrf.mxu0
        %2243 = vdwg.mxu0
        %2244 = vmatpush.bf16.msra.mxu0 %v2193
        %2245 = vmatpush.bf16.msra.mxu0 %v2190
        %2246 = vmatpush.bf16.msra.mxu0 %v2187
        %2247 = vmatpush.bf16.msra.mxu0 %v2184
        %2248 = vmatpush.bf16.msra.mxu0 %v2181
        %2249 = vmatpush.bf16.msra.mxu0 %v2178
        %2250 = vmatpush.bf16.msra.mxu0 %v2175
        %2251 = vmatpush.bf16.msra.mxu0 %v2172
        %2252 = vmatmul.bf16.gmra.mxu0 %v2057
        %v2253 = vpop.f32.mrf.mxu0
        %v2254 = vadd.f32 %v637, %v2253
        %v2255 = vpop.f32.mrf.mxu0
        %2256 = vdwg.mxu0
        %s2257 = scalar_lea.vmem [#allocation3], 6
        %v2258 = vld [vmem:[%s2257] ss:$8 sm:$0x7]
        %v2259 = vadd.f32 %v2258, %v2228
        %v2260 = vxor.u32 %v2259, 2147483648
        %v2261 = vmul.f32 %v2260, 1.442695
        %v2262 = vpow.pop %v2261
        %v2263 = vadd.f32 %v2262, 1.0
        %v2264 = vrcp.pop %v2263
        %v2265 = vmul.f32 %v2263, %v2264
        %v2266 = vsub.f32 1.0, %v2265
        %v2267 = vmul.f32 %v2264, %v2266
        %v2268 = vadd.f32 %v2264, %v2267
        %vm2269 = vweird.f32 %v2263
        %vm2270 = vweird.f32 %v2264
        %vm2271 = vmor %vm2269, %vm2270
        %v2272 = vsel %vm2271, %v2264, %v2268
        %v2273 = vand.u32 2147483647, %v2263
        %vm2274 = vcmp.eq.f32.partialorder %v2273, 8.507059e+37
        %v2275 = vand.u32 %v2263, 2147483648
        %v2276 = vor.u32 1.1754944e-38, %v2275
        %v2277 = vsel %vm2274, %v2276, %v2272
        %v2278 = vmul.f32 1.0, %v2277
        %v2280 = vrot.slane %v2258, 1
        %v2282 = vadd.f32 %v2280, %v2241
        %v2283 = vxor.u32 %v2282, 2147483648
        %v2284 = vmul.f32 %v2283, 1.442695
        %v2285 = vpow.pop %v2284
        %v2286 = vadd.f32 %v2285, 1.0
        %v2287 = vrcp.pop %v2286
        %v2288 = vmul.f32 %v2286, %v2287
        %v2289 = vsub.f32 1.0, %v2288
        %v2290 = vmul.f32 %v2287, %v2289
        %v2291 = vadd.f32 %v2287, %v2290
        %vm2292 = vweird.f32 %v2286
        %vm2293 = vweird.f32 %v2287
        %vm2294 = vmor %vm2292, %vm2293
        %v2295 = vsel %vm2294, %v2287, %v2291
        %v2296 = vand.u32 2147483647, %v2286
        %vm2297 = vcmp.eq.f32.partialorder %v2296, 8.507059e+37
        %v2298 = vand.u32 %v2286, 2147483648
        %v2299 = vor.u32 1.1754944e-38, %v2298
        %v2300 = vsel %vm2297, %v2299, %v2295
        %v2301 = vmul.f32 1.0, %v2300
        %v2302 = vmul.f32 %v2278, %v2254
        %v2303 = vrot.slane %v2258, 2
        %v2305 = vadd.f32 %v2303, %v2302
        %v2306 = vtanh.pop %v2305
        %v2307 = vsub.f32 1.0, %v2301
        %v2308 = vmul.f32 %v2307, %v2306
        %v2309 = vmul.f32 %v2301, %v2056
        %v2310 = vadd.f32 %v2308, %v2309
        %s2311 = sadd.s32 %s733, 6
        %p2312 = scmp.lt.s32.totalorder %s2311, 40
        %s2313 = scalar_select %p2312, 1, 0
        %v2314 = vstv %s2313
        %vm2315 = vcmp.eq.s32.totalorder %v2314, 1
        %v2316 = vsel %vm2315, %v2310, %v2056
        %2317 = vst [vmem:[#allocation2] sm:$0x1] %v2316
        %2318 = vst [vmem:[#allocation4 + $0x6] sm:$0x1] %v2310
        %v2319 = vld [vmem:[#allocation2] sm:$0x1]
        %v2320 = vpack.c.bf16 %v2319, %v2319
        %v2321 = vld [vmem:[#allocation8] sm:$0xff]
        %v2322 = vld [vmem:[#allocation8 + $0x8] sm:$0xf]
        %v2323 = vld [vmem:[#allocation8 + $0xc] sm:$0xff]
        %v2324 = vld [vmem:[#allocation8 + $0x14] sm:$0xf]
        %v2325 = vld [vmem:[#allocation8 + $0x18] sm:$0xff]
        %v2326 = vld [vmem:[#allocation8 + $0x20] sm:$0xf]
        %v2327 = vld [vmem:[#allocation8 + $0x24] sm:$0xff]
        %v2328 = vld [vmem:[#allocation8 + $0x2c] sm:$0xf]
        %v2329 = vld [vmem:[#allocation8 + $0x30] sm:$0xff]
        %v2330 = vld [vmem:[#allocation8 + $0x38] sm:$0xf]
        %v2331 = vld [vmem:[#allocation8 + $0x3c] sm:$0xff]
        %v2332 = vld [vmem:[#allocation8 + $0x44] sm:$0xf]
        %v2333 = vld [vmem:[#allocation8 + $0x48] sm:$0xff]
        %v2334 = vld [vmem:[#allocation8 + $0x50] sm:$0xf]
        %v2335 = vld [vmem:[#allocation8 + $0x54] sm:$0xff]
        %v2336 = vld [vmem:[#allocation8 + $0x5c] sm:$0xf]
        %v2337 = vld [vmem:[#allocation8 + $0x60] sm:$0xff]
        %v2338 = vld [vmem:[#allocation8 + $0x68] sm:$0xf]
        %v2339 = vld [vmem:[#allocation8 + $0x6c] sm:$0xff]
        %v2340 = vld [vmem:[#allocation8 + $0x74] sm:$0xf]
        %v2341 = vld [vmem:[#allocation8 + $0x78] sm:$0xff]
        %v2342 = vld [vmem:[#allocation8 + $0x80] sm:$0xf]
        %v2343 = vld [vmem:[#allocation8 + $0x84] sm:$0xff]
        %v2344 = vld [vmem:[#allocation8 + $0x8c] sm:$0xf]
        %v2345 = vld [vmem:[#allocation8 + $0x90] sm:$0xff]
        %v2346 = vld [vmem:[#allocation8 + $0x98] sm:$0xf]
        %v2347 = vld [vmem:[#allocation8 + $0x9c] sm:$0xff]
        %v2348 = vld [vmem:[#allocation8 + $0xa4] sm:$0xf]
        %v2349 = vld [vmem:[#allocation8 + $0xa8] sm:$0xff]
        %v2350 = vld [vmem:[#allocation8 + $0xb0] sm:$0xf]
        %v2351 = vld [vmem:[#allocation8 + $0xb4] sm:$0xff]
        %v2352 = vld [vmem:[#allocation8 + $0xbc] sm:$0xf]
        %v2385 = vunpack.c.l.b16 %v2321
        %v2386 = vunpack.c.h.b16 %v2321
        %v2387 = vunpack.c.l.b16 %v2322
        %v2388 = vunpack.c.l.b16 %v2323
        %v2389 = vunpack.c.h.b16 %v2323
        %v2390 = vunpack.c.l.b16 %v2324
        %v2391 = vunpack.c.l.b16 %v2325
        %v2392 = vunpack.c.h.b16 %v2325
        %v2393 = vunpack.c.l.b16 %v2326
        %v2394 = vunpack.c.l.b16 %v2327
        %v2395 = vunpack.c.h.b16 %v2327
        %v2396 = vunpack.c.l.b16 %v2328
        %v2397 = vunpack.c.l.b16 %v2329
        %v2398 = vunpack.c.h.b16 %v2329
        %v2399 = vunpack.c.l.b16 %v2330
        %v2400 = vunpack.c.l.b16 %v2331
        %v2401 = vunpack.c.h.b16 %v2331
        %v2402 = vunpack.c.l.b16 %v2332
        %v2403 = vunpack.c.l.b16 %v2333
        %v2404 = vunpack.c.h.b16 %v2333
        %v2405 = vunpack.c.l.b16 %v2334
        %v2406 = vunpack.c.l.b16 %v2335
        %v2407 = vunpack.c.h.b16 %v2335
        %v2408 = vunpack.c.l.b16 %v2336
        %v2409 = vunpack.c.l.b16 %v2337
        %v2410 = vunpack.c.h.b16 %v2337
        %v2411 = vunpack.c.l.b16 %v2338
        %v2412 = vunpack.c.l.b16 %v2339
        %v2413 = vunpack.c.h.b16 %v2339
        %v2414 = vunpack.c.l.b16 %v2340
        %v2415 = vunpack.c.l.b16 %v2341
        %v2416 = vunpack.c.h.b16 %v2341
        %v2417 = vunpack.c.l.b16 %v2342
        %v2418 = vunpack.c.l.b16 %v2343
        %v2419 = vunpack.c.h.b16 %v2343
        %v2420 = vunpack.c.l.b16 %v2344
        %v2421 = vunpack.c.l.b16 %v2345
        %v2422 = vunpack.c.h.b16 %v2345
        %v2423 = vunpack.c.l.b16 %v2346
        %v2424 = vunpack.c.l.b16 %v2347
        %v2425 = vunpack.c.h.b16 %v2347
        %v2426 = vunpack.c.l.b16 %v2348
        %v2427 = vunpack.c.l.b16 %v2349
        %v2428 = vunpack.c.h.b16 %v2349
        %v2429 = vunpack.c.l.b16 %v2350
        %v2430 = vunpack.c.l.b16 %v2351
        %v2431 = vunpack.c.h.b16 %v2351
        %v2432 = vunpack.c.l.b16 %v2352
        %v2433 = vpack.c.b16 %v2388, %v2385
        %v2434 = vpack.c.b16 %v2389, %v2386
        %v2435 = vpack.c.b16 %v2390, %v2387
        %v2436 = vpack.c.b16 %v2394, %v2391
        %v2437 = vpack.c.b16 %v2395, %v2392
        %v2438 = vpack.c.b16 %v2396, %v2393
        %v2439 = vpack.c.b16 %v2400, %v2397
        %v2440 = vpack.c.b16 %v2401, %v2398
        %v2441 = vpack.c.b16 %v2402, %v2399
        %v2442 = vpack.c.b16 %v2406, %v2403
        %v2443 = vpack.c.b16 %v2407, %v2404
        %v2444 = vpack.c.b16 %v2408, %v2405
        %v2445 = vpack.c.b16 %v2412, %v2409
        %v2446 = vpack.c.b16 %v2413, %v2410
        %v2447 = vpack.c.b16 %v2414, %v2411
        %v2448 = vpack.c.b16 %v2418, %v2415
        %v2449 = vpack.c.b16 %v2419, %v2416
        %v2450 = vpack.c.b16 %v2420, %v2417
        %v2451 = vpack.c.b16 %v2424, %v2421
        %v2452 = vpack.c.b16 %v2425, %v2422
        %v2453 = vpack.c.b16 %v2426, %v2423
        %v2454 = vpack.c.b16 %v2430, %v2427
        %v2455 = vpack.c.b16 %v2431, %v2428
        %v2456 = vpack.c.b16 %v2432, %v2429
        %2481 = vmatpush.bf16.msra.mxu0 %v2454
        %2482 = vmatpush.bf16.msra.mxu0 %v2451
        %2483 = vmatpush.bf16.msra.mxu0 %v2448
        %2484 = vmatpush.bf16.msra.mxu0 %v2445
        %2485 = vmatpush.bf16.msra.mxu0 %v2442
        %2486 = vmatpush.bf16.msra.mxu0 %v2439
        %2487 = vmatpush.bf16.msra.mxu0 %v2436
        %2488 = vmatpush.bf16.msra.mxu0 %v2433
        %2489 = vmatmul.bf16.gmra.mxu0 %v2320
        %v2490 = vpop.f32.mrf.mxu0
        %v2491 = vadd.f32 %v635, %v2490
        %v2492 = vpop.f32.mrf.mxu0
        %2493 = vdwg.mxu0
        %2494 = vmatpush.bf16.msra.mxu0 %v2455
        %2495 = vmatpush.bf16.msra.mxu0 %v2452
        %2496 = vmatpush.bf16.msra.mxu0 %v2449
        %2497 = vmatpush.bf16.msra.mxu0 %v2446
        %2498 = vmatpush.bf16.msra.mxu0 %v2443
        %2499 = vmatpush.bf16.msra.mxu0 %v2440
        %2500 = vmatpush.bf16.msra.mxu0 %v2437
        %2501 = vmatpush.bf16.msra.mxu0 %v2434
        %2502 = vmatmul.bf16.gmra.mxu0 %v2320
        %v2503 = vpop.f32.mrf.mxu0
        %v2504 = vadd.f32 %v636, %v2503
        %v2505 = vpop.f32.mrf.mxu0
        %2506 = vdwg.mxu0
        %2507 = vmatpush.bf16.msra.mxu0 %v2456
        %2508 = vmatpush.bf16.msra.mxu0 %v2453
        %2509 = vmatpush.bf16.msra.mxu0 %v2450
        %2510 = vmatpush.bf16.msra.mxu0 %v2447
        %2511 = vmatpush.bf16.msra.mxu0 %v2444
        %2512 = vmatpush.bf16.msra.mxu0 %v2441
        %2513 = vmatpush.bf16.msra.mxu0 %v2438
        %2514 = vmatpush.bf16.msra.mxu0 %v2435
        %2515 = vmatmul.bf16.gmra.mxu0 %v2320
        %v2516 = vpop.f32.mrf.mxu0
        %v2517 = vadd.f32 %v637, %v2516
        %v2518 = vpop.f32.mrf.mxu0
        %2519 = vdwg.mxu0
        %s2520 = scalar_lea.vmem [#allocation3], 7
        %v2521 = vld [vmem:[%s2520] ss:$8 sm:$0x7]
        %v2522 = vadd.f32 %v2521, %v2491
        %v2523 = vxor.u32 %v2522, 2147483648
        %v2524 = vmul.f32 %v2523, 1.442695
        %v2525 = vpow.pop %v2524
        %v2526 = vadd.f32 %v2525, 1.0
        %v2527 = vrcp.pop %v2526
        %v2528 = vmul.f32 %v2526, %v2527
        %v2529 = vsub.f32 1.0, %v2528
        %v2530 = vmul.f32 %v2527, %v2529
        %v2531 = vadd.f32 %v2527, %v2530
        %vm2532 = vweird.f32 %v2526
        %vm2533 = vweird.f32 %v2527
        %vm2534 = vmor %vm2532, %vm2533
        %v2535 = vsel %vm2534, %v2527, %v2531
        %v2536 = vand.u32 2147483647, %v2526
        %vm2537 = vcmp.eq.f32.partialorder %v2536, 8.507059e+37
        %v2538 = vand.u32 %v2526, 2147483648
        %v2539 = vor.u32 1.1754944e-38, %v2538
        %v2540 = vsel %vm2537, %v2539, %v2535
        %v2541 = vmul.f32 1.0, %v2540
        %v2543 = vrot.slane %v2521, 1
        %v2545 = vadd.f32 %v2543, %v2504
        %v2546 = vxor.u32 %v2545, 2147483648
        %v2547 = vmul.f32 %v2546, 1.442695
        %v2548 = vpow.pop %v2547
        %v2549 = vadd.f32 %v2548, 1.0
        %v2550 = vrcp.pop %v2549
        %v2551 = vmul.f32 %v2549, %v2550
        %v2552 = vsub.f32 1.0, %v2551
        %v2553 = vmul.f32 %v2550, %v2552
        %v2554 = vadd.f32 %v2550, %v2553
        %vm2555 = vweird.f32 %v2549
        %vm2556 = vweird.f32 %v2550
        %vm2557 = vmor %vm2555, %vm2556
        %v2558 = vsel %vm2557, %v2550, %v2554
        %v2559 = vand.u32 2147483647, %v2549
        %vm2560 = vcmp.eq.f32.partialorder %v2559, 8.507059e+37
        %v2561 = vand.u32 %v2549, 2147483648
        %v2562 = vor.u32 1.1754944e-38, %v2561
        %v2563 = vsel %vm2560, %v2562, %v2558
        %v2564 = vmul.f32 1.0, %v2563
        %v2565 = vmul.f32 %v2541, %v2517
        %v2566 = vrot.slane %v2521, 2
        %v2568 = vadd.f32 %v2566, %v2565
        %v2569 = vtanh.pop %v2568
        %v2570 = vsub.f32 1.0, %v2564
        %v2571 = vmul.f32 %v2570, %v2569
        %v2572 = vmul.f32 %v2564, %v2319
        %v2573 = vadd.f32 %v2571, %v2572
        %s2574 = sadd.s32 %s733, 7
        %p2575 = scmp.lt.s32.totalorder %s2574, 40
        %s2576 = scalar_select %p2575, 1, 0
        %v2577 = vstv %s2576
        %vm2578 = vcmp.eq.s32.totalorder %v2577, 1
        %v2579 = vsel %vm2578, %v2573, %v2319
        %2580 = vst [vmem:[#allocation2] sm:$0x1] %v2579
        %2581 = vst [vmem:[#allocation4 + $0x7] sm:$0x1] %v2573
        %v2582 = vld [vmem:[#allocation2] sm:$0x1]
        %v2583 = vpack.c.bf16 %v2582, %v2582
        %v2584 = vld [vmem:[#allocation8] sm:$0xff]
        %v2585 = vld [vmem:[#allocation8 + $0x8] sm:$0xf]
        %v2586 = vld [vmem:[#allocation8 + $0xc] sm:$0xff]
        %v2587 = vld [vmem:[#allocation8 + $0x14] sm:$0xf]
        %v2588 = vld [vmem:[#allocation8 + $0x18] sm:$0xff]
        %v2589 = vld [vmem:[#allocation8 + $0x20] sm:$0xf]
        %v2590 = vld [vmem:[#allocation8 + $0x24] sm:$0xff]
        %v2591 = vld [vmem:[#allocation8 + $0x2c] sm:$0xf]
        %v2592 = vld [vmem:[#allocation8 + $0x30] sm:$0xff]
        %v2593 = vld [vmem:[#allocation8 + $0x38] sm:$0xf]
        %v2594 = vld [vmem:[#allocation8 + $0x3c] sm:$0xff]
        %v2595 = vld [vmem:[#allocation8 + $0x44] sm:$0xf]
        %v2596 = vld [vmem:[#allocation8 + $0x48] sm:$0xff]
        %v2597 = vld [vmem:[#allocation8 + $0x50] sm:$0xf]
        %v2598 = vld [vmem:[#allocation8 + $0x54] sm:$0xff]
        %v2599 = vld [vmem:[#allocation8 + $0x5c] sm:$0xf]
        %v2600 = vld [vmem:[#allocation8 + $0x60] sm:$0xff]
        %v2601 = vld [vmem:[#allocation8 + $0x68] sm:$0xf]
        %v2602 = vld [vmem:[#allocation8 + $0x6c] sm:$0xff]
        %v2603 = vld [vmem:[#allocation8 + $0x74] sm:$0xf]
        %v2604 = vld [vmem:[#allocation8 + $0x78] sm:$0xff]
        %v2605 = vld [vmem:[#allocation8 + $0x80] sm:$0xf]
        %v2606 = vld [vmem:[#allocation8 + $0x84] sm:$0xff]
        %v2607 = vld [vmem:[#allocation8 + $0x8c] sm:$0xf]
        %v2608 = vld [vmem:[#allocation8 + $0x90] sm:$0xff]
        %v2609 = vld [vmem:[#allocation8 + $0x98] sm:$0xf]
        %v2610 = vld [vmem:[#allocation8 + $0x9c] sm:$0xff]
        %v2611 = vld [vmem:[#allocation8 + $0xa4] sm:$0xf]
        %v2612 = vld [vmem:[#allocation8 + $0xa8] sm:$0xff]
        %v2613 = vld [vmem:[#allocation8 + $0xb0] sm:$0xf]
        %v2614 = vld [vmem:[#allocation8 + $0xb4] sm:$0xff]
        %v2615 = vld [vmem:[#allocation8 + $0xbc] sm:$0xf]
        %v2648 = vunpack.c.l.b16 %v2584
        %v2649 = vunpack.c.h.b16 %v2584
        %v2650 = vunpack.c.l.b16 %v2585
        %v2651 = vunpack.c.l.b16 %v2586
        %v2652 = vunpack.c.h.b16 %v2586
        %v2653 = vunpack.c.l.b16 %v2587
        %v2654 = vunpack.c.l.b16 %v2588
        %v2655 = vunpack.c.h.b16 %v2588
        %v2656 = vunpack.c.l.b16 %v2589
        %v2657 = vunpack.c.l.b16 %v2590
        %v2658 = vunpack.c.h.b16 %v2590
        %v2659 = vunpack.c.l.b16 %v2591
        %v2660 = vunpack.c.l.b16 %v2592
        %v2661 = vunpack.c.h.b16 %v2592
        %v2662 = vunpack.c.l.b16 %v2593
        %v2663 = vunpack.c.l.b16 %v2594
        %v2664 = vunpack.c.h.b16 %v2594
        %v2665 = vunpack.c.l.b16 %v2595
        %v2666 = vunpack.c.l.b16 %v2596
        %v2667 = vunpack.c.h.b16 %v2596
        %v2668 = vunpack.c.l.b16 %v2597
        %v2669 = vunpack.c.l.b16 %v2598
        %v2670 = vunpack.c.h.b16 %v2598
        %v2671 = vunpack.c.l.b16 %v2599
        %v2672 = vunpack.c.l.b16 %v2600
        %v2673 = vunpack.c.h.b16 %v2600
        %v2674 = vunpack.c.l.b16 %v2601
        %v2675 = vunpack.c.l.b16 %v2602
        %v2676 = vunpack.c.h.b16 %v2602
        %v2677 = vunpack.c.l.b16 %v2603
        %v2678 = vunpack.c.l.b16 %v2604
        %v2679 = vunpack.c.h.b16 %v2604
        %v2680 = vunpack.c.l.b16 %v2605
        %v2681 = vunpack.c.l.b16 %v2606
        %v2682 = vunpack.c.h.b16 %v2606
        %v2683 = vunpack.c.l.b16 %v2607
        %v2684 = vunpack.c.l.b16 %v2608
        %v2685 = vunpack.c.h.b16 %v2608
        %v2686 = vunpack.c.l.b16 %v2609
        %v2687 = vunpack.c.l.b16 %v2610
        %v2688 = vunpack.c.h.b16 %v2610
        %v2689 = vunpack.c.l.b16 %v2611
        %v2690 = vunpack.c.l.b16 %v2612
        %v2691 = vunpack.c.h.b16 %v2612
        %v2692 = vunpack.c.l.b16 %v2613
        %v2693 = vunpack.c.l.b16 %v2614
        %v2694 = vunpack.c.h.b16 %v2614
        %v2695 = vunpack.c.l.b16 %v2615
        %v2696 = vpack.c.b16 %v2651, %v2648
        %v2697 = vpack.c.b16 %v2652, %v2649
        %v2698 = vpack.c.b16 %v2653, %v2650
        %v2699 = vpack.c.b16 %v2657, %v2654
        %v2700 = vpack.c.b16 %v2658, %v2655
        %v2701 = vpack.c.b16 %v2659, %v2656
        %v2702 = vpack.c.b16 %v2663, %v2660
        %v2703 = vpack.c.b16 %v2664, %v2661
        %v2704 = vpack.c.b16 %v2665, %v2662
        %v2705 = vpack.c.b16 %v2669, %v2666
        %v2706 = vpack.c.b16 %v2670, %v2667
        %v2707 = vpack.c.b16 %v2671, %v2668
        %v2708 = vpack.c.b16 %v2675, %v2672
        %v2709 = vpack.c.b16 %v2676, %v2673
        %v2710 = vpack.c.b16 %v2677, %v2674
        %v2711 = vpack.c.b16 %v2681, %v2678
        %v2712 = vpack.c.b16 %v2682, %v2679
        %v2713 = vpack.c.b16 %v2683, %v2680
        %v2714 = vpack.c.b16 %v2687, %v2684
        %v2715 = vpack.c.b16 %v2688, %v2685
        %v2716 = vpack.c.b16 %v2689, %v2686
        %v2717 = vpack.c.b16 %v2693, %v2690
        %v2718 = vpack.c.b16 %v2694, %v2691
        %v2719 = vpack.c.b16 %v2695, %v2692
        %2744 = vmatpush.bf16.msra.mxu0 %v2717
        %2745 = vmatpush.bf16.msra.mxu0 %v2714
        %2746 = vmatpush.bf16.msra.mxu0 %v2711
        %2747 = vmatpush.bf16.msra.mxu0 %v2708
        %2748 = vmatpush.bf16.msra.mxu0 %v2705
        %2749 = vmatpush.bf16.msra.mxu0 %v2702
        %2750 = vmatpush.bf16.msra.mxu0 %v2699
        %2751 = vmatpush.bf16.msra.mxu0 %v2696
        %2752 = vmatmul.bf16.gmra.mxu0 %v2583
        %v2753 = vpop.f32.mrf.mxu0
        %v2754 = vadd.f32 %v635, %v2753
        %v2755 = vpop.f32.mrf.mxu0
        %2756 = vdwg.mxu0
        %2757 = vmatpush.bf16.msra.mxu0 %v2718
        %2758 = vmatpush.bf16.msra.mxu0 %v2715
        %2759 = vmatpush.bf16.msra.mxu0 %v2712
        %2760 = vmatpush.bf16.msra.mxu0 %v2709
        %2761 = vmatpush.bf16.msra.mxu0 %v2706
        %2762 = vmatpush.bf16.msra.mxu0 %v2703
        %2763 = vmatpush.bf16.msra.mxu0 %v2700
        %2764 = vmatpush.bf16.msra.mxu0 %v2697
        %2765 = vmatmul.bf16.gmra.mxu0 %v2583
        %v2766 = vpop.f32.mrf.mxu0
        %v2767 = vadd.f32 %v636, %v2766
        %v2768 = vpop.f32.mrf.mxu0
        %2769 = vdwg.mxu0
        %2770 = vmatpush.bf16.msra.mxu0 %v2719
        %2771 = vmatpush.bf16.msra.mxu0 %v2716
        %2772 = vmatpush.bf16.msra.mxu0 %v2713
        %2773 = vmatpush.bf16.msra.mxu0 %v2710
        %2774 = vmatpush.bf16.msra.mxu0 %v2707
        %2775 = vmatpush.bf16.msra.mxu0 %v2704
        %2776 = vmatpush.bf16.msra.mxu0 %v2701
        %2777 = vmatpush.bf16.msra.mxu0 %v2698
        %2778 = vmatmul.bf16.gmra.mxu0 %v2583
        %v2779 = vpop.f32.mrf.mxu0
        %v2780 = vadd.f32 %v637, %v2779
        %v2781 = vpop.f32.mrf.mxu0
        %2782 = vdwg.mxu0
        %s2783 = scalar_lea.vmem [#allocation3], 24
        %v2784 = vld [vmem:[%s2783] ss:$8 sm:$0x7]
        %v2785 = vadd.f32 %v2784, %v2754
        %v2786 = vxor.u32 %v2785, 2147483648
        %v2787 = vmul.f32 %v2786, 1.442695
        %v2788 = vpow.pop %v2787
        %v2789 = vadd.f32 %v2788, 1.0
        %v2790 = vrcp.pop %v2789
        %v2791 = vmul.f32 %v2789, %v2790
        %v2792 = vsub.f32 1.0, %v2791
        %v2793 = vmul.f32 %v2790, %v2792
        %v2794 = vadd.f32 %v2790, %v2793
        %vm2795 = vweird.f32 %v2789
        %vm2796 = vweird.f32 %v2790
        %vm2797 = vmor %vm2795, %vm2796
        %v2798 = vsel %vm2797, %v2790, %v2794
        %v2799 = vand.u32 2147483647, %v2789
        %vm2800 = vcmp.eq.f32.partialorder %v2799, 8.507059e+37
        %v2801 = vand.u32 %v2789, 2147483648
        %v2802 = vor.u32 1.1754944e-38, %v2801
        %v2803 = vsel %vm2800, %v2802, %v2798
        %v2804 = vmul.f32 1.0, %v2803
        %v2806 = vrot.slane %v2784, 1
        %v2808 = vadd.f32 %v2806, %v2767
        %v2809 = vxor.u32 %v2808, 2147483648
        %v2810 = vmul.f32 %v2809, 1.442695
        %v2811 = vpow.pop %v2810
        %v2812 = vadd.f32 %v2811, 1.0
        %v2813 = vrcp.pop %v2812
        %v2814 = vmul.f32 %v2812, %v2813
        %v2815 = vsub.f32 1.0, %v2814
        %v2816 = vmul.f32 %v2813, %v2815
        %v2817 = vadd.f32 %v2813, %v2816
        %vm2818 = vweird.f32 %v2812
        %vm2819 = vweird.f32 %v2813
        %vm2820 = vmor %vm2818, %vm2819
        %v2821 = vsel %vm2820, %v2813, %v2817
        %v2822 = vand.u32 2147483647, %v2812
        %vm2823 = vcmp.eq.f32.partialorder %v2822, 8.507059e+37
        %v2824 = vand.u32 %v2812, 2147483648
        %v2825 = vor.u32 1.1754944e-38, %v2824
        %v2826 = vsel %vm2823, %v2825, %v2821
        %v2827 = vmul.f32 1.0, %v2826
        %v2828 = vmul.f32 %v2804, %v2780
        %v2829 = vrot.slane %v2784, 2
        %v2831 = vadd.f32 %v2829, %v2828
        %v2832 = vtanh.pop %v2831
        %v2833 = vsub.f32 1.0, %v2827
        %v2834 = vmul.f32 %v2833, %v2832
        %v2835 = vmul.f32 %v2827, %v2582
        %v2836 = vadd.f32 %v2834, %v2835
        %s2837 = sadd.s32 %s733, 8
        %p2838 = scmp.lt.s32.totalorder %s2837, 40
        %s2839 = scalar_select %p2838, 1, 0
        %v2840 = vstv %s2839
        %vm2841 = vcmp.eq.s32.totalorder %v2840, 1
        %v2842 = vsel %vm2841, %v2836, %v2582
        %2843 = vst [vmem:[#allocation2] sm:$0x1] %v2842
        %2844 = vst [vmem:[#allocation4 + $0x8] sm:$0x1] %v2836
        %v2845 = vld [vmem:[#allocation2] sm:$0x1]
        %v2846 = vpack.c.bf16 %v2845, %v2845
        %v2847 = vld [vmem:[#allocation8] sm:$0xff]
        %v2848 = vld [vmem:[#allocation8 + $0x8] sm:$0xf]
        %v2849 = vld [vmem:[#allocation8 + $0xc] sm:$0xff]
        %v2850 = vld [vmem:[#allocation8 + $0x14] sm:$0xf]
        %v2851 = vld [vmem:[#allocation8 + $0x18] sm:$0xff]
        %v2852 = vld [vmem:[#allocation8 + $0x20] sm:$0xf]
        %v2853 = vld [vmem:[#allocation8 + $0x24] sm:$0xff]
        %v2854 = vld [vmem:[#allocation8 + $0x2c] sm:$0xf]
        %v2855 = vld [vmem:[#allocation8 + $0x30] sm:$0xff]
        %v2856 = vld [vmem:[#allocation8 + $0x38] sm:$0xf]
        %v2857 = vld [vmem:[#allocation8 + $0x3c] sm:$0xff]
        %v2858 = vld [vmem:[#allocation8 + $0x44] sm:$0xf]
        %v2859 = vld [vmem:[#allocation8 + $0x48] sm:$0xff]
        %v2860 = vld [vmem:[#allocation8 + $0x50] sm:$0xf]
        %v2861 = vld [vmem:[#allocation8 + $0x54] sm:$0xff]
        %v2862 = vld [vmem:[#allocation8 + $0x5c] sm:$0xf]
        %v2863 = vld [vmem:[#allocation8 + $0x60] sm:$0xff]
        %v2864 = vld [vmem:[#allocation8 + $0x68] sm:$0xf]
        %v2865 = vld [vmem:[#allocation8 + $0x6c] sm:$0xff]
        %v2866 = vld [vmem:[#allocation8 + $0x74] sm:$0xf]
        %v2867 = vld [vmem:[#allocation8 + $0x78] sm:$0xff]
        %v2868 = vld [vmem:[#allocation8 + $0x80] sm:$0xf]
        %v2869 = vld [vmem:[#allocation8 + $0x84] sm:$0xff]
        %v2870 = vld [vmem:[#allocation8 + $0x8c] sm:$0xf]
        %v2871 = vld [vmem:[#allocation8 + $0x90] sm:$0xff]
        %v2872 = vld [vmem:[#allocation8 + $0x98] sm:$0xf]
        %v2873 = vld [vmem:[#allocation8 + $0x9c] sm:$0xff]
        %v2874 = vld [vmem:[#allocation8 + $0xa4] sm:$0xf]
        %v2875 = vld [vmem:[#allocation8 + $0xa8] sm:$0xff]
        %v2876 = vld [vmem:[#allocation8 + $0xb0] sm:$0xf]
        %v2877 = vld [vmem:[#allocation8 + $0xb4] sm:$0xff]
        %v2878 = vld [vmem:[#allocation8 + $0xbc] sm:$0xf]
        %v2911 = vunpack.c.l.b16 %v2847
        %v2912 = vunpack.c.h.b16 %v2847
        %v2913 = vunpack.c.l.b16 %v2848
        %v2914 = vunpack.c.l.b16 %v2849
        %v2915 = vunpack.c.h.b16 %v2849
        %v2916 = vunpack.c.l.b16 %v2850
        %v2917 = vunpack.c.l.b16 %v2851
        %v2918 = vunpack.c.h.b16 %v2851
        %v2919 = vunpack.c.l.b16 %v2852
        %v2920 = vunpack.c.l.b16 %v2853
        %v2921 = vunpack.c.h.b16 %v2853
        %v2922 = vunpack.c.l.b16 %v2854
        %v2923 = vunpack.c.l.b16 %v2855
        %v2924 = vunpack.c.h.b16 %v2855
        %v2925 = vunpack.c.l.b16 %v2856
        %v2926 = vunpack.c.l.b16 %v2857
        %v2927 = vunpack.c.h.b16 %v2857
        %v2928 = vunpack.c.l.b16 %v2858
        %v2929 = vunpack.c.l.b16 %v2859
        %v2930 = vunpack.c.h.b16 %v2859
        %v2931 = vunpack.c.l.b16 %v2860
        %v2932 = vunpack.c.l.b16 %v2861
        %v2933 = vunpack.c.h.b16 %v2861
        %v2934 = vunpack.c.l.b16 %v2862
        %v2935 = vunpack.c.l.b16 %v2863
        %v2936 = vunpack.c.h.b16 %v2863
        %v2937 = vunpack.c.l.b16 %v2864
        %v2938 = vunpack.c.l.b16 %v2865
        %v2939 = vunpack.c.h.b16 %v2865
        %v2940 = vunpack.c.l.b16 %v2866
        %v2941 = vunpack.c.l.b16 %v2867
        %v2942 = vunpack.c.h.b16 %v2867
        %v2943 = vunpack.c.l.b16 %v2868
        %v2944 = vunpack.c.l.b16 %v2869
        %v2945 = vunpack.c.h.b16 %v2869
        %v2946 = vunpack.c.l.b16 %v2870
        %v2947 = vunpack.c.l.b16 %v2871
        %v2948 = vunpack.c.h.b16 %v2871
        %v2949 = vunpack.c.l.b16 %v2872
        %v2950 = vunpack.c.l.b16 %v2873
        %v2951 = vunpack.c.h.b16 %v2873
        %v2952 = vunpack.c.l.b16 %v2874
        %v2953 = vunpack.c.l.b16 %v2875
        %v2954 = vunpack.c.h.b16 %v2875
        %v2955 = vunpack.c.l.b16 %v2876
        %v2956 = vunpack.c.l.b16 %v2877
        %v2957 = vunpack.c.h.b16 %v2877
        %v2958 = vunpack.c.l.b16 %v2878
        %v2959 = vpack.c.b16 %v2914, %v2911
        %v2960 = vpack.c.b16 %v2915, %v2912
        %v2961 = vpack.c.b16 %v2916, %v2913
        %v2962 = vpack.c.b16 %v2920, %v2917
        %v2963 = vpack.c.b16 %v2921, %v2918
        %v2964 = vpack.c.b16 %v2922, %v2919
        %v2965 = vpack.c.b16 %v2926, %v2923
        %v2966 = vpack.c.b16 %v2927, %v2924
        %v2967 = vpack.c.b16 %v2928, %v2925
        %v2968 = vpack.c.b16 %v2932, %v2929
        %v2969 = vpack.c.b16 %v2933, %v2930
        %v2970 = vpack.c.b16 %v2934, %v2931
        %v2971 = vpack.c.b16 %v2938, %v2935
        %v2972 = vpack.c.b16 %v2939, %v2936
        %v2973 = vpack.c.b16 %v2940, %v2937
        %v2974 = vpack.c.b16 %v2944, %v2941
        %v2975 = vpack.c.b16 %v2945, %v2942
        %v2976 = vpack.c.b16 %v2946, %v2943
        %v2977 = vpack.c.b16 %v2950, %v2947
        %v2978 = vpack.c.b16 %v2951, %v2948
        %v2979 = vpack.c.b16 %v2952, %v2949
        %v2980 = vpack.c.b16 %v2956, %v2953
        %v2981 = vpack.c.b16 %v2957, %v2954
        %v2982 = vpack.c.b16 %v2958, %v2955
        %3007 = vmatpush.bf16.msra.mxu0 %v2980
        %3008 = vmatpush.bf16.msra.mxu0 %v2977
        %3009 = vmatpush.bf16.msra.mxu0 %v2974
        %3010 = vmatpush.bf16.msra.mxu0 %v2971
        %3011 = vmatpush.bf16.msra.mxu0 %v2968
        %3012 = vmatpush.bf16.msra.mxu0 %v2965
        %3013 = vmatpush.bf16.msra.mxu0 %v2962
        %3014 = vmatpush.bf16.msra.mxu0 %v2959
        %3015 = vmatmul.bf16.gmra.mxu0 %v2846
        %v3016 = vpop.f32.mrf.mxu0
        %v3017 = vadd.f32 %v635, %v3016
        %v3018 = vpop.f32.mrf.mxu0
        %3019 = vdwg.mxu0
        %3020 = vmatpush.bf16.msra.mxu0 %v2981
        %3021 = vmatpush.bf16.msra.mxu0 %v2978
        %3022 = vmatpush.bf16.msra.mxu0 %v2975
        %3023 = vmatpush.bf16.msra.mxu0 %v2972
        %3024 = vmatpush.bf16.msra.mxu0 %v2969
        %3025 = vmatpush.bf16.msra.mxu0 %v2966
        %3026 = vmatpush.bf16.msra.mxu0 %v2963
        %3027 = vmatpush.bf16.msra.mxu0 %v2960
        %3028 = vmatmul.bf16.gmra.mxu0 %v2846
        %v3029 = vpop.f32.mrf.mxu0
        %v3030 = vadd.f32 %v636, %v3029
        %v3031 = vpop.f32.mrf.mxu0
        %3032 = vdwg.mxu0
        %3033 = vmatpush.bf16.msra.mxu0 %v2982
        %3034 = vmatpush.bf16.msra.mxu0 %v2979
        %3035 = vmatpush.bf16.msra.mxu0 %v2976
        %3036 = vmatpush.bf16.msra.mxu0 %v2973
        %3037 = vmatpush.bf16.msra.mxu0 %v2970
        %3038 = vmatpush.bf16.msra.mxu0 %v2967
        %3039 = vmatpush.bf16.msra.mxu0 %v2964
        %3040 = vmatpush.bf16.msra.mxu0 %v2961
        %3041 = vmatmul.bf16.gmra.mxu0 %v2846
        %v3042 = vpop.f32.mrf.mxu0
        %v3043 = vadd.f32 %v637, %v3042
        %v3044 = vpop.f32.mrf.mxu0
        %3045 = vdwg.mxu0
        %s3046 = scalar_lea.vmem [#allocation3], 25
        %v3047 = vld [vmem:[%s3046] ss:$8 sm:$0x7]
        %v3048 = vadd.f32 %v3047, %v3017
        %v3049 = vxor.u32 %v3048, 2147483648
        %v3050 = vmul.f32 %v3049, 1.442695
        %v3051 = vpow.pop %v3050
        %v3052 = vadd.f32 %v3051, 1.0
        %v3053 = vrcp.pop %v3052
        %v3054 = vmul.f32 %v3052, %v3053
        %v3055 = vsub.f32 1.0, %v3054
        %v3056 = vmul.f32 %v3053, %v3055
        %v3057 = vadd.f32 %v3053, %v3056
        %vm3058 = vweird.f32 %v3052
        %vm3059 = vweird.f32 %v3053
        %vm3060 = vmor %vm3058, %vm3059
        %v3061 = vsel %vm3060, %v3053, %v3057
        %v3062 = vand.u32 2147483647, %v3052
        %vm3063 = vcmp.eq.f32.partialorder %v3062, 8.507059e+37
        %v3064 = vand.u32 %v3052, 2147483648
        %v3065 = vor.u32 1.1754944e-38, %v3064
        %v3066 = vsel %vm3063, %v3065, %v3061
        %v3067 = vmul.f32 1.0, %v3066
        %v3069 = vrot.slane %v3047, 1
        %v3071 = vadd.f32 %v3069, %v3030
        %v3072 = vxor.u32 %v3071, 2147483648
        %v3073 = vmul.f32 %v3072, 1.442695
        %v3074 = vpow.pop %v3073
        %v3075 = vadd.f32 %v3074, 1.0
        %v3076 = vrcp.pop %v3075
        %v3077 = vmul.f32 %v3075, %v3076
        %v3078 = vsub.f32 1.0, %v3077
        %v3079 = vmul.f32 %v3076, %v3078
        %v3080 = vadd.f32 %v3076, %v3079
        %vm3081 = vweird.f32 %v3075
        %vm3082 = vweird.f32 %v3076
        %vm3083 = vmor %vm3081, %vm3082
        %v3084 = vsel %vm3083, %v3076, %v3080
        %v3085 = vand.u32 2147483647, %v3075
        %vm3086 = vcmp.eq.f32.partialorder %v3085, 8.507059e+37
        %v3087 = vand.u32 %v3075, 2147483648
        %v3088 = vor.u32 1.1754944e-38, %v3087
        %v3089 = vsel %vm3086, %v3088, %v3084
        %v3090 = vmul.f32 1.0, %v3089
        %v3091 = vmul.f32 %v3067, %v3043
        %v3092 = vrot.slane %v3047, 2
        %v3094 = vadd.f32 %v3092, %v3091
        %v3095 = vtanh.pop %v3094
        %v3096 = vsub.f32 1.0, %v3090
        %v3097 = vmul.f32 %v3096, %v3095
        %v3098 = vmul.f32 %v3090, %v2845
        %v3099 = vadd.f32 %v3097, %v3098
        %s3100 = sadd.s32 %s733, 9
        %p3101 = scmp.lt.s32.totalorder %s3100, 40
        %s3102 = scalar_select %p3101, 1, 0
        %v3103 = vstv %s3102
        %vm3104 = vcmp.eq.s32.totalorder %v3103, 1
        %v3105 = vsel %vm3104, %v3099, %v2845
        %3106 = vst [vmem:[#allocation2] sm:$0x1] %v3105
        %3107 = vst [vmem:[#allocation4 + $0x9] sm:$0x1] %v3099
        %v3108 = vld [vmem:[#allocation2] sm:$0x1]
        %v3109 = vpack.c.bf16 %v3108, %v3108
        %v3110 = vld [vmem:[#allocation8] sm:$0xff]
        %v3111 = vld [vmem:[#allocation8 + $0x8] sm:$0xf]
        %v3112 = vld [vmem:[#allocation8 + $0xc] sm:$0xff]
        %v3113 = vld [vmem:[#allocation8 + $0x14] sm:$0xf]
        %v3114 = vld [vmem:[#allocation8 + $0x18] sm:$0xff]
        %v3115 = vld [vmem:[#allocation8 + $0x20] sm:$0xf]
        %v3116 = vld [vmem:[#allocation8 + $0x24] sm:$0xff]
        %v3117 = vld [vmem:[#allocation8 + $0x2c] sm:$0xf]
        %v3118 = vld [vmem:[#allocation8 + $0x30] sm:$0xff]
        %v3119 = vld [vmem:[#allocation8 + $0x38] sm:$0xf]
        %v3120 = vld [vmem:[#allocation8 + $0x3c] sm:$0xff]
        %v3121 = vld [vmem:[#allocation8 + $0x44] sm:$0xf]
        %v3122 = vld [vmem:[#allocation8 + $0x48] sm:$0xff]
        %v3123 = vld [vmem:[#allocation8 + $0x50] sm:$0xf]
        %v3124 = vld [vmem:[#allocation8 + $0x54] sm:$0xff]
        %v3125 = vld [vmem:[#allocation8 + $0x5c] sm:$0xf]
        %v3126 = vld [vmem:[#allocation8 + $0x60] sm:$0xff]
        %v3127 = vld [vmem:[#allocation8 + $0x68] sm:$0xf]
        %v3128 = vld [vmem:[#allocation8 + $0x6c] sm:$0xff]
        %v3129 = vld [vmem:[#allocation8 + $0x74] sm:$0xf]
        %v3130 = vld [vmem:[#allocation8 + $0x78] sm:$0xff]
        %v3131 = vld [vmem:[#allocation8 + $0x80] sm:$0xf]
        %v3132 = vld [vmem:[#allocation8 + $0x84] sm:$0xff]
        %v3133 = vld [vmem:[#allocation8 + $0x8c] sm:$0xf]
        %v3134 = vld [vmem:[#allocation8 + $0x90] sm:$0xff]
        %v3135 = vld [vmem:[#allocation8 + $0x98] sm:$0xf]
        %v3136 = vld [vmem:[#allocation8 + $0x9c] sm:$0xff]
        %v3137 = vld [vmem:[#allocation8 + $0xa4] sm:$0xf]
        %v3138 = vld [vmem:[#allocation8 + $0xa8] sm:$0xff]
        %v3139 = vld [vmem:[#allocation8 + $0xb0] sm:$0xf]
        %v3140 = vld [vmem:[#allocation8 + $0xb4] sm:$0xff]
        %v3141 = vld [vmem:[#allocation8 + $0xbc] sm:$0xf]
        %v3174 = vunpack.c.l.b16 %v3110
        %v3175 = vunpack.c.h.b16 %v3110
        %v3176 = vunpack.c.l.b16 %v3111
        %v3177 = vunpack.c.l.b16 %v3112
        %v3178 = vunpack.c.h.b16 %v3112
        %v3179 = vunpack.c.l.b16 %v3113
        %v3180 = vunpack.c.l.b16 %v3114
        %v3181 = vunpack.c.h.b16 %v3114
        %v3182 = vunpack.c.l.b16 %v3115
        %v3183 = vunpack.c.l.b16 %v3116
        %v3184 = vunpack.c.h.b16 %v3116
        %v3185 = vunpack.c.l.b16 %v3117
        %v3186 = vunpack.c.l.b16 %v3118
        %v3187 = vunpack.c.h.b16 %v3118
        %v3188 = vunpack.c.l.b16 %v3119
        %v3189 = vunpack.c.l.b16 %v3120
        %v3190 = vunpack.c.h.b16 %v3120
        %v3191 = vunpack.c.l.b16 %v3121
        %v3192 = vunpack.c.l.b16 %v3122
        %v3193 = vunpack.c.h.b16 %v3122
        %v3194 = vunpack.c.l.b16 %v3123
        %v3195 = vunpack.c.l.b16 %v3124
        %v3196 = vunpack.c.h.b16 %v3124
        %v3197 = vunpack.c.l.b16 %v3125
        %v3198 = vunpack.c.l.b16 %v3126
        %v3199 = vunpack.c.h.b16 %v3126
        %v3200 = vunpack.c.l.b16 %v3127
        %v3201 = vunpack.c.l.b16 %v3128
        %v3202 = vunpack.c.h.b16 %v3128
        %v3203 = vunpack.c.l.b16 %v3129
        %v3204 = vunpack.c.l.b16 %v3130
        %v3205 = vunpack.c.h.b16 %v3130
        %v3206 = vunpack.c.l.b16 %v3131
        %v3207 = vunpack.c.l.b16 %v3132
        %v3208 = vunpack.c.h.b16 %v3132
        %v3209 = vunpack.c.l.b16 %v3133
        %v3210 = vunpack.c.l.b16 %v3134
        %v3211 = vunpack.c.h.b16 %v3134
        %v3212 = vunpack.c.l.b16 %v3135
        %v3213 = vunpack.c.l.b16 %v3136
        %v3214 = vunpack.c.h.b16 %v3136
        %v3215 = vunpack.c.l.b16 %v3137
        %v3216 = vunpack.c.l.b16 %v3138
        %v3217 = vunpack.c.h.b16 %v3138
        %v3218 = vunpack.c.l.b16 %v3139
        %v3219 = vunpack.c.l.b16 %v3140
        %v3220 = vunpack.c.h.b16 %v3140
        %v3221 = vunpack.c.l.b16 %v3141
        %v3222 = vpack.c.b16 %v3177, %v3174
        %v3223 = vpack.c.b16 %v3178, %v3175
        %v3224 = vpack.c.b16 %v3179, %v3176
        %v3225 = vpack.c.b16 %v3183, %v3180
        %v3226 = vpack.c.b16 %v3184, %v3181
        %v3227 = vpack.c.b16 %v3185, %v3182
        %v3228 = vpack.c.b16 %v3189, %v3186
        %v3229 = vpack.c.b16 %v3190, %v3187
        %v3230 = vpack.c.b16 %v3191, %v3188
        %v3231 = vpack.c.b16 %v3195, %v3192
        %v3232 = vpack.c.b16 %v3196, %v3193
        %v3233 = vpack.c.b16 %v3197, %v3194
        %v3234 = vpack.c.b16 %v3201, %v3198
        %v3235 = vpack.c.b16 %v3202, %v3199
        %v3236 = vpack.c.b16 %v3203, %v3200
        %v3237 = vpack.c.b16 %v3207, %v3204
        %v3238 = vpack.c.b16 %v3208, %v3205
        %v3239 = vpack.c.b16 %v3209, %v3206
        %v3240 = vpack.c.b16 %v3213, %v3210
        %v3241 = vpack.c.b16 %v3214, %v3211
        %v3242 = vpack.c.b16 %v3215, %v3212
        %v3243 = vpack.c.b16 %v3219, %v3216
        %v3244 = vpack.c.b16 %v3220, %v3217
        %v3245 = vpack.c.b16 %v3221, %v3218
        %3270 = vmatpush.bf16.msra.mxu0 %v3243
        %3271 = vmatpush.bf16.msra.mxu0 %v3240
        %3272 = vmatpush.bf16.msra.mxu0 %v3237
        %3273 = vmatpush.bf16.msra.mxu0 %v3234
        %3274 = vmatpush.bf16.msra.mxu0 %v3231
        %3275 = vmatpush.bf16.msra.mxu0 %v3228
        %3276 = vmatpush.bf16.msra.mxu0 %v3225
        %3277 = vmatpush.bf16.msra.mxu0 %v3222
        %3278 = vmatmul.bf16.gmra.mxu0 %v3109
        %v3279 = vpop.f32.mrf.mxu0
        %v3280 = vadd.f32 %v635, %v3279
        %v3281 = vpop.f32.mrf.mxu0
        %3282 = vdwg.mxu0
        %3283 = vmatpush.bf16.msra.mxu0 %v3244
        %3284 = vmatpush.bf16.msra.mxu0 %v3241
        %3285 = vmatpush.bf16.msra.mxu0 %v3238
        %3286 = vmatpush.bf16.msra.mxu0 %v3235
        %3287 = vmatpush.bf16.msra.mxu0 %v3232
        %3288 = vmatpush.bf16.msra.mxu0 %v3229
        %3289 = vmatpush.bf16.msra.mxu0 %v3226
        %3290 = vmatpush.bf16.msra.mxu0 %v3223
        %3291 = vmatmul.bf16.gmra.mxu0 %v3109
        %v3292 = vpop.f32.mrf.mxu0
        %v3293 = vadd.f32 %v636, %v3292
        %v3294 = vpop.f32.mrf.mxu0
        %3295 = vdwg.mxu0
        %3296 = vmatpush.bf16.msra.mxu0 %v3245
        %3297 = vmatpush.bf16.msra.mxu0 %v3242
        %3298 = vmatpush.bf16.msra.mxu0 %v3239
        %3299 = vmatpush.bf16.msra.mxu0 %v3236
        %3300 = vmatpush.bf16.msra.mxu0 %v3233
        %3301 = vmatpush.bf16.msra.mxu0 %v3230
        %3302 = vmatpush.bf16.msra.mxu0 %v3227
        %3303 = vmatpush.bf16.msra.mxu0 %v3224
        %3304 = vmatmul.bf16.gmra.mxu0 %v3109
        %v3305 = vpop.f32.mrf.mxu0
        %v3306 = vadd.f32 %v637, %v3305
        %v3307 = vpop.f32.mrf.mxu0
        %3308 = vdwg.mxu0
        %s3309 = scalar_lea.vmem [#allocation3], 26
        %v3310 = vld [vmem:[%s3309] ss:$8 sm:$0x7]
        %v3311 = vadd.f32 %v3310, %v3280
        %v3312 = vxor.u32 %v3311, 2147483648
        %v3313 = vmul.f32 %v3312, 1.442695
        %v3314 = vpow.pop %v3313
        %v3315 = vadd.f32 %v3314, 1.0
        %v3316 = vrcp.pop %v3315
        %v3317 = vmul.f32 %v3315, %v3316
        %v3318 = vsub.f32 1.0, %v3317
        %v3319 = vmul.f32 %v3316, %v3318
        %v3320 = vadd.f32 %v3316, %v3319
        %vm3321 = vweird.f32 %v3315
        %vm3322 = vweird.f32 %v3316
        %vm3323 = vmor %vm3321, %vm3322
        %v3324 = vsel %vm3323, %v3316, %v3320
        %v3325 = vand.u32 2147483647, %v3315
        %vm3326 = vcmp.eq.f32.partialorder %v3325, 8.507059e+37
        %v3327 = vand.u32 %v3315, 2147483648
        %v3328 = vor.u32 1.1754944e-38, %v3327
        %v3329 = vsel %vm3326, %v3328, %v3324
        %v3330 = vmul.f32 1.0, %v3329
        %v3332 = vrot.slane %v3310, 1
        %v3334 = vadd.f32 %v3332, %v3293
        %v3335 = vxor.u32 %v3334, 2147483648
        %v3336 = vmul.f32 %v3335, 1.442695
        %v3337 = vpow.pop %v3336
        %v3338 = vadd.f32 %v3337, 1.0
        %v3339 = vrcp.pop %v3338
        %v3340 = vmul.f32 %v3338, %v3339
        %v3341 = vsub.f32 1.0, %v3340
        %v3342 = vmul.f32 %v3339, %v3341
        %v3343 = vadd.f32 %v3339, %v3342
        %vm3344 = vweird.f32 %v3338
        %vm3345 = vweird.f32 %v3339
        %vm3346 = vmor %vm3344, %vm3345
        %v3347 = vsel %vm3346, %v3339, %v3343
        %v3348 = vand.u32 2147483647, %v3338
        %vm3349 = vcmp.eq.f32.partialorder %v3348, 8.507059e+37
        %v3350 = vand.u32 %v3338, 2147483648
        %v3351 = vor.u32 1.1754944e-38, %v3350
        %v3352 = vsel %vm3349, %v3351, %v3347
        %v3353 = vmul.f32 1.0, %v3352
        %v3354 = vmul.f32 %v3330, %v3306
        %v3355 = vrot.slane %v3310, 2
        %v3357 = vadd.f32 %v3355, %v3354
        %v3358 = vtanh.pop %v3357
        %v3359 = vsub.f32 1.0, %v3353
        %v3360 = vmul.f32 %v3359, %v3358
        %v3361 = vmul.f32 %v3353, %v3108
        %v3362 = vadd.f32 %v3360, %v3361
        %s3363 = sadd.s32 %s733, 10
        %p3364 = scmp.lt.s32.totalorder %s3363, 40
        %s3365 = scalar_select %p3364, 1, 0
        %v3366 = vstv %s3365
        %vm3367 = vcmp.eq.s32.totalorder %v3366, 1
        %v3368 = vsel %vm3367, %v3362, %v3108
        %3369 = vst [vmem:[#allocation2] sm:$0x1] %v3368
        %3370 = vst [vmem:[#allocation4 + $0xa] sm:$0x1] %v3362
        %v3371 = vld [vmem:[#allocation2] sm:$0x1]
        %v3372 = vpack.c.bf16 %v3371, %v3371
        %v3373 = vld [vmem:[#allocation8] sm:$0xff]
        %v3374 = vld [vmem:[#allocation8 + $0x8] sm:$0xf]
        %v3375 = vld [vmem:[#allocation8 + $0xc] sm:$0xff]
        %v3376 = vld [vmem:[#allocation8 + $0x14] sm:$0xf]
        %v3377 = vld [vmem:[#allocation8 + $0x18] sm:$0xff]
        %v3378 = vld [vmem:[#allocation8 + $0x20] sm:$0xf]
        %v3379 = vld [vmem:[#allocation8 + $0x24] sm:$0xff]
        %v3380 = vld [vmem:[#allocation8 + $0x2c] sm:$0xf]
        %v3381 = vld [vmem:[#allocation8 + $0x30] sm:$0xff]
        %v3382 = vld [vmem:[#allocation8 + $0x38] sm:$0xf]
        %v3383 = vld [vmem:[#allocation8 + $0x3c] sm:$0xff]
        %v3384 = vld [vmem:[#allocation8 + $0x44] sm:$0xf]
        %v3385 = vld [vmem:[#allocation8 + $0x48] sm:$0xff]
        %v3386 = vld [vmem:[#allocation8 + $0x50] sm:$0xf]
        %v3387 = vld [vmem:[#allocation8 + $0x54] sm:$0xff]
        %v3388 = vld [vmem:[#allocation8 + $0x5c] sm:$0xf]
        %v3389 = vld [vmem:[#allocation8 + $0x60] sm:$0xff]
        %v3390 = vld [vmem:[#allocation8 + $0x68] sm:$0xf]
        %v3391 = vld [vmem:[#allocation8 + $0x6c] sm:$0xff]
        %v3392 = vld [vmem:[#allocation8 + $0x74] sm:$0xf]
        %v3393 = vld [vmem:[#allocation8 + $0x78] sm:$0xff]
        %v3394 = vld [vmem:[#allocation8 + $0x80] sm:$0xf]
        %v3395 = vld [vmem:[#allocation8 + $0x84] sm:$0xff]
        %v3396 = vld [vmem:[#allocation8 + $0x8c] sm:$0xf]
        %v3397 = vld [vmem:[#allocation8 + $0x90] sm:$0xff]
        %v3398 = vld [vmem:[#allocation8 + $0x98] sm:$0xf]
        %v3399 = vld [vmem:[#allocation8 + $0x9c] sm:$0xff]
        %v3400 = vld [vmem:[#allocation8 + $0xa4] sm:$0xf]
        %v3401 = vld [vmem:[#allocation8 + $0xa8] sm:$0xff]
        %v3402 = vld [vmem:[#allocation8 + $0xb0] sm:$0xf]
        %v3403 = vld [vmem:[#allocation8 + $0xb4] sm:$0xff]
        %v3404 = vld [vmem:[#allocation8 + $0xbc] sm:$0xf]
        %v3437 = vunpack.c.l.b16 %v3373
        %v3438 = vunpack.c.h.b16 %v3373
        %v3439 = vunpack.c.l.b16 %v3374
        %v3440 = vunpack.c.l.b16 %v3375
        %v3441 = vunpack.c.h.b16 %v3375
        %v3442 = vunpack.c.l.b16 %v3376
        %v3443 = vunpack.c.l.b16 %v3377
        %v3444 = vunpack.c.h.b16 %v3377
        %v3445 = vunpack.c.l.b16 %v3378
        %v3446 = vunpack.c.l.b16 %v3379
        %v3447 = vunpack.c.h.b16 %v3379
        %v3448 = vunpack.c.l.b16 %v3380
        %v3449 = vunpack.c.l.b16 %v3381
        %v3450 = vunpack.c.h.b16 %v3381
        %v3451 = vunpack.c.l.b16 %v3382
        %v3452 = vunpack.c.l.b16 %v3383
        %v3453 = vunpack.c.h.b16 %v3383
        %v3454 = vunpack.c.l.b16 %v3384
        %v3455 = vunpack.c.l.b16 %v3385
        %v3456 = vunpack.c.h.b16 %v3385
        %v3457 = vunpack.c.l.b16 %v3386
        %v3458 = vunpack.c.l.b16 %v3387
        %v3459 = vunpack.c.h.b16 %v3387
        %v3460 = vunpack.c.l.b16 %v3388
        %v3461 = vunpack.c.l.b16 %v3389
        %v3462 = vunpack.c.h.b16 %v3389
        %v3463 = vunpack.c.l.b16 %v3390
        %v3464 = vunpack.c.l.b16 %v3391
        %v3465 = vunpack.c.h.b16 %v3391
        %v3466 = vunpack.c.l.b16 %v3392
        %v3467 = vunpack.c.l.b16 %v3393
        %v3468 = vunpack.c.h.b16 %v3393
        %v3469 = vunpack.c.l.b16 %v3394
        %v3470 = vunpack.c.l.b16 %v3395
        %v3471 = vunpack.c.h.b16 %v3395
        %v3472 = vunpack.c.l.b16 %v3396
        %v3473 = vunpack.c.l.b16 %v3397
        %v3474 = vunpack.c.h.b16 %v3397
        %v3475 = vunpack.c.l.b16 %v3398
        %v3476 = vunpack.c.l.b16 %v3399
        %v3477 = vunpack.c.h.b16 %v3399
        %v3478 = vunpack.c.l.b16 %v3400
        %v3479 = vunpack.c.l.b16 %v3401
        %v3480 = vunpack.c.h.b16 %v3401
        %v3481 = vunpack.c.l.b16 %v3402
        %v3482 = vunpack.c.l.b16 %v3403
        %v3483 = vunpack.c.h.b16 %v3403
        %v3484 = vunpack.c.l.b16 %v3404
        %v3485 = vpack.c.b16 %v3440, %v3437
        %v3486 = vpack.c.b16 %v3441, %v3438
        %v3487 = vpack.c.b16 %v3442, %v3439
        %v3488 = vpack.c.b16 %v3446, %v3443
        %v3489 = vpack.c.b16 %v3447, %v3444
        %v3490 = vpack.c.b16 %v3448, %v3445
        %v3491 = vpack.c.b16 %v3452, %v3449
        %v3492 = vpack.c.b16 %v3453, %v3450
        %v3493 = vpack.c.b16 %v3454, %v3451
        %v3494 = vpack.c.b16 %v3458, %v3455
        %v3495 = vpack.c.b16 %v3459, %v3456
        %v3496 = vpack.c.b16 %v3460, %v3457
        %v3497 = vpack.c.b16 %v3464, %v3461
        %v3498 = vpack.c.b16 %v3465, %v3462
        %v3499 = vpack.c.b16 %v3466, %v3463
        %v3500 = vpack.c.b16 %v3470, %v3467
        %v3501 = vpack.c.b16 %v3471, %v3468
        %v3502 = vpack.c.b16 %v3472, %v3469
        %v3503 = vpack.c.b16 %v3476, %v3473
        %v3504 = vpack.c.b16 %v3477, %v3474
        %v3505 = vpack.c.b16 %v3478, %v3475
        %v3506 = vpack.c.b16 %v3482, %v3479
        %v3507 = vpack.c.b16 %v3483, %v3480
        %v3508 = vpack.c.b16 %v3484, %v3481
        %3533 = vmatpush.bf16.msra.mxu0 %v3506
        %3534 = vmatpush.bf16.msra.mxu0 %v3503
        %3535 = vmatpush.bf16.msra.mxu0 %v3500
        %3536 = vmatpush.bf16.msra.mxu0 %v3497
        %3537 = vmatpush.bf16.msra.mxu0 %v3494
        %3538 = vmatpush.bf16.msra.mxu0 %v3491
        %3539 = vmatpush.bf16.msra.mxu0 %v3488
        %3540 = vmatpush.bf16.msra.mxu0 %v3485
        %3541 = vmatmul.bf16.gmra.mxu0 %v3372
        %v3542 = vpop.f32.mrf.mxu0
        %v3543 = vadd.f32 %v635, %v3542
        %v3544 = vpop.f32.mrf.mxu0
        %3545 = vdwg.mxu0
        %3546 = vmatpush.bf16.msra.mxu0 %v3507
        %3547 = vmatpush.bf16.msra.mxu0 %v3504
        %3548 = vmatpush.bf16.msra.mxu0 %v3501
        %3549 = vmatpush.bf16.msra.mxu0 %v3498
        %3550 = vmatpush.bf16.msra.mxu0 %v3495
        %3551 = vmatpush.bf16.msra.mxu0 %v3492
        %3552 = vmatpush.bf16.msra.mxu0 %v3489
        %3553 = vmatpush.bf16.msra.mxu0 %v3486
        %3554 = vmatmul.bf16.gmra.mxu0 %v3372
        %v3555 = vpop.f32.mrf.mxu0
        %v3556 = vadd.f32 %v636, %v3555
        %v3557 = vpop.f32.mrf.mxu0
        %3558 = vdwg.mxu0
        %3559 = vmatpush.bf16.msra.mxu0 %v3508
        %3560 = vmatpush.bf16.msra.mxu0 %v3505
        %3561 = vmatpush.bf16.msra.mxu0 %v3502
        %3562 = vmatpush.bf16.msra.mxu0 %v3499
        %3563 = vmatpush.bf16.msra.mxu0 %v3496
        %3564 = vmatpush.bf16.msra.mxu0 %v3493
        %3565 = vmatpush.bf16.msra.mxu0 %v3490
        %3566 = vmatpush.bf16.msra.mxu0 %v3487
        %3567 = vmatmul.bf16.gmra.mxu0 %v3372
        %v3568 = vpop.f32.mrf.mxu0
        %v3569 = vadd.f32 %v637, %v3568
        %v3570 = vpop.f32.mrf.mxu0
        %3571 = vdwg.mxu0
        %s3572 = scalar_lea.vmem [#allocation3], 27
        %v3573 = vld [vmem:[%s3572] ss:$8 sm:$0x7]
        %v3574 = vadd.f32 %v3573, %v3543
        %v3575 = vxor.u32 %v3574, 2147483648
        %v3576 = vmul.f32 %v3575, 1.442695
        %v3577 = vpow.pop %v3576
        %v3578 = vadd.f32 %v3577, 1.0
        %v3579 = vrcp.pop %v3578
        %v3580 = vmul.f32 %v3578, %v3579
        %v3581 = vsub.f32 1.0, %v3580
        %v3582 = vmul.f32 %v3579, %v3581
        %v3583 = vadd.f32 %v3579, %v3582
        %vm3584 = vweird.f32 %v3578
        %vm3585 = vweird.f32 %v3579
        %vm3586 = vmor %vm3584, %vm3585
        %v3587 = vsel %vm3586, %v3579, %v3583
        %v3588 = vand.u32 2147483647, %v3578
        %vm3589 = vcmp.eq.f32.partialorder %v3588, 8.507059e+37
        %v3590 = vand.u32 %v3578, 2147483648
        %v3591 = vor.u32 1.1754944e-38, %v3590
        %v3592 = vsel %vm3589, %v3591, %v3587
        %v3593 = vmul.f32 1.0, %v3592
        %v3595 = vrot.slane %v3573, 1
        %v3597 = vadd.f32 %v3595, %v3556
        %v3598 = vxor.u32 %v3597, 2147483648
        %v3599 = vmul.f32 %v3598, 1.442695
        %v3600 = vpow.pop %v3599
        %v3601 = vadd.f32 %v3600, 1.0
        %v3602 = vrcp.pop %v3601
        %v3603 = vmul.f32 %v3601, %v3602
        %v3604 = vsub.f32 1.0, %v3603
        %v3605 = vmul.f32 %v3602, %v3604
        %v3606 = vadd.f32 %v3602, %v3605
        %vm3607 = vweird.f32 %v3601
        %vm3608 = vweird.f32 %v3602
        %vm3609 = vmor %vm3607, %vm3608
        %v3610 = vsel %vm3609, %v3602, %v3606
        %v3611 = vand.u32 2147483647, %v3601
        %vm3612 = vcmp.eq.f32.partialorder %v3611, 8.507059e+37
        %v3613 = vand.u32 %v3601, 2147483648
        %v3614 = vor.u32 1.1754944e-38, %v3613
        %v3615 = vsel %vm3612, %v3614, %v3610
        %v3616 = vmul.f32 1.0, %v3615
        %v3617 = vmul.f32 %v3593, %v3569
        %v3618 = vrot.slane %v3573, 2
        %v3620 = vadd.f32 %v3618, %v3617
        %v3621 = vtanh.pop %v3620
        %v3622 = vsub.f32 1.0, %v3616
        %v3623 = vmul.f32 %v3622, %v3621
        %v3624 = vmul.f32 %v3616, %v3371
        %v3625 = vadd.f32 %v3623, %v3624
        %s3626 = sadd.s32 %s733, 11
        %p3627 = scmp.lt.s32.totalorder %s3626, 40
        %s3628 = scalar_select %p3627, 1, 0
        %v3629 = vstv %s3628
        %vm3630 = vcmp.eq.s32.totalorder %v3629, 1
        %v3631 = vsel %vm3630, %v3625, %v3371
        %3632 = vst [vmem:[#allocation2] sm:$0x1] %v3631
        %3633 = vst [vmem:[#allocation4 + $0xb] sm:$0x1] %v3625
        %v3634 = vld [vmem:[#allocation2] sm:$0x1]
        %v3635 = vpack.c.bf16 %v3634, %v3634
        %v3636 = vld [vmem:[#allocation8] sm:$0xff]
        %v3637 = vld [vmem:[#allocation8 + $0x8] sm:$0xf]
        %v3638 = vld [vmem:[#allocation8 + $0xc] sm:$0xff]
        %v3639 = vld [vmem:[#allocation8 + $0x14] sm:$0xf]
        %v3640 = vld [vmem:[#allocation8 + $0x18] sm:$0xff]
        %v3641 = vld [vmem:[#allocation8 + $0x20] sm:$0xf]
        %v3642 = vld [vmem:[#allocation8 + $0x24] sm:$0xff]
        %v3643 = vld [vmem:[#allocation8 + $0x2c] sm:$0xf]
        %v3644 = vld [vmem:[#allocation8 + $0x30] sm:$0xff]
        %v3645 = vld [vmem:[#allocation8 + $0x38] sm:$0xf]
        %v3646 = vld [vmem:[#allocation8 + $0x3c] sm:$0xff]
        %v3647 = vld [vmem:[#allocation8 + $0x44] sm:$0xf]
        %v3648 = vld [vmem:[#allocation8 + $0x48] sm:$0xff]
        %v3649 = vld [vmem:[#allocation8 + $0x50] sm:$0xf]
        %v3650 = vld [vmem:[#allocation8 + $0x54] sm:$0xff]
        %v3651 = vld [vmem:[#allocation8 + $0x5c] sm:$0xf]
        %v3652 = vld [vmem:[#allocation8 + $0x60] sm:$0xff]
        %v3653 = vld [vmem:[#allocation8 + $0x68] sm:$0xf]
        %v3654 = vld [vmem:[#allocation8 + $0x6c] sm:$0xff]
        %v3655 = vld [vmem:[#allocation8 + $0x74] sm:$0xf]
        %v3656 = vld [vmem:[#allocation8 + $0x78] sm:$0xff]
        %v3657 = vld [vmem:[#allocation8 + $0x80] sm:$0xf]
        %v3658 = vld [vmem:[#allocation8 + $0x84] sm:$0xff]
        %v3659 = vld [vmem:[#allocation8 + $0x8c] sm:$0xf]
        %v3660 = vld [vmem:[#allocation8 + $0x90] sm:$0xff]
        %v3661 = vld [vmem:[#allocation8 + $0x98] sm:$0xf]
        %v3662 = vld [vmem:[#allocation8 + $0x9c] sm:$0xff]
        %v3663 = vld [vmem:[#allocation8 + $0xa4] sm:$0xf]
        %v3664 = vld [vmem:[#allocation8 + $0xa8] sm:$0xff]
        %v3665 = vld [vmem:[#allocation8 + $0xb0] sm:$0xf]
        %v3666 = vld [vmem:[#allocation8 + $0xb4] sm:$0xff]
        %v3667 = vld [vmem:[#allocation8 + $0xbc] sm:$0xf]
        %v3700 = vunpack.c.l.b16 %v3636
        %v3701 = vunpack.c.h.b16 %v3636
        %v3702 = vunpack.c.l.b16 %v3637
        %v3703 = vunpack.c.l.b16 %v3638
        %v3704 = vunpack.c.h.b16 %v3638
        %v3705 = vunpack.c.l.b16 %v3639
        %v3706 = vunpack.c.l.b16 %v3640
        %v3707 = vunpack.c.h.b16 %v3640
        %v3708 = vunpack.c.l.b16 %v3641
        %v3709 = vunpack.c.l.b16 %v3642
        %v3710 = vunpack.c.h.b16 %v3642
        %v3711 = vunpack.c.l.b16 %v3643
        %v3712 = vunpack.c.l.b16 %v3644
        %v3713 = vunpack.c.h.b16 %v3644
        %v3714 = vunpack.c.l.b16 %v3645
        %v3715 = vunpack.c.l.b16 %v3646
        %v3716 = vunpack.c.h.b16 %v3646
        %v3717 = vunpack.c.l.b16 %v3647
        %v3718 = vunpack.c.l.b16 %v3648
        %v3719 = vunpack.c.h.b16 %v3648
        %v3720 = vunpack.c.l.b16 %v3649
        %v3721 = vunpack.c.l.b16 %v3650
        %v3722 = vunpack.c.h.b16 %v3650
        %v3723 = vunpack.c.l.b16 %v3651
        %v3724 = vunpack.c.l.b16 %v3652
        %v3725 = vunpack.c.h.b16 %v3652
        %v3726 = vunpack.c.l.b16 %v3653
        %v3727 = vunpack.c.l.b16 %v3654
        %v3728 = vunpack.c.h.b16 %v3654
        %v3729 = vunpack.c.l.b16 %v3655
        %v3730 = vunpack.c.l.b16 %v3656
        %v3731 = vunpack.c.h.b16 %v3656
        %v3732 = vunpack.c.l.b16 %v3657
        %v3733 = vunpack.c.l.b16 %v3658
        %v3734 = vunpack.c.h.b16 %v3658
        %v3735 = vunpack.c.l.b16 %v3659
        %v3736 = vunpack.c.l.b16 %v3660
        %v3737 = vunpack.c.h.b16 %v3660
        %v3738 = vunpack.c.l.b16 %v3661
        %v3739 = vunpack.c.l.b16 %v3662
        %v3740 = vunpack.c.h.b16 %v3662
        %v3741 = vunpack.c.l.b16 %v3663
        %v3742 = vunpack.c.l.b16 %v3664
        %v3743 = vunpack.c.h.b16 %v3664
        %v3744 = vunpack.c.l.b16 %v3665
        %v3745 = vunpack.c.l.b16 %v3666
        %v3746 = vunpack.c.h.b16 %v3666
        %v3747 = vunpack.c.l.b16 %v3667
        %v3748 = vpack.c.b16 %v3703, %v3700
        %v3749 = vpack.c.b16 %v3704, %v3701
        %v3750 = vpack.c.b16 %v3705, %v3702
        %v3751 = vpack.c.b16 %v3709, %v3706
        %v3752 = vpack.c.b16 %v3710, %v3707
        %v3753 = vpack.c.b16 %v3711, %v3708
        %v3754 = vpack.c.b16 %v3715, %v3712
        %v3755 = vpack.c.b16 %v3716, %v3713
        %v3756 = vpack.c.b16 %v3717, %v3714
        %v3757 = vpack.c.b16 %v3721, %v3718
        %v3758 = vpack.c.b16 %v3722, %v3719
        %v3759 = vpack.c.b16 %v3723, %v3720
        %v3760 = vpack.c.b16 %v3727, %v3724
        %v3761 = vpack.c.b16 %v3728, %v3725
        %v3762 = vpack.c.b16 %v3729, %v3726
        %v3763 = vpack.c.b16 %v3733, %v3730
        %v3764 = vpack.c.b16 %v3734, %v3731
        %v3765 = vpack.c.b16 %v3735, %v3732
        %v3766 = vpack.c.b16 %v3739, %v3736
        %v3767 = vpack.c.b16 %v3740, %v3737
        %v3768 = vpack.c.b16 %v3741, %v3738
        %v3769 = vpack.c.b16 %v3745, %v3742
        %v3770 = vpack.c.b16 %v3746, %v3743
        %v3771 = vpack.c.b16 %v3747, %v3744
        %3796 = vmatpush.bf16.msra.mxu0 %v3769
        %3797 = vmatpush.bf16.msra.mxu0 %v3766
        %3798 = vmatpush.bf16.msra.mxu0 %v3763
        %3799 = vmatpush.bf16.msra.mxu0 %v3760
        %3800 = vmatpush.bf16.msra.mxu0 %v3757
        %3801 = vmatpush.bf16.msra.mxu0 %v3754
        %3802 = vmatpush.bf16.msra.mxu0 %v3751
        %3803 = vmatpush.bf16.msra.mxu0 %v3748
        %3804 = vmatmul.bf16.gmra.mxu0 %v3635
        %v3805 = vpop.f32.mrf.mxu0
        %v3806 = vadd.f32 %v635, %v3805
        %v3807 = vpop.f32.mrf.mxu0
        %3808 = vdwg.mxu0
        %3809 = vmatpush.bf16.msra.mxu0 %v3770
        %3810 = vmatpush.bf16.msra.mxu0 %v3767
        %3811 = vmatpush.bf16.msra.mxu0 %v3764
        %3812 = vmatpush.bf16.msra.mxu0 %v3761
        %3813 = vmatpush.bf16.msra.mxu0 %v3758
        %3814 = vmatpush.bf16.msra.mxu0 %v3755
        %3815 = vmatpush.bf16.msra.mxu0 %v3752
        %3816 = vmatpush.bf16.msra.mxu0 %v3749
        %3817 = vmatmul.bf16.gmra.mxu0 %v3635
        %v3818 = vpop.f32.mrf.mxu0
        %v3819 = vadd.f32 %v636, %v3818
        %v3820 = vpop.f32.mrf.mxu0
        %3821 = vdwg.mxu0
        %3822 = vmatpush.bf16.msra.mxu0 %v3771
        %3823 = vmatpush.bf16.msra.mxu0 %v3768
        %3824 = vmatpush.bf16.msra.mxu0 %v3765
        %3825 = vmatpush.bf16.msra.mxu0 %v3762
        %3826 = vmatpush.bf16.msra.mxu0 %v3759
        %3827 = vmatpush.bf16.msra.mxu0 %v3756
        %3828 = vmatpush.bf16.msra.mxu0 %v3753
        %3829 = vmatpush.bf16.msra.mxu0 %v3750
        %3830 = vmatmul.bf16.gmra.mxu0 %v3635
        %v3831 = vpop.f32.mrf.mxu0
        %v3832 = vadd.f32 %v637, %v3831
        %v3833 = vpop.f32.mrf.mxu0
        %3834 = vdwg.mxu0
        %s3835 = scalar_lea.vmem [#allocation3], 28
        %v3836 = vld [vmem:[%s3835] ss:$8 sm:$0x7]
        %v3837 = vadd.f32 %v3836, %v3806
        %v3838 = vxor.u32 %v3837, 2147483648
        %v3839 = vmul.f32 %v3838, 1.442695
        %v3840 = vpow.pop %v3839
        %v3841 = vadd.f32 %v3840, 1.0
        %v3842 = vrcp.pop %v3841
        %v3843 = vmul.f32 %v3841, %v3842
        %v3844 = vsub.f32 1.0, %v3843
        %v3845 = vmul.f32 %v3842, %v3844
        %v3846 = vadd.f32 %v3842, %v3845
        %vm3847 = vweird.f32 %v3841
        %vm3848 = vweird.f32 %v3842
        %vm3849 = vmor %vm3847, %vm3848
        %v3850 = vsel %vm3849, %v3842, %v3846
        %v3851 = vand.u32 2147483647, %v3841
        %vm3852 = vcmp.eq.f32.partialorder %v3851, 8.507059e+37
        %v3853 = vand.u32 %v3841, 2147483648
        %v3854 = vor.u32 1.1754944e-38, %v3853
        %v3855 = vsel %vm3852, %v3854, %v3850
        %v3856 = vmul.f32 1.0, %v3855
        %v3858 = vrot.slane %v3836, 1
        %v3860 = vadd.f32 %v3858, %v3819
        %v3861 = vxor.u32 %v3860, 2147483648
        %v3862 = vmul.f32 %v3861, 1.442695
        %v3863 = vpow.pop %v3862
        %v3864 = vadd.f32 %v3863, 1.0
        %v3865 = vrcp.pop %v3864
        %v3866 = vmul.f32 %v3864, %v3865
        %v3867 = vsub.f32 1.0, %v3866
        %v3868 = vmul.f32 %v3865, %v3867
        %v3869 = vadd.f32 %v3865, %v3868
        %vm3870 = vweird.f32 %v3864
        %vm3871 = vweird.f32 %v3865
        %vm3872 = vmor %vm3870, %vm3871
        %v3873 = vsel %vm3872, %v3865, %v3869
        %v3874 = vand.u32 2147483647, %v3864
        %vm3875 = vcmp.eq.f32.partialorder %v3874, 8.507059e+37
        %v3876 = vand.u32 %v3864, 2147483648
        %v3877 = vor.u32 1.1754944e-38, %v3876
        %v3878 = vsel %vm3875, %v3877, %v3873
        %v3879 = vmul.f32 1.0, %v3878
        %v3880 = vmul.f32 %v3856, %v3832
        %v3881 = vrot.slane %v3836, 2
        %v3883 = vadd.f32 %v3881, %v3880
        %v3884 = vtanh.pop %v3883
        %v3885 = vsub.f32 1.0, %v3879
        %v3886 = vmul.f32 %v3885, %v3884
        %v3887 = vmul.f32 %v3879, %v3634
        %v3888 = vadd.f32 %v3886, %v3887
        %s3889 = sadd.s32 %s733, 12
        %p3890 = scmp.lt.s32.totalorder %s3889, 40
        %s3891 = scalar_select %p3890, 1, 0
        %v3892 = vstv %s3891
        %vm3893 = vcmp.eq.s32.totalorder %v3892, 1
        %v3894 = vsel %vm3893, %v3888, %v3634
        %3895 = vst [vmem:[#allocation2] sm:$0x1] %v3894
        %3896 = vst [vmem:[#allocation4 + $0xc] sm:$0x1] %v3888
        %v3897 = vld [vmem:[#allocation2] sm:$0x1]
        %v3898 = vpack.c.bf16 %v3897, %v3897
        %v3899 = vld [vmem:[#allocation8] sm:$0xff]
        %v3900 = vld [vmem:[#allocation8 + $0x8] sm:$0xf]
        %v3901 = vld [vmem:[#allocation8 + $0xc] sm:$0xff]
        %v3902 = vld [vmem:[#allocation8 + $0x14] sm:$0xf]
        %v3903 = vld [vmem:[#allocation8 + $0x18] sm:$0xff]
        %v3904 = vld [vmem:[#allocation8 + $0x20] sm:$0xf]
        %v3905 = vld [vmem:[#allocation8 + $0x24] sm:$0xff]
        %v3906 = vld [vmem:[#allocation8 + $0x2c] sm:$0xf]
        %v3907 = vld [vmem:[#allocation8 + $0x30] sm:$0xff]
        %v3908 = vld [vmem:[#allocation8 + $0x38] sm:$0xf]
        %v3909 = vld [vmem:[#allocation8 + $0x3c] sm:$0xff]
        %v3910 = vld [vmem:[#allocation8 + $0x44] sm:$0xf]
        %v3911 = vld [vmem:[#allocation8 + $0x48] sm:$0xff]
        %v3912 = vld [vmem:[#allocation8 + $0x50] sm:$0xf]
        %v3913 = vld [vmem:[#allocation8 + $0x54] sm:$0xff]
        %v3914 = vld [vmem:[#allocation8 + $0x5c] sm:$0xf]
        %v3915 = vld [vmem:[#allocation8 + $0x60] sm:$0xff]
        %v3916 = vld [vmem:[#allocation8 + $0x68] sm:$0xf]
        %v3917 = vld [vmem:[#allocation8 + $0x6c] sm:$0xff]
        %v3918 = vld [vmem:[#allocation8 + $0x74] sm:$0xf]
        %v3919 = vld [vmem:[#allocation8 + $0x78] sm:$0xff]
        %v3920 = vld [vmem:[#allocation8 + $0x80] sm:$0xf]
        %v3921 = vld [vmem:[#allocation8 + $0x84] sm:$0xff]
        %v3922 = vld [vmem:[#allocation8 + $0x8c] sm:$0xf]
        %v3923 = vld [vmem:[#allocation8 + $0x90] sm:$0xff]
        %v3924 = vld [vmem:[#allocation8 + $0x98] sm:$0xf]
        %v3925 = vld [vmem:[#allocation8 + $0x9c] sm:$0xff]
        %v3926 = vld [vmem:[#allocation8 + $0xa4] sm:$0xf]
        %v3927 = vld [vmem:[#allocation8 + $0xa8] sm:$0xff]
        %v3928 = vld [vmem:[#allocation8 + $0xb0] sm:$0xf]
        %v3929 = vld [vmem:[#allocation8 + $0xb4] sm:$0xff]
        %v3930 = vld [vmem:[#allocation8 + $0xbc] sm:$0xf]
        %v3963 = vunpack.c.l.b16 %v3899
        %v3964 = vunpack.c.h.b16 %v3899
        %v3965 = vunpack.c.l.b16 %v3900
        %v3966 = vunpack.c.l.b16 %v3901
        %v3967 = vunpack.c.h.b16 %v3901
        %v3968 = vunpack.c.l.b16 %v3902
        %v3969 = vunpack.c.l.b16 %v3903
        %v3970 = vunpack.c.h.b16 %v3903
        %v3971 = vunpack.c.l.b16 %v3904
        %v3972 = vunpack.c.l.b16 %v3905
        %v3973 = vunpack.c.h.b16 %v3905
        %v3974 = vunpack.c.l.b16 %v3906
        %v3975 = vunpack.c.l.b16 %v3907
        %v3976 = vunpack.c.h.b16 %v3907
        %v3977 = vunpack.c.l.b16 %v3908
        %v3978 = vunpack.c.l.b16 %v3909
        %v3979 = vunpack.c.h.b16 %v3909
        %v3980 = vunpack.c.l.b16 %v3910
        %v3981 = vunpack.c.l.b16 %v3911
        %v3982 = vunpack.c.h.b16 %v3911
        %v3983 = vunpack.c.l.b16 %v3912
        %v3984 = vunpack.c.l.b16 %v3913
        %v3985 = vunpack.c.h.b16 %v3913
        %v3986 = vunpack.c.l.b16 %v3914
        %v3987 = vunpack.c.l.b16 %v3915
        %v3988 = vunpack.c.h.b16 %v3915
        %v3989 = vunpack.c.l.b16 %v3916
        %v3990 = vunpack.c.l.b16 %v3917
        %v3991 = vunpack.c.h.b16 %v3917
        %v3992 = vunpack.c.l.b16 %v3918
        %v3993 = vunpack.c.l.b16 %v3919
        %v3994 = vunpack.c.h.b16 %v3919
        %v3995 = vunpack.c.l.b16 %v3920
        %v3996 = vunpack.c.l.b16 %v3921
        %v3997 = vunpack.c.h.b16 %v3921
        %v3998 = vunpack.c.l.b16 %v3922
        %v3999 = vunpack.c.l.b16 %v3923
        %v4000 = vunpack.c.h.b16 %v3923
        %v4001 = vunpack.c.l.b16 %v3924
        %v4002 = vunpack.c.l.b16 %v3925
        %v4003 = vunpack.c.h.b16 %v3925
        %v4004 = vunpack.c.l.b16 %v3926
        %v4005 = vunpack.c.l.b16 %v3927
        %v4006 = vunpack.c.h.b16 %v3927
        %v4007 = vunpack.c.l.b16 %v3928
        %v4008 = vunpack.c.l.b16 %v3929
        %v4009 = vunpack.c.h.b16 %v3929
        %v4010 = vunpack.c.l.b16 %v3930
        %v4011 = vpack.c.b16 %v3966, %v3963
        %v4012 = vpack.c.b16 %v3967, %v3964
        %v4013 = vpack.c.b16 %v3968, %v3965
        %v4014 = vpack.c.b16 %v3972, %v3969
        %v4015 = vpack.c.b16 %v3973, %v3970
        %v4016 = vpack.c.b16 %v3974, %v3971
        %v4017 = vpack.c.b16 %v3978, %v3975
        %v4018 = vpack.c.b16 %v3979, %v3976
        %v4019 = vpack.c.b16 %v3980, %v3977
        %v4020 = vpack.c.b16 %v3984, %v3981
        %v4021 = vpack.c.b16 %v3985, %v3982
        %v4022 = vpack.c.b16 %v3986, %v3983
        %v4023 = vpack.c.b16 %v3990, %v3987
        %v4024 = vpack.c.b16 %v3991, %v3988
        %v4025 = vpack.c.b16 %v3992, %v3989
        %v4026 = vpack.c.b16 %v3996, %v3993
        %v4027 = vpack.c.b16 %v3997, %v3994
        %v4028 = vpack.c.b16 %v3998, %v3995
        %v4029 = vpack.c.b16 %v4002, %v3999
        %v4030 = vpack.c.b16 %v4003, %v4000
        %v4031 = vpack.c.b16 %v4004, %v4001
        %v4032 = vpack.c.b16 %v4008, %v4005
        %v4033 = vpack.c.b16 %v4009, %v4006
        %v4034 = vpack.c.b16 %v4010, %v4007
        %4059 = vmatpush.bf16.msra.mxu0 %v4032
        %4060 = vmatpush.bf16.msra.mxu0 %v4029
        %4061 = vmatpush.bf16.msra.mxu0 %v4026
        %4062 = vmatpush.bf16.msra.mxu0 %v4023
        %4063 = vmatpush.bf16.msra.mxu0 %v4020
        %4064 = vmatpush.bf16.msra.mxu0 %v4017
        %4065 = vmatpush.bf16.msra.mxu0 %v4014
        %4066 = vmatpush.bf16.msra.mxu0 %v4011
        %4067 = vmatmul.bf16.gmra.mxu0 %v3898
        %v4068 = vpop.f32.mrf.mxu0
        %v4069 = vadd.f32 %v635, %v4068
        %v4070 = vpop.f32.mrf.mxu0
        %4071 = vdwg.mxu0
        %4072 = vmatpush.bf16.msra.mxu0 %v4033
        %4073 = vmatpush.bf16.msra.mxu0 %v4030
        %4074 = vmatpush.bf16.msra.mxu0 %v4027
        %4075 = vmatpush.bf16.msra.mxu0 %v4024
        %4076 = vmatpush.bf16.msra.mxu0 %v4021
        %4077 = vmatpush.bf16.msra.mxu0 %v4018
        %4078 = vmatpush.bf16.msra.mxu0 %v4015
        %4079 = vmatpush.bf16.msra.mxu0 %v4012
        %4080 = vmatmul.bf16.gmra.mxu0 %v3898
        %v4081 = vpop.f32.mrf.mxu0
        %v4082 = vadd.f32 %v636, %v4081
        %v4083 = vpop.f32.mrf.mxu0
        %4084 = vdwg.mxu0
        %4085 = vmatpush.bf16.msra.mxu0 %v4034
        %4086 = vmatpush.bf16.msra.mxu0 %v4031
        %4087 = vmatpush.bf16.msra.mxu0 %v4028
        %4088 = vmatpush.bf16.msra.mxu0 %v4025
        %4089 = vmatpush.bf16.msra.mxu0 %v4022
        %4090 = vmatpush.bf16.msra.mxu0 %v4019
        %4091 = vmatpush.bf16.msra.mxu0 %v4016
        %4092 = vmatpush.bf16.msra.mxu0 %v4013
        %4093 = vmatmul.bf16.gmra.mxu0 %v3898
        %v4094 = vpop.f32.mrf.mxu0
        %v4095 = vadd.f32 %v637, %v4094
        %v4096 = vpop.f32.mrf.mxu0
        %4097 = vdwg.mxu0
        %s4098 = scalar_lea.vmem [#allocation3], 29
        %v4099 = vld [vmem:[%s4098] ss:$8 sm:$0x7]
        %v4100 = vadd.f32 %v4099, %v4069
        %v4101 = vxor.u32 %v4100, 2147483648
        %v4102 = vmul.f32 %v4101, 1.442695
        %v4103 = vpow.pop %v4102
        %v4104 = vadd.f32 %v4103, 1.0
        %v4105 = vrcp.pop %v4104
        %v4106 = vmul.f32 %v4104, %v4105
        %v4107 = vsub.f32 1.0, %v4106
        %v4108 = vmul.f32 %v4105, %v4107
        %v4109 = vadd.f32 %v4105, %v4108
        %vm4110 = vweird.f32 %v4104
        %vm4111 = vweird.f32 %v4105
        %vm4112 = vmor %vm4110, %vm4111
        %v4113 = vsel %vm4112, %v4105, %v4109
        %v4114 = vand.u32 2147483647, %v4104
        %vm4115 = vcmp.eq.f32.partialorder %v4114, 8.507059e+37
        %v4116 = vand.u32 %v4104, 2147483648
        %v4117 = vor.u32 1.1754944e-38, %v4116
        %v4118 = vsel %vm4115, %v4117, %v4113
        %v4119 = vmul.f32 1.0, %v4118
        %v4121 = vrot.slane %v4099, 1
        %v4123 = vadd.f32 %v4121, %v4082
        %v4124 = vxor.u32 %v4123, 2147483648
        %v4125 = vmul.f32 %v4124, 1.442695
        %v4126 = vpow.pop %v4125
        %v4127 = vadd.f32 %v4126, 1.0
        %v4128 = vrcp.pop %v4127
        %v4129 = vmul.f32 %v4127, %v4128
        %v4130 = vsub.f32 1.0, %v4129
        %v4131 = vmul.f32 %v4128, %v4130
        %v4132 = vadd.f32 %v4128, %v4131
        %vm4133 = vweird.f32 %v4127
        %vm4134 = vweird.f32 %v4128
        %vm4135 = vmor %vm4133, %vm4134
        %v4136 = vsel %vm4135, %v4128, %v4132
        %v4137 = vand.u32 2147483647, %v4127
        %vm4138 = vcmp.eq.f32.partialorder %v4137, 8.507059e+37
        %v4139 = vand.u32 %v4127, 2147483648
        %v4140 = vor.u32 1.1754944e-38, %v4139
        %v4141 = vsel %vm4138, %v4140, %v4136
        %v4142 = vmul.f32 1.0, %v4141
        %v4143 = vmul.f32 %v4119, %v4095
        %v4144 = vrot.slane %v4099, 2
        %v4146 = vadd.f32 %v4144, %v4143
        %v4147 = vtanh.pop %v4146
        %v4148 = vsub.f32 1.0, %v4142
        %v4149 = vmul.f32 %v4148, %v4147
        %v4150 = vmul.f32 %v4142, %v3897
        %v4151 = vadd.f32 %v4149, %v4150
        %s4152 = sadd.s32 %s733, 13
        %p4153 = scmp.lt.s32.totalorder %s4152, 40
        %s4154 = scalar_select %p4153, 1, 0
        %v4155 = vstv %s4154
        %vm4156 = vcmp.eq.s32.totalorder %v4155, 1
        %v4157 = vsel %vm4156, %v4151, %v3897
        %4158 = vst [vmem:[#allocation2] sm:$0x1] %v4157
        %4159 = vst [vmem:[#allocation4 + $0xd] sm:$0x1] %v4151
        %v4160 = vld [vmem:[#allocation2] sm:$0x1]
        %v4161 = vpack.c.bf16 %v4160, %v4160
        %v4162 = vld [vmem:[#allocation8] sm:$0xff]
        %v4163 = vld [vmem:[#allocation8 + $0x8] sm:$0xf]
        %v4164 = vld [vmem:[#allocation8 + $0xc] sm:$0xff]
        %v4165 = vld [vmem:[#allocation8 + $0x14] sm:$0xf]
        %v4166 = vld [vmem:[#allocation8 + $0x18] sm:$0xff]
        %v4167 = vld [vmem:[#allocation8 + $0x20] sm:$0xf]
        %v4168 = vld [vmem:[#allocation8 + $0x24] sm:$0xff]
        %v4169 = vld [vmem:[#allocation8 + $0x2c] sm:$0xf]
        %v4170 = vld [vmem:[#allocation8 + $0x30] sm:$0xff]
        %v4171 = vld [vmem:[#allocation8 + $0x38] sm:$0xf]
        %v4172 = vld [vmem:[#allocation8 + $0x3c] sm:$0xff]
        %v4173 = vld [vmem:[#allocation8 + $0x44] sm:$0xf]
        %v4174 = vld [vmem:[#allocation8 + $0x48] sm:$0xff]
        %v4175 = vld [vmem:[#allocation8 + $0x50] sm:$0xf]
        %v4176 = vld [vmem:[#allocation8 + $0x54] sm:$0xff]
        %v4177 = vld [vmem:[#allocation8 + $0x5c] sm:$0xf]
        %v4178 = vld [vmem:[#allocation8 + $0x60] sm:$0xff]
        %v4179 = vld [vmem:[#allocation8 + $0x68] sm:$0xf]
        %v4180 = vld [vmem:[#allocation8 + $0x6c] sm:$0xff]
        %v4181 = vld [vmem:[#allocation8 + $0x74] sm:$0xf]
        %v4182 = vld [vmem:[#allocation8 + $0x78] sm:$0xff]
        %v4183 = vld [vmem:[#allocation8 + $0x80] sm:$0xf]
        %v4184 = vld [vmem:[#allocation8 + $0x84] sm:$0xff]
        %v4185 = vld [vmem:[#allocation8 + $0x8c] sm:$0xf]
        %v4186 = vld [vmem:[#allocation8 + $0x90] sm:$0xff]
        %v4187 = vld [vmem:[#allocation8 + $0x98] sm:$0xf]
        %v4188 = vld [vmem:[#allocation8 + $0x9c] sm:$0xff]
        %v4189 = vld [vmem:[#allocation8 + $0xa4] sm:$0xf]
        %v4190 = vld [vmem:[#allocation8 + $0xa8] sm:$0xff]
        %v4191 = vld [vmem:[#allocation8 + $0xb0] sm:$0xf]
        %v4192 = vld [vmem:[#allocation8 + $0xb4] sm:$0xff]
        %v4193 = vld [vmem:[#allocation8 + $0xbc] sm:$0xf]
        %v4226 = vunpack.c.l.b16 %v4162
        %v4227 = vunpack.c.h.b16 %v4162
        %v4228 = vunpack.c.l.b16 %v4163
        %v4229 = vunpack.c.l.b16 %v4164
        %v4230 = vunpack.c.h.b16 %v4164
        %v4231 = vunpack.c.l.b16 %v4165
        %v4232 = vunpack.c.l.b16 %v4166
        %v4233 = vunpack.c.h.b16 %v4166
        %v4234 = vunpack.c.l.b16 %v4167
        %v4235 = vunpack.c.l.b16 %v4168
        %v4236 = vunpack.c.h.b16 %v4168
        %v4237 = vunpack.c.l.b16 %v4169
        %v4238 = vunpack.c.l.b16 %v4170
        %v4239 = vunpack.c.h.b16 %v4170
        %v4240 = vunpack.c.l.b16 %v4171
        %v4241 = vunpack.c.l.b16 %v4172
        %v4242 = vunpack.c.h.b16 %v4172
        %v4243 = vunpack.c.l.b16 %v4173
        %v4244 = vunpack.c.l.b16 %v4174
        %v4245 = vunpack.c.h.b16 %v4174
        %v4246 = vunpack.c.l.b16 %v4175
        %v4247 = vunpack.c.l.b16 %v4176
        %v4248 = vunpack.c.h.b16 %v4176
        %v4249 = vunpack.c.l.b16 %v4177
        %v4250 = vunpack.c.l.b16 %v4178
        %v4251 = vunpack.c.h.b16 %v4178
        %v4252 = vunpack.c.l.b16 %v4179
        %v4253 = vunpack.c.l.b16 %v4180
        %v4254 = vunpack.c.h.b16 %v4180
        %v4255 = vunpack.c.l.b16 %v4181
        %v4256 = vunpack.c.l.b16 %v4182
        %v4257 = vunpack.c.h.b16 %v4182
        %v4258 = vunpack.c.l.b16 %v4183
        %v4259 = vunpack.c.l.b16 %v4184
        %v4260 = vunpack.c.h.b16 %v4184
        %v4261 = vunpack.c.l.b16 %v4185
        %v4262 = vunpack.c.l.b16 %v4186
        %v4263 = vunpack.c.h.b16 %v4186
        %v4264 = vunpack.c.l.b16 %v4187
        %v4265 = vunpack.c.l.b16 %v4188
        %v4266 = vunpack.c.h.b16 %v4188
        %v4267 = vunpack.c.l.b16 %v4189
        %v4268 = vunpack.c.l.b16 %v4190
        %v4269 = vunpack.c.h.b16 %v4190
        %v4270 = vunpack.c.l.b16 %v4191
        %v4271 = vunpack.c.l.b16 %v4192
        %v4272 = vunpack.c.h.b16 %v4192
        %v4273 = vunpack.c.l.b16 %v4193
        %v4274 = vpack.c.b16 %v4229, %v4226
        %v4275 = vpack.c.b16 %v4230, %v4227
        %v4276 = vpack.c.b16 %v4231, %v4228
        %v4277 = vpack.c.b16 %v4235, %v4232
        %v4278 = vpack.c.b16 %v4236, %v4233
        %v4279 = vpack.c.b16 %v4237, %v4234
        %v4280 = vpack.c.b16 %v4241, %v4238
        %v4281 = vpack.c.b16 %v4242, %v4239
        %v4282 = vpack.c.b16 %v4243, %v4240
        %v4283 = vpack.c.b16 %v4247, %v4244
        %v4284 = vpack.c.b16 %v4248, %v4245
        %v4285 = vpack.c.b16 %v4249, %v4246
        %v4286 = vpack.c.b16 %v4253, %v4250
        %v4287 = vpack.c.b16 %v4254, %v4251
        %v4288 = vpack.c.b16 %v4255, %v4252
        %v4289 = vpack.c.b16 %v4259, %v4256
        %v4290 = vpack.c.b16 %v4260, %v4257
        %v4291 = vpack.c.b16 %v4261, %v4258
        %v4292 = vpack.c.b16 %v4265, %v4262
        %v4293 = vpack.c.b16 %v4266, %v4263
        %v4294 = vpack.c.b16 %v4267, %v4264
        %v4295 = vpack.c.b16 %v4271, %v4268
        %v4296 = vpack.c.b16 %v4272, %v4269
        %v4297 = vpack.c.b16 %v4273, %v4270
        %4322 = vmatpush.bf16.msra.mxu0 %v4295
        %4323 = vmatpush.bf16.msra.mxu0 %v4292
        %4324 = vmatpush.bf16.msra.mxu0 %v4289
        %4325 = vmatpush.bf16.msra.mxu0 %v4286
        %4326 = vmatpush.bf16.msra.mxu0 %v4283
        %4327 = vmatpush.bf16.msra.mxu0 %v4280
        %4328 = vmatpush.bf16.msra.mxu0 %v4277
        %4329 = vmatpush.bf16.msra.mxu0 %v4274
        %4330 = vmatmul.bf16.gmra.mxu0 %v4161
        %v4331 = vpop.f32.mrf.mxu0
        %v4332 = vadd.f32 %v635, %v4331
        %v4333 = vpop.f32.mrf.mxu0
        %4334 = vdwg.mxu0
        %4335 = vmatpush.bf16.msra.mxu0 %v4296
        %4336 = vmatpush.bf16.msra.mxu0 %v4293
        %4337 = vmatpush.bf16.msra.mxu0 %v4290
        %4338 = vmatpush.bf16.msra.mxu0 %v4287
        %4339 = vmatpush.bf16.msra.mxu0 %v4284
        %4340 = vmatpush.bf16.msra.mxu0 %v4281
        %4341 = vmatpush.bf16.msra.mxu0 %v4278
        %4342 = vmatpush.bf16.msra.mxu0 %v4275
        %4343 = vmatmul.bf16.gmra.mxu0 %v4161
        %v4344 = vpop.f32.mrf.mxu0
        %v4345 = vadd.f32 %v636, %v4344
        %v4346 = vpop.f32.mrf.mxu0
        %4347 = vdwg.mxu0
        %4348 = vmatpush.bf16.msra.mxu0 %v4297
        %4349 = vmatpush.bf16.msra.mxu0 %v4294
        %4350 = vmatpush.bf16.msra.mxu0 %v4291
        %4351 = vmatpush.bf16.msra.mxu0 %v4288
        %4352 = vmatpush.bf16.msra.mxu0 %v4285
        %4353 = vmatpush.bf16.msra.mxu0 %v4282
        %4354 = vmatpush.bf16.msra.mxu0 %v4279
        %4355 = vmatpush.bf16.msra.mxu0 %v4276
        %4356 = vmatmul.bf16.gmra.mxu0 %v4161
        %v4357 = vpop.f32.mrf.mxu0
        %v4358 = vadd.f32 %v637, %v4357
        %v4359 = vpop.f32.mrf.mxu0
        %4360 = vdwg.mxu0
        %s4361 = scalar_lea.vmem [#allocation3], 30
        %v4362 = vld [vmem:[%s4361] ss:$8 sm:$0x7]
        %v4363 = vadd.f32 %v4362, %v4332
        %v4364 = vxor.u32 %v4363, 2147483648
        %v4365 = vmul.f32 %v4364, 1.442695
        %v4366 = vpow.pop %v4365
        %v4367 = vadd.f32 %v4366, 1.0
        %v4368 = vrcp.pop %v4367
        %v4369 = vmul.f32 %v4367, %v4368
        %v4370 = vsub.f32 1.0, %v4369
        %v4371 = vmul.f32 %v4368, %v4370
        %v4372 = vadd.f32 %v4368, %v4371
        %vm4373 = vweird.f32 %v4367
        %vm4374 = vweird.f32 %v4368
        %vm4375 = vmor %vm4373, %vm4374
        %v4376 = vsel %vm4375, %v4368, %v4372
        %v4377 = vand.u32 2147483647, %v4367
        %vm4378 = vcmp.eq.f32.partialorder %v4377, 8.507059e+37
        %v4379 = vand.u32 %v4367, 2147483648
        %v4380 = vor.u32 1.1754944e-38, %v4379
        %v4381 = vsel %vm4378, %v4380, %v4376
        %v4382 = vmul.f32 1.0, %v4381
        %v4384 = vrot.slane %v4362, 1
        %v4386 = vadd.f32 %v4384, %v4345
        %v4387 = vxor.u32 %v4386, 2147483648
        %v4388 = vmul.f32 %v4387, 1.442695
        %v4389 = vpow.pop %v4388
        %v4390 = vadd.f32 %v4389, 1.0
        %v4391 = vrcp.pop %v4390
        %v4392 = vmul.f32 %v4390, %v4391
        %v4393 = vsub.f32 1.0, %v4392
        %v4394 = vmul.f32 %v4391, %v4393
        %v4395 = vadd.f32 %v4391, %v4394
        %vm4396 = vweird.f32 %v4390
        %vm4397 = vweird.f32 %v4391
        %vm4398 = vmor %vm4396, %vm4397
        %v4399 = vsel %vm4398, %v4391, %v4395
        %v4400 = vand.u32 2147483647, %v4390
        %vm4401 = vcmp.eq.f32.partialorder %v4400, 8.507059e+37
        %v4402 = vand.u32 %v4390, 2147483648
        %v4403 = vor.u32 1.1754944e-38, %v4402
        %v4404 = vsel %vm4401, %v4403, %v4399
        %v4405 = vmul.f32 1.0, %v4404
        %v4406 = vmul.f32 %v4382, %v4358
        %v4407 = vrot.slane %v4362, 2
        %v4409 = vadd.f32 %v4407, %v4406
        %v4410 = vtanh.pop %v4409
        %v4411 = vsub.f32 1.0, %v4405
        %v4412 = vmul.f32 %v4411, %v4410
        %v4413 = vmul.f32 %v4405, %v4160
        %v4414 = vadd.f32 %v4412, %v4413
        %s4415 = sadd.s32 %s733, 14
        %p4416 = scmp.lt.s32.totalorder %s4415, 40
        %s4417 = scalar_select %p4416, 1, 0
        %v4418 = vstv %s4417
        %vm4419 = vcmp.eq.s32.totalorder %v4418, 1
        %v4420 = vsel %vm4419, %v4414, %v4160
        %4421 = vst [vmem:[#allocation2] sm:$0x1] %v4420
        %4422 = vst [vmem:[#allocation4 + $0xe] sm:$0x1] %v4414
        %v4423 = vld [vmem:[#allocation2] sm:$0x1]
        %v4424 = vpack.c.bf16 %v4423, %v4423
        %v4425 = vld [vmem:[#allocation8] sm:$0xff]
        %v4426 = vld [vmem:[#allocation8 + $0x8] sm:$0xf]
        %v4427 = vld [vmem:[#allocation8 + $0xc] sm:$0xff]
        %v4428 = vld [vmem:[#allocation8 + $0x14] sm:$0xf]
        %v4429 = vld [vmem:[#allocation8 + $0x18] sm:$0xff]
        %v4430 = vld [vmem:[#allocation8 + $0x20] sm:$0xf]
        %v4431 = vld [vmem:[#allocation8 + $0x24] sm:$0xff]
        %v4432 = vld [vmem:[#allocation8 + $0x2c] sm:$0xf]
        %v4433 = vld [vmem:[#allocation8 + $0x30] sm:$0xff]
        %v4434 = vld [vmem:[#allocation8 + $0x38] sm:$0xf]
        %v4435 = vld [vmem:[#allocation8 + $0x3c] sm:$0xff]
        %v4436 = vld [vmem:[#allocation8 + $0x44] sm:$0xf]
        %v4437 = vld [vmem:[#allocation8 + $0x48] sm:$0xff]
        %v4438 = vld [vmem:[#allocation8 + $0x50] sm:$0xf]
        %v4439 = vld [vmem:[#allocation8 + $0x54] sm:$0xff]
        %v4440 = vld [vmem:[#allocation8 + $0x5c] sm:$0xf]
        %v4441 = vld [vmem:[#allocation8 + $0x60] sm:$0xff]
        %v4442 = vld [vmem:[#allocation8 + $0x68] sm:$0xf]
        %v4443 = vld [vmem:[#allocation8 + $0x6c] sm:$0xff]
        %v4444 = vld [vmem:[#allocation8 + $0x74] sm:$0xf]
        %v4445 = vld [vmem:[#allocation8 + $0x78] sm:$0xff]
        %v4446 = vld [vmem:[#allocation8 + $0x80] sm:$0xf]
        %v4447 = vld [vmem:[#allocation8 + $0x84] sm:$0xff]
        %v4448 = vld [vmem:[#allocation8 + $0x8c] sm:$0xf]
        %v4449 = vld [vmem:[#allocation8 + $0x90] sm:$0xff]
        %v4450 = vld [vmem:[#allocation8 + $0x98] sm:$0xf]
        %v4451 = vld [vmem:[#allocation8 + $0x9c] sm:$0xff]
        %v4452 = vld [vmem:[#allocation8 + $0xa4] sm:$0xf]
        %v4453 = vld [vmem:[#allocation8 + $0xa8] sm:$0xff]
        %v4454 = vld [vmem:[#allocation8 + $0xb0] sm:$0xf]
        %v4455 = vld [vmem:[#allocation8 + $0xb4] sm:$0xff]
        %v4456 = vld [vmem:[#allocation8 + $0xbc] sm:$0xf]
        %v4489 = vunpack.c.l.b16 %v4425
        %v4490 = vunpack.c.h.b16 %v4425
        %v4491 = vunpack.c.l.b16 %v4426
        %v4492 = vunpack.c.l.b16 %v4427
        %v4493 = vunpack.c.h.b16 %v4427
        %v4494 = vunpack.c.l.b16 %v4428
        %v4495 = vunpack.c.l.b16 %v4429
        %v4496 = vunpack.c.h.b16 %v4429
        %v4497 = vunpack.c.l.b16 %v4430
        %v4498 = vunpack.c.l.b16 %v4431
        %v4499 = vunpack.c.h.b16 %v4431
        %v4500 = vunpack.c.l.b16 %v4432
        %v4501 = vunpack.c.l.b16 %v4433
        %v4502 = vunpack.c.h.b16 %v4433
        %v4503 = vunpack.c.l.b16 %v4434
        %v4504 = vunpack.c.l.b16 %v4435
        %v4505 = vunpack.c.h.b16 %v4435
        %v4506 = vunpack.c.l.b16 %v4436
        %v4507 = vunpack.c.l.b16 %v4437
        %v4508 = vunpack.c.h.b16 %v4437
        %v4509 = vunpack.c.l.b16 %v4438
        %v4510 = vunpack.c.l.b16 %v4439
        %v4511 = vunpack.c.h.b16 %v4439
        %v4512 = vunpack.c.l.b16 %v4440
        %v4513 = vunpack.c.l.b16 %v4441
        %v4514 = vunpack.c.h.b16 %v4441
        %v4515 = vunpack.c.l.b16 %v4442
        %v4516 = vunpack.c.l.b16 %v4443
        %v4517 = vunpack.c.h.b16 %v4443
        %v4518 = vunpack.c.l.b16 %v4444
        %v4519 = vunpack.c.l.b16 %v4445
        %v4520 = vunpack.c.h.b16 %v4445
        %v4521 = vunpack.c.l.b16 %v4446
        %v4522 = vunpack.c.l.b16 %v4447
        %v4523 = vunpack.c.h.b16 %v4447
        %v4524 = vunpack.c.l.b16 %v4448
        %v4525 = vunpack.c.l.b16 %v4449
        %v4526 = vunpack.c.h.b16 %v4449
        %v4527 = vunpack.c.l.b16 %v4450
        %v4528 = vunpack.c.l.b16 %v4451
        %v4529 = vunpack.c.h.b16 %v4451
        %v4530 = vunpack.c.l.b16 %v4452
        %v4531 = vunpack.c.l.b16 %v4453
        %v4532 = vunpack.c.h.b16 %v4453
        %v4533 = vunpack.c.l.b16 %v4454
        %v4534 = vunpack.c.l.b16 %v4455
        %v4535 = vunpack.c.h.b16 %v4455
        %v4536 = vunpack.c.l.b16 %v4456
        %v4537 = vpack.c.b16 %v4492, %v4489
        %v4538 = vpack.c.b16 %v4493, %v4490
        %v4539 = vpack.c.b16 %v4494, %v4491
        %v4540 = vpack.c.b16 %v4498, %v4495
        %v4541 = vpack.c.b16 %v4499, %v4496
        %v4542 = vpack.c.b16 %v4500, %v4497
        %v4543 = vpack.c.b16 %v4504, %v4501
        %v4544 = vpack.c.b16 %v4505, %v4502
        %v4545 = vpack.c.b16 %v4506, %v4503
        %v4546 = vpack.c.b16 %v4510, %v4507
        %v4547 = vpack.c.b16 %v4511, %v4508
        %v4548 = vpack.c.b16 %v4512, %v4509
        %v4549 = vpack.c.b16 %v4516, %v4513
        %v4550 = vpack.c.b16 %v4517, %v4514
        %v4551 = vpack.c.b16 %v4518, %v4515
        %v4552 = vpack.c.b16 %v4522, %v4519
        %v4553 = vpack.c.b16 %v4523, %v4520
        %v4554 = vpack.c.b16 %v4524, %v4521
        %v4555 = vpack.c.b16 %v4528, %v4525
        %v4556 = vpack.c.b16 %v4529, %v4526
        %v4557 = vpack.c.b16 %v4530, %v4527
        %v4558 = vpack.c.b16 %v4534, %v4531
        %v4559 = vpack.c.b16 %v4535, %v4532
        %v4560 = vpack.c.b16 %v4536, %v4533
        %4585 = vmatpush.bf16.msra.mxu0 %v4558
        %4586 = vmatpush.bf16.msra.mxu0 %v4555
        %4587 = vmatpush.bf16.msra.mxu0 %v4552
        %4588 = vmatpush.bf16.msra.mxu0 %v4549
        %4589 = vmatpush.bf16.msra.mxu0 %v4546
        %4590 = vmatpush.bf16.msra.mxu0 %v4543
        %4591 = vmatpush.bf16.msra.mxu0 %v4540
        %4592 = vmatpush.bf16.msra.mxu0 %v4537
        %4593 = vmatmul.bf16.gmra.mxu0 %v4424
        %v4594 = vpop.f32.mrf.mxu0
        %v4595 = vadd.f32 %v635, %v4594
        %v4596 = vpop.f32.mrf.mxu0
        %4597 = vdwg.mxu0
        %4598 = vmatpush.bf16.msra.mxu0 %v4559
        %4599 = vmatpush.bf16.msra.mxu0 %v4556
        %4600 = vmatpush.bf16.msra.mxu0 %v4553
        %4601 = vmatpush.bf16.msra.mxu0 %v4550
        %4602 = vmatpush.bf16.msra.mxu0 %v4547
        %4603 = vmatpush.bf16.msra.mxu0 %v4544
        %4604 = vmatpush.bf16.msra.mxu0 %v4541
        %4605 = vmatpush.bf16.msra.mxu0 %v4538
        %4606 = vmatmul.bf16.gmra.mxu0 %v4424
        %v4607 = vpop.f32.mrf.mxu0
        %v4608 = vadd.f32 %v636, %v4607
        %v4609 = vpop.f32.mrf.mxu0
        %4610 = vdwg.mxu0
        %4611 = vmatpush.bf16.msra.mxu0 %v4560
        %4612 = vmatpush.bf16.msra.mxu0 %v4557
        %4613 = vmatpush.bf16.msra.mxu0 %v4554
        %4614 = vmatpush.bf16.msra.mxu0 %v4551
        %4615 = vmatpush.bf16.msra.mxu0 %v4548
        %4616 = vmatpush.bf16.msra.mxu0 %v4545
        %4617 = vmatpush.bf16.msra.mxu0 %v4542
        %4618 = vmatpush.bf16.msra.mxu0 %v4539
        %4619 = vmatmul.bf16.gmra.mxu0 %v4424
        %v4620 = vpop.f32.mrf.mxu0
        %v4621 = vadd.f32 %v637, %v4620
        %v4622 = vpop.f32.mrf.mxu0
        %4623 = vdwg.mxu0
        %s4624 = scalar_lea.vmem [#allocation3], 31
        %v4625 = vld [vmem:[%s4624] ss:$8 sm:$0x7]
        %v4626 = vadd.f32 %v4625, %v4595
        %v4627 = vxor.u32 %v4626, 2147483648
        %v4628 = vmul.f32 %v4627, 1.442695
        %v4629 = vpow.pop %v4628
        %v4630 = vadd.f32 %v4629, 1.0
        %v4631 = vrcp.pop %v4630
        %v4632 = vmul.f32 %v4630, %v4631
        %v4633 = vsub.f32 1.0, %v4632
        %v4634 = vmul.f32 %v4631, %v4633
        %v4635 = vadd.f32 %v4631, %v4634
        %vm4636 = vweird.f32 %v4630
        %vm4637 = vweird.f32 %v4631
        %vm4638 = vmor %vm4636, %vm4637
        %v4639 = vsel %vm4638, %v4631, %v4635
        %v4640 = vand.u32 2147483647, %v4630
        %vm4641 = vcmp.eq.f32.partialorder %v4640, 8.507059e+37
        %v4642 = vand.u32 %v4630, 2147483648
        %v4643 = vor.u32 1.1754944e-38, %v4642
        %v4644 = vsel %vm4641, %v4643, %v4639
        %v4645 = vmul.f32 1.0, %v4644
        %v4647 = vrot.slane %v4625, 1
        %v4649 = vadd.f32 %v4647, %v4608
        %v4650 = vxor.u32 %v4649, 2147483648
        %v4651 = vmul.f32 %v4650, 1.442695
        %v4652 = vpow.pop %v4651
        %v4653 = vadd.f32 %v4652, 1.0
        %v4654 = vrcp.pop %v4653
        %v4655 = vmul.f32 %v4653, %v4654
        %v4656 = vsub.f32 1.0, %v4655
        %v4657 = vmul.f32 %v4654, %v4656
        %v4658 = vadd.f32 %v4654, %v4657
        %vm4659 = vweird.f32 %v4653
        %vm4660 = vweird.f32 %v4654
        %vm4661 = vmor %vm4659, %vm4660
        %v4662 = vsel %vm4661, %v4654, %v4658
        %v4663 = vand.u32 2147483647, %v4653
        %vm4664 = vcmp.eq.f32.partialorder %v4663, 8.507059e+37
        %v4665 = vand.u32 %v4653, 2147483648
        %v4666 = vor.u32 1.1754944e-38, %v4665
        %v4667 = vsel %vm4664, %v4666, %v4662
        %v4668 = vmul.f32 1.0, %v4667
        %v4669 = vmul.f32 %v4645, %v4621
        %v4670 = vrot.slane %v4625, 2
        %v4672 = vadd.f32 %v4670, %v4669
        %v4673 = vtanh.pop %v4672
        %v4674 = vsub.f32 1.0, %v4668
        %v4675 = vmul.f32 %v4674, %v4673
        %v4676 = vmul.f32 %v4668, %v4423
        %v4677 = vadd.f32 %v4675, %v4676
        %s4678 = sadd.s32 %s733, 15
        %p4679 = scmp.lt.s32.totalorder %s4678, 40
        %s4680 = scalar_select %p4679, 1, 0
        %v4681 = vstv %s4680
        %vm4682 = vcmp.eq.s32.totalorder %v4681, 1
        %v4683 = vsel %vm4682, %v4677, %v4423
        %4684 = vst [vmem:[#allocation2] sm:$0x1] %v4683
        %4685 = vst [vmem:[#allocation4 + $0xf] sm:$0x1] %v4677
        %v4686 = vld [vmem:[#allocation4] sm:$0xff]
        %v4687 = vld [vmem:[#allocation4 + $0x8] sm:$0xff]
        %v4688 = vpack.c.bf16 %v4687, %v4686
        %v4689 = vld [vmem:[%s6] sm:$0xf]
        %v4690 = vld [vmem:[%s6 + $0x4] sm:$0xf]
        %v4691 = vld [vmem:[%s6 + $0x8] sm:$0xf]
        %v4692 = vld [vmem:[%s6 + $0xc] sm:$0xf]
        %v4693 = vld [vmem:[%s6 + $0x10] sm:$0xf]
        %v4694 = vld [vmem:[%s6 + $0x14] sm:$0xf]
        %v4695 = vld [vmem:[%s6 + $0x18] sm:$0xf]
        %v4696 = vld [vmem:[%s6 + $0x1c] sm:$0xf]
        %v4697 = vld [vmem:[%s6 + $0x20] sm:$0xf]
        %v4698 = vld [vmem:[%s6 + $0x24] sm:$0xf]
        %v4699 = vld [vmem:[%s6 + $0x28] sm:$0xf]
        %v4700 = vld [vmem:[%s6 + $0x2c] sm:$0xf]
        %v4701 = vld [vmem:[%s6 + $0x30] sm:$0xf]
        %v4702 = vld [vmem:[%s6 + $0x34] sm:$0xf]
        %v4703 = vld [vmem:[%s6 + $0x38] sm:$0xf]
        %v4704 = vld [vmem:[%s6 + $0x3c] sm:$0xf]
        %v4705 = vld [vmem:[%s7] sm:$0x1]
        %v4707 = vperm.slane %v4705, 0
        %v4725 = vunpack.c.l.b16 %v4689
        %v4726 = vunpack.c.l.b16 %v4690
        %v4727 = vunpack.c.l.b16 %v4691
        %v4728 = vunpack.c.l.b16 %v4692
        %v4729 = vunpack.c.l.b16 %v4693
        %v4730 = vunpack.c.l.b16 %v4694
        %v4731 = vunpack.c.l.b16 %v4695
        %v4732 = vunpack.c.l.b16 %v4696
        %v4733 = vunpack.c.l.b16 %v4697
        %v4734 = vunpack.c.l.b16 %v4698
        %v4735 = vunpack.c.l.b16 %v4699
        %v4736 = vunpack.c.l.b16 %v4700
        %v4737 = vunpack.c.l.b16 %v4701
        %v4738 = vunpack.c.l.b16 %v4702
        %v4739 = vunpack.c.l.b16 %v4703
        %v4740 = vunpack.c.l.b16 %v4704
        %v4741 = vpack.c.b16 %v4726, %v4725
        %v4742 = vpack.c.b16 %v4728, %v4727
        %v4743 = vpack.c.b16 %v4730, %v4729
        %v4744 = vpack.c.b16 %v4732, %v4731
        %v4745 = vpack.c.b16 %v4734, %v4733
        %v4746 = vpack.c.b16 %v4736, %v4735
        %v4747 = vpack.c.b16 %v4738, %v4737
        %v4748 = vpack.c.b16 %v4740, %v4739
        %4757 = vmatpush.bf16.msra.mxu0 %v4748
        %4758 = vmatpush.bf16.msra.mxu0 %v4747
        %4759 = vmatpush.bf16.msra.mxu0 %v4746
        %4760 = vmatpush.bf16.msra.mxu0 %v4745
        %4761 = vmatpush.bf16.msra.mxu0 %v4744
        %4762 = vmatpush.bf16.msra.mxu0 %v4743
        %4763 = vmatpush.bf16.msra.mxu0 %v4742
        %4764 = vmatpush.bf16.msra.mxu0 %v4741
        %4765 = vmatmul.bf16.gmra.mxu0 %v4688
        %v4766 = vpop.f32.mrf.mxu0
        %v4767 = vadd.f32 %v4707, %v4766
        %v4768 = vpop.f32.mrf.mxu0
        %v4769 = vadd.f32 %v4707, %v4768
        %4770 = vdwg.mxu0
        %4771 = vst [vmem:[%s371] sm:$0xff] %v4767
        %4772 = vst [vmem:[%s371 + $0x8] sm:$0xff] %v4769
        %p4773 = scmp.eq.s32.totalorder %s27, 2
        // Predicated region
        $region69: #{tpu_custom_call.1} parent=51 // pred_check
          %p4774 = pneg %p4773
        $region70: #{tpu_custom_call.1} parent=51 // pred_check_branch
          %4776 = sbr.rel (%p4774) target = $region72
        $region71: #{tpu_custom_call.1} parent=51 // pred_region
          %v4777 = vld [vmem:[#allocation2] sm:$0x1]
          %4778 = vst [vmem:[#allocation12] sm:$0x1] %v4777
        $region72: #{tpu_custom_call.1} parent=51 // pred_fallthru
          _
        %s4779 = sand.u32 %s208, 1
        %s4780 = scalar_lea.sflag [#allocation7], %s4779
        %s4781 = sand.u32 %s208, 1
        %s4782 = smul.addr %s4781, 16
        %s4783 = scalar_lea.vmem [#allocation11], %s4782
        // Predicated region
        $region73: #{tpu_custom_call.1} parent=51 // pred_check
          %p4784 = pneg %p218
        $region74: #{tpu_custom_call.1} parent=51 // pred_check_branch
          %4786 = sbr.rel (%p4784) target = $region76
        $region75: #{tpu_custom_call.1} parent=51 // pred_region
          %s4787 = smul.u32 2, %s27
          %4789 = vsyncadd %s4780, 0
          %s4790 = smul.addr %s4787, 8
          %s4791 = scalar_lea.hbm %s8, %s4790
          %s4792 = sshll.u32 %s4783, 4
          %s4793 = int_to_ptr.vmem [resolvable:$true] %s4792
          %s4794 = sshll.u32 %s4791, 4
          %s4795 = int_to_ptr.hbm [resolvable:$true] %s4794
          %4800 = dma.vmem_to_hbm [thread:$0]  %s4793, 256, %s4795, %s4780, 128, 128, 8
        $region76: #{tpu_custom_call.1} parent=51 // pred_fallthru
          _
        // Predicated region
        $region77: #{tpu_custom_call.1} parent=51 // pred_check
          %p4801 = pneg %p239
        $region78: #{tpu_custom_call.1} parent=51 // pred_check_branch
          %4803 = sbr.rel (%p4801) target = $region80
        $region79: #{tpu_custom_call.1} parent=51 // pred_region
          %4805 = vsyncadd [#allocation13], 0
          %s4807 = sshll.u32 [#allocation12], 4
          %s4808 = int_to_ptr.vmem [resolvable:$true] %s4807
          %s4809 = sshll.u32 %s9, 4
          %s4810 = int_to_ptr.hbm [resolvable:$true] %s4809
          %4812 = dma.vmem_to_hbm [thread:$0]  %s4808, 16, %s4810, [#allocation13]
        $region80: #{tpu_custom_call.1} parent=51 // pred_fallthru
          _
        // Predicated region
        $region81: #{tpu_custom_call.1} parent=51 // pred_check
          %p4813 = pneg %p239
        $region82: #{tpu_custom_call.1} parent=51 // pred_check_branch
          %4815 = sbr.rel (%p4813) target = $region84
        $region83: #{tpu_custom_call.1} parent=51 // pred_region
          %4817 = dma.done [#allocation13], 16
        $region84: #{tpu_custom_call.1} parent=51 // pred_fallthru
          _
      $region52: #{tpu_custom_call.1} parent=5 // pred_fallthru
        _
      %p4818 = scmp.le.s32.totalorder 2, %s22
      // Predicated region
      $region85: #{tpu_custom_call.1} parent=5 // pred_check
        %p4819 = pneg %p4818
      $region86: #{tpu_custom_call.1} parent=5 // pred_check_branch
        %4821 = sbr.rel (%p4819) target = $region88
      $region87: #{tpu_custom_call.1} parent=5 // pred_region
        %s4822 = ssub.s32 %s22, 2
        // Predicated region
        $region89: #{tpu_custom_call.1} parent=87 // pred_check
          %p4823 = pneg %p224
        $region90: #{tpu_custom_call.1} parent=87 // pred_check_branch
          %4825 = sbr.rel (%p4823) target = $region92
        $region91: #{tpu_custom_call.1} parent=87 // pred_region
          %s4826 = sand.u32 %s209, 1
          %s4827 = scalar_lea.sflag [#allocation7], %s4826
          %s4828 = sand.u32 %s209, 1
          %s4829 = smul.addr %s4828, 16
          %s4830 = scalar_lea.vmem [#allocation11], %s4829
          %4832 = dma.done %s4827, 256
        $region92: #{tpu_custom_call.1} parent=87 // pred_fallthru
          _
      $region88: #{tpu_custom_call.1} parent=5 // pred_fallthru
        _
    $region6: #{tpu_custom_call.1} parent=1 // loop_footer
      %s26 = sadd.s32 1, %s22
    $region7: #{tpu_custom_call.1} parent=1 // loop_footer_branch
      %21 = sbr.rel target = $region3
    $region8: #{tpu_custom_call.1} parent=1 // loop_exit
      _
    %4833 = vsyncpa [#allocation6], 1
    %s4834 = scalar_lea.sflag [#allocation6], 1
    %4835 = vsyncpa %s4834, 1
    %4836 = vsyncpa [#allocation9], 1
    %4837 = vsyncpa [#allocation7], 1
    %s4838 = scalar_lea.sflag [#allocation7], 1
    %4839 = vsyncpa %s4838, 1
    %4840 = vsyncpa [#allocation13], 1

</llo_original>
